<compile_context>
chip_gen: v7x
topology: tpu7x:2x2x1
jax: 0.10.0
libtpu: 0.0.40
codegen_flags: <defaults>
</compile_context>

<pallas_src>
import functools

import jax
import jax.numpy as jnp
import numpy as np
from jax.experimental import pallas as pl
from jax.experimental.pallas import tpu as pltpu


def _cdiv(a, b):
    return -(-a // b)


def _round_up(a, m):
    return _cdiv(a, m) * m


def _accumulate_chunks(x_ref, acc_ref, tile):
    """acc_ref (B, C, 128) += f32 128-lane chunks of x_ref (B, C, tile).

    Statically unrolled one-vreg-column chunks: pure VPU adds into the resident
    f32 accumulator, never materializing a (B, C, tile) f32 upcast temp (keeps
    peak VMEM down -- critical on v7x -- and keeps ld/st slots free)."""
    n_full = tile // 128
    rem = tile - n_full * 128
    for i in range(n_full):
        off = i * 128                                   # static, 128-aligned
        acc_ref[...] += x_ref[:, :, pl.ds(off, 128)].astype(jnp.float32)
    if rem:
        off = n_full * 128
        acc_ref[:, :, :rem] += x_ref[:, :, pl.ds(off, rem)].astype(jnp.float32)


def _pool_concat_kernel(xf_ref, xs_ref, out_ref, accf_ref, accs_ref, *,
                        tile_f, tile_s, c_f, inv_sf, inv_ss):
    """Grid = (batch_tiles, s_steps). Pools both pathways, writes the concat."""
    step = pl.program_id(1)

    @pl.when(step == 0)
    def _init():
        accf_ref[...] = jnp.zeros_like(accf_ref)
        accs_ref[...] = jnp.zeros_like(accs_ref)

    _accumulate_chunks(xf_ref, accf_ref, tile_f)
    _accumulate_chunks(xs_ref, accs_ref, tile_s)

    @pl.when(step == pl.num_programs(1) - 1)
    def _finalize():
        # Single cross-lane (XLU) collapse, deferred to the last step; XLU is a
        # free slot for this HBM-bound kernel.
        pooled_f = accf_ref[...].sum(axis=-1) * inv_sf       # (B_tile, c_f)
        pooled_s = accs_ref[...].sum(axis=-1) * inv_ss       # (B_tile, c_s)
        # torch.cat((x_fast, x_slow), dim=1): fast channels first.  Real
        # SlowFast has C_fast=256, so the split is lane-aligned; otherwise the
        # second store is a tiny masked write on the (N, C_total) output only.
        out_ref[:, :, :c_f] = pooled_f[:, None, :].astype(out_ref.dtype)
        out_ref[:, :, c_f:] = pooled_s[:, None, :].astype(out_ref.dtype)


def _vmem_budgets():
    """Generation-aware scoped-VMEM budget (v5e/v6e: 128 MiB phys, v7x: 64 MiB)."""
    try:
        phys = pltpu.get_tpu_info().vmem_capacity_bytes
    except Exception:                       # interpret mode / older API
        phys = 64 << 20
    limit = min(phys // 2, 64 << 20)        # v5e/v6e -> 64 MiB, v7x -> 32 MiB
    budget = (limit * 3) // 4               # headroom for Mosaic internal temps
    return budget, limit


def _plan(n, c_f, s_f, c_s, s_s, in_itemsize, b_tile_req, vmem_budget_bytes):
    """Choose (b_tile, s_steps, tile_f, tile_s).

    Residency model = 2x double-buffered input tiles + f32 accumulators + one
    transient f32 upcast chunk.  s_steps == 1 uses full-extent S blocks (no
    128-rounding, no padding, no extra HBM copy) -- the common case for real
    SlowFast head shapes."""
    cap = min(b_tile_req, n)
    if n >= 2:
        cap = max(1, min(cap, n // 2))  # keep >=2 batch steps (v7x: 2 TCs)
    # Divisors of n only -> never pad/copy the batch axis.
    cand_b = [d for d in range(cap, 0, -1) if n % d == 0]

    def resident(b, tf, ts):
        inputs = 2 * b * (c_f * tf + c_s * ts) * in_itemsize
        accs = b * (c_f + c_s) * 128 * 4
        temp = b * max(c_f, c_s) * 128 * 4
        return inputs + accs + temp

    for b in cand_b:                      # prefer big batch tiles, single S step
        if resident(b, s_f, s_s) <= vmem_budget_bytes:
            return b, 1, s_f, s_s
    max_steps = max(_cdiv(s_f, 128), _cdiv(s_s, 128))
    for b in cand_b:                      # then the smallest S split that fits
        for steps in range(2, max_steps + 1):
            tf = _round_up(_cdiv(s_f, steps), 128)
            ts = _round_up(_cdiv(s_s, steps), 128)
            if resident(b, tf, ts) <= vmem_budget_bytes:
                return b, steps, tf, ts
    # Fallback: minimal 128-lane tiles (may exceed the budget estimate but is
    # the smallest expressible plan).
    return (1, max_steps,
            _round_up(_cdiv(s_f, max_steps), 128),
            _round_up(_cdiv(s_s, max_steps), 128))


def slowfast_pool_concat(x_fast, x_slow, *, out_dtype=None, b_tile=4,
                         vmem_budget_bytes=None):
    """Fused AdaptiveAvgPool3d((1,1,1)) + cat((fast, slow), ch) + flatten.

    Args:
      x_fast: (N, C_f, S_f) fast-pathway features, S_f = T_f*H*W (the backbone's
        native NCTHW layout after a free contiguous reshape).
      x_slow: (N, C_s, S_s) slow-pathway features.
    Returns:
      (N, C_f + C_s), fast channels first, matching
      torch.cat((avg_pool(x_fast), avg_pool(x_slow)), dim=1).view(N, -1).
    """
    n, c_f, s_f = x_fast.shape
    n2, c_s, s_s = x_slow.shape
    assert n == n2, "batch mismatch between pathways"
    out_dtype = out_dtype or x_fast.dtype
    inv_sf = 1.0 / float(s_f)      # always divide by the TRUE (unpadded) extent
    inv_ss = 1.0 / float(s_s)

    budget, vmem_limit = _vmem_budgets()
    if vmem_budget_bytes is not None:
        budget = vmem_budget_bytes
    bt, steps, tile_f, tile_s = _plan(n, c_f, s_f, c_s, s_s,
                                      x_fast.dtype.itemsize, b_tile, budget)

    # Only a multi-step S reduction needs 128-lane tiles -> zero-pad S (zeros
    # do not change the sum; the mean uses the true S).  The common single-step
    # plan uses full-extent blocks: no padding, no extra HBM copy.
    if steps * tile_f != s_f:
        x_fast = jnp.pad(x_fast, ((0, 0), (0, 0), (0, steps * tile_f - s_f)))
    if steps * tile_s != s_s:
        x_slow = jnp.pad(x_slow, ((0, 0), (0, 0), (0, steps * tile_s - s_s)))

    c_total = c_f + c_s
    kernel = functools.partial(_pool_concat_kernel, tile_f=tile_f,
                               tile_s=tile_s, c_f=c_f, inv_sf=inv_sf,
                               inv_ss=inv_ss)

    # TODO(synk): for N == 1 on v7x one TensorCore idles; a channel- or S-split
    # per-core variant would recover it, omitted here for simplicity.
    out = pl.pallas_call(
        kernel,
        out_shape=jax.ShapeDtypeStruct((n, 1, c_total), out_dtype),
        grid_spec=pltpu.PrefetchScalarGridSpec(
            num_scalar_prefetch=0,
            grid=(n // bt, steps),                   # S (reduction) axis last
            in_specs=[
                pl.BlockSpec((bt, c_f, tile_f), lambda b, s: (b, 0, s)),
                pl.BlockSpec((bt, c_s, tile_s), lambda b, s: (b, 0, s)),
            ],
            # Same output block across the S axis -> resident output tile.
            out_specs=pl.BlockSpec((bt, 1, c_total), lambda b, s: (b, 0, 0)),
            scratch_shapes=[
                pltpu.VMEM((bt, c_f, 128), jnp.float32),   # resident f32 accs
                pltpu.VMEM((bt, c_s, 128), jnp.float32),
            ],
        ),
        compiler_params=pltpu.CompilerParams(
            dimension_semantics=("parallel", "arbitrary"),
            vmem_limit_bytes=vmem_limit,
        ),
    )(x_fast, x_slow)
    return out.reshape(n, c_total)


def slowfast_encoder_head(x_slow_ncthw, x_fast_ncthw, **kw):
    """Exact semantics of SlowFast_Encoder.forward() after the backbone.

    NCTHW -> (N, C, T*H*W) is a contiguous reshape (free), so unlike a
    channels-last formulation there is no materialized transpose / extra HBM
    round trip feeding the kernel."""
    def flat(x):
        n, c, t, h, w = x.shape
        return x.reshape(n, c, t * h * w)
    return slowfast_pool_concat(flat(x_fast_ncthw), flat(x_slow_ncthw), **kw)


if __name__ == "__main__":
    key = jax.random.PRNGKey(0)
    kf, ks = jax.random.split(key)

    # Small shapes consistent with the module (real SlowFast head sees
    # C_slow=2048, C_fast=256, H=W=7, T_fast = alpha * T_slow); scaled down.
    N = 2
    C_FAST, T_FAST, H, W = 32, 16, 7, 7      # fast: many frames, few channels
    C_SLOW, T_SLOW = 256, 4                  # slow: few frames, many channels

    x_fast_ncthw = jax.random.normal(kf, (N, C_FAST, T_FAST, H, W), jnp.float32)
    x_slow_ncthw = jax.random.normal(ks, (N, C_SLOW, T_SLOW, H, W), jnp.float32)

    # Reference = the PyTorch forward head:
    #   cat((avg_pool(x_fast), avg_pool(x_slow)), dim=1).view(N, -1)
    ref = jnp.concatenate(
        [x_fast_ncthw.mean(axis=(2, 3, 4)), x_slow_ncthw.mean(axis=(2, 3, 4))],
        axis=1)

    # 1) Default plan: single S step, full-extent (non-128-multiple) blocks,
    #    no padding, batch-tiled grid.
    out1 = jax.block_until_ready(
        slowfast_encoder_head(x_slow_ncthw, x_fast_ncthw))
    # 2) Tiny VMEM budget to force a multi-step S reduction with zero-padded
    #    lane tiles, exercising init / accumulate / finalize pl.when paths.
    out2 = jax.block_until_ready(
        slowfast_encoder_head(x_slow_ncthw, x_fast_ncthw,
                              vmem_budget_bytes=700 * 1024))

    np.testing.assert_allclose(np.asarray(out1), np.asarray(ref),
                               rtol=1e-5, atol=1e-5)
    np.testing.assert_allclose(np.asarray(out2), np.asarray(ref),
                               rtol=1e-5, atol=1e-5)
    print("KERNEL_OK")
</pallas_src>

<mosaic_0001>
module attributes {stable_mosaic.version = 11 : i64} {
  func.func @_pool_concat_kernel(%arg0: i32, %arg1: i32, %arg2: memref<1x32x784xf32, #tpu.memory_space<vmem>>, %arg3: memref<1x256x196xf32, #tpu.memory_space<vmem>>, %arg4: memref<1x1x288xf32, #tpu.memory_space<vmem>>, %arg5: memref<1x32x128xf32, #tpu.memory_space<vmem>>, %arg6: memref<1x256x128xf32, #tpu.memory_space<vmem>>) attributes {dimension_semantics = [#tpu.dimension_semantics<parallel>, #tpu.dimension_semantics<arbitrary>], iteration_bounds = array<i64: 2, 1>, scalar_prefetch = 0 : i64, scratch_operands = 2 : i64, tpu.core_type = #tpu.core_type<tc>, window_params = [{transform_indices = @transform_0, window_bounds = array<i64: 1, 32, 784>}, {transform_indices = @transform_1, window_bounds = array<i64: 1, 256, 196>}, {transform_indices = @transform_2, window_bounds = array<i64: 1, 1, 288>}]} {
    %c0_i32 = arith.constant 0 : i32
    %0 = arith.cmpi eq, %arg1, %c0_i32 : i32
    %1 = arith.extui %0 : i1 to i32
    %c0_i32_0 = arith.constant 0 : i32
    %2 = arith.cmpi ne, %1, %c0_i32_0 : i32
    scf.if %2 {
      %cst = arith.constant 0.000000e+00 : f32
      %42 = vector.broadcast %cst : f32 to vector<1x32x128xf32>
      %c0_77 = arith.constant 0 : index
      %c0_78 = arith.constant 0 : index
      %c0_79 = arith.constant 0 : index
      %43 = vector.load %arg5[%c0_77, %c0_78, %c0_79] : memref<1x32x128xf32, #tpu.memory_space<vmem>>, vector<1x32x128xf32>
      tpu.vector_store %arg5[%c0_77, %c0_78, %c0_79], %42 {strides = array<i32>} : memref<1x32x128xf32, #tpu.memory_space<vmem>>, vector<1x32x128xf32>,
      %cst_80 = arith.constant 0.000000e+00 : f32
      %44 = vector.broadcast %cst_80 : f32 to vector<1x256x128xf32>
      %c0_81 = arith.constant 0 : index
      %c0_82 = arith.constant 0 : index
      %c0_83 = arith.constant 0 : index
      %45 = vector.load %arg6[%c0_81, %c0_82, %c0_83] : memref<1x256x128xf32, #tpu.memory_space<vmem>>, vector<1x256x128xf32>
      tpu.vector_store %arg6[%c0_81, %c0_82, %c0_83], %44 {strides = array<i32>} : memref<1x256x128xf32, #tpu.memory_space<vmem>>, vector<1x256x128xf32>,
    } else {
    }
    %c0 = arith.constant 0 : index
    %c0_1 = arith.constant 0 : index
    %c0_2 = arith.constant 0 : index
    %3 = vector.load %arg5[%c0, %c0_1, %c0_2] : memref<1x32x128xf32, #tpu.memory_space<vmem>>, vector<1x32x128xf32>
    %c0_3 = arith.constant 0 : index
    %c0_4 = arith.constant 0 : index
    %c0_5 = arith.constant 0 : index
    %4 = vector.load %arg2[%c0_3, %c0_4, %c0_5] : memref<1x32x784xf32, #tpu.memory_space<vmem>>, vector<1x32x128xf32>
    %5 = arith.addf %3, %4 : vector<1x32x128xf32>
    %c0_6 = arith.constant 0 : index
    %c0_7 = arith.constant 0 : index
    %c0_8 = arith.constant 0 : index
    %6 = vector.load %arg5[%c0_6, %c0_7, %c0_8] : memref<1x32x128xf32, #tpu.memory_space<vmem>>, vector<1x32x128xf32>
    tpu.vector_store %arg5[%c0_6, %c0_7, %c0_8], %5 {strides = array<i32>} : memref<1x32x128xf32, #tpu.memory_space<vmem>>, vector<1x32x128xf32>,
    %c0_9 = arith.constant 0 : index
    %c0_10 = arith.constant 0 : index
    %c0_11 = arith.constant 0 : index
    %7 = vector.load %arg5[%c0_9, %c0_10, %c0_11] : memref<1x32x128xf32, #tpu.memory_space<vmem>>, vector<1x32x128xf32>
    %c0_12 = arith.constant 0 : index
    %c0_13 = arith.constant 0 : index
    %c128 = arith.constant 128 : index
    %8 = vector.load %arg2[%c0_12, %c0_13, %c128] : memref<1x32x784xf32, #tpu.memory_space<vmem>>, vector<1x32x128xf32>
    %9 = arith.addf %7, %8 : vector<1x32x128xf32>
    %c0_14 = arith.constant 0 : index
    %c0_15 = arith.constant 0 : index
    %c0_16 = arith.constant 0 : index
    %10 = vector.load %arg5[%c0_14, %c0_15, %c0_16] : memref<1x32x128xf32, #tpu.memory_space<vmem>>, vector<1x32x128xf32>
    tpu.vector_store %arg5[%c0_14, %c0_15, %c0_16], %9 {strides = array<i32>} : memref<1x32x128xf32, #tpu.memory_space<vmem>>, vector<1x32x128xf32>,
    %c0_17 = arith.constant 0 : index
    %c0_18 = arith.constant 0 : index
    %c0_19 = arith.constant 0 : index
    %11 = vector.load %arg5[%c0_17, %c0_18, %c0_19] : memref<1x32x128xf32, #tpu.memory_space<vmem>>, vector<1x32x128xf32>
    %c0_20 = arith.constant 0 : index
    %c0_21 = arith.constant 0 : index
    %c256 = arith.constant 256 : index
    %12 = vector.load %arg2[%c0_20, %c0_21, %c256] : memref<1x32x784xf32, #tpu.memory_space<vmem>>, vector<1x32x128xf32>
    %13 = arith.addf %11, %12 : vector<1x32x128xf32>
    %c0_22 = arith.constant 0 : index
    %c0_23 = arith.constant 0 : index
    %c0_24 = arith.constant 0 : index
    %14 = vector.load %arg5[%c0_22, %c0_23, %c0_24] : memref<1x32x128xf32, #tpu.memory_space<vmem>>, vector<1x32x128xf32>
    tpu.vector_store %arg5[%c0_22, %c0_23, %c0_24], %13 {strides = array<i32>} : memref<1x32x128xf32, #tpu.memory_space<vmem>>, vector<1x32x128xf32>,
    %c0_25 = arith.constant 0 : index
    %c0_26 = arith.constant 0 : index
    %c0_27 = arith.constant 0 : index
    %15 = vector.load %arg5[%c0_25, %c0_26, %c0_27] : memref<1x32x128xf32, #tpu.memory_space<vmem>>, vector<1x32x128xf32>
    %c0_28 = arith.constant 0 : index
    %c0_29 = arith.constant 0 : index
    %c384 = arith.constant 384 : index
    %16 = vector.load %arg2[%c0_28, %c0_29, %c384] : memref<1x32x784xf32, #tpu.memory_space<vmem>>, vector<1x32x128xf32>
    %17 = arith.addf %15, %16 : vector<1x32x128xf32>
    %c0_30 = arith.constant 0 : index
    %c0_31 = arith.constant 0 : index
    %c0_32 = arith.constant 0 : index
    %18 = vector.load %arg5[%c0_30, %c0_31, %c0_32] : memref<1x32x128xf32, #tpu.memory_space<vmem>>, vector<1x32x128xf32>
    tpu.vector_store %arg5[%c0_30, %c0_31, %c0_32], %17 {strides = array<i32>} : memref<1x32x128xf32, #tpu.memory_space<vmem>>, vector<1x32x128xf32>,
    %c0_33 = arith.constant 0 : index
    %c0_34 = arith.constant 0 : index
    %c0_35 = arith.constant 0 : index
    %19 = vector.load %arg5[%c0_33, %c0_34, %c0_35] : memref<1x32x128xf32, #tpu.memory_space<vmem>>, vector<1x32x128xf32>
    %c0_36 = arith.constant 0 : index
    %c0_37 = arith.constant 0 : index
    %c512 = arith.constant 512 : index
    %20 = vector.load %arg2[%c0_36, %c0_37, %c512] : memref<1x32x784xf32, #tpu.memory_space<vmem>>, vector<1x32x128xf32>
    %21 = arith.addf %19, %20 : vector<1x32x128xf32>
    %c0_38 = arith.constant 0 : index
    %c0_39 = arith.constant 0 : index
    %c0_40 = arith.constant 0 : index
    %22 = vector.load %arg5[%c0_38, %c0_39, %c0_40] : memref<1x32x128xf32, #tpu.memory_space<vmem>>, vector<1x32x128xf32>
    tpu.vector_store %arg5[%c0_38, %c0_39, %c0_40], %21 {strides = array<i32>} : memref<1x32x128xf32, #tpu.memory_space<vmem>>, vector<1x32x128xf32>,
    %c0_41 = arith.constant 0 : index
    %c0_42 = arith.constant 0 : index
    %c0_43 = arith.constant 0 : index
    %23 = vector.load %arg5[%c0_41, %c0_42, %c0_43] : memref<1x32x128xf32, #tpu.memory_space<vmem>>, vector<1x32x128xf32>
    %c0_44 = arith.constant 0 : index
    %c0_45 = arith.constant 0 : index
    %c640 = arith.constant 640 : index
    %24 = vector.load %arg2[%c0_44, %c0_45, %c640] : memref<1x32x784xf32, #tpu.memory_space<vmem>>, vector<1x32x128xf32>
    %25 = arith.addf %23, %24 : vector<1x32x128xf32>
    %c0_46 = arith.constant 0 : index
    %c0_47 = arith.constant 0 : index
    %c0_48 = arith.constant 0 : index
    %26 = vector.load %arg5[%c0_46, %c0_47, %c0_48] : memref<1x32x128xf32, #tpu.memory_space<vmem>>, vector<1x32x128xf32>
    tpu.vector_store %arg5[%c0_46, %c0_47, %c0_48], %25 {strides = array<i32>} : memref<1x32x128xf32, #tpu.memory_space<vmem>>, vector<1x32x128xf32>,
    %c0_49 = arith.constant 0 : index
    %c0_50 = arith.constant 0 : index
    %c0_51 = arith.constant 0 : index
    %27 = vector.load %arg5[%c0_49, %c0_50, %c0_51] : memref<1x32x128xf32, #tpu.memory_space<vmem>>, vector<1x32x16xf32>
    %c0_52 = arith.constant 0 : index
    %c0_53 = arith.constant 0 : index
    %c768 = arith.constant 768 : index
    %28 = vector.load %arg2[%c0_52, %c0_53, %c768] : memref<1x32x784xf32, #tpu.memory_space<vmem>>, vector<1x32x16xf32>
    %29 = arith.addf %27, %28 : vector<1x32x16xf32>
    %c0_54 = arith.constant 0 : index
    %c0_55 = arith.constant 0 : index
    %c0_56 = arith.constant 0 : index
    %30 = vector.load %arg5[%c0_54, %c0_55, %c0_56] : memref<1x32x128xf32, #tpu.memory_space<vmem>>, vector<1x32x16xf32>
    tpu.vector_store %arg5[%c0_54, %c0_55, %c0_56], %29 {strides = array<i32>} : memref<1x32x128xf32, #tpu.memory_space<vmem>>, vector<1x32x16xf32>,
    %c0_57 = arith.constant 0 : index
    %c0_58 = arith.constant 0 : index
    %c0_59 = arith.constant 0 : index
    %31 = vector.load %arg6[%c0_57, %c0_58, %c0_59] : memref<1x256x128xf32, #tpu.memory_space<vmem>>, vector<1x256x128xf32>
    %c0_60 = arith.constant 0 : index
    %c0_61 = arith.constant 0 : index
    %c0_62 = arith.constant 0 : index
    %32 = vector.load %arg3[%c0_60, %c0_61, %c0_62] : memref<1x256x196xf32, #tpu.memory_space<vmem>>, vector<1x256x128xf32>
    %33 = arith.addf %31, %32 : vector<1x256x128xf32>
    %c0_63 = arith.constant 0 : index
    %c0_64 = arith.constant 0 : index
    %c0_65 = arith.constant 0 : index
    %34 = vector.load %arg6[%c0_63, %c0_64, %c0_65] : memref<1x256x128xf32, #tpu.memory_space<vmem>>, vector<1x256x128xf32>
    tpu.vector_store %arg6[%c0_63, %c0_64, %c0_65], %33 {strides = array<i32>} : memref<1x256x128xf32, #tpu.memory_space<vmem>>, vector<1x256x128xf32>,
    %c0_66 = arith.constant 0 : index
    %c0_67 = arith.constant 0 : index
    %c0_68 = arith.constant 0 : index
    %35 = vector.load %arg6[%c0_66, %c0_67, %c0_68] : memref<1x256x128xf32, #tpu.memory_space<vmem>>, vector<1x256x68xf32>
    %c0_69 = arith.constant 0 : index
    %c0_70 = arith.constant 0 : index
    %c128_71 = arith.constant 128 : index
    %36 = vector.load %arg3[%c0_69, %c0_70, %c128_71] : memref<1x256x196xf32, #tpu.memory_space<vmem>>, vector<1x256x68xf32>
    %37 = arith.addf %35, %36 : vector<1x256x68xf32>
    %c0_72 = arith.constant 0 : index
    %c0_73 = arith.constant 0 : index
    %c0_74 = arith.constant 0 : index
    %38 = vector.load %arg6[%c0_72, %c0_73, %c0_74] : memref<1x256x128xf32, #tpu.memory_space<vmem>>, vector<1x256x68xf32>
    tpu.vector_store %arg6[%c0_72, %c0_73, %c0_74], %37 {strides = array<i32>} : memref<1x256x128xf32, #tpu.memory_space<vmem>>, vector<1x256x68xf32>,
    %c0_i32_75 = arith.constant 0 : i32
    %39 = arith.cmpi eq, %arg1, %c0_i32_75 : i32
    %40 = arith.extui %39 : i1 to i32
    %c0_i32_76 = arith.constant 0 : i32
    %41 = arith.cmpi ne, %40, %c0_i32_76 : i32
    scf.if %41 {
      %c0_77 = arith.constant 0 : index
      %c0_78 = arith.constant 0 : index
      %c0_79 = arith.constant 0 : index
      %42 = vector.load %arg5[%c0_77, %c0_78, %c0_79] : memref<1x32x128xf32, #tpu.memory_space<vmem>>, vector<1x32x128xf32>
      %cst = arith.constant dense<0.000000e+00> : vector<1x32xf32>
      %43 = vector.multi_reduction <add>, %42, %cst [2] : vector<1x32x128xf32> to vector<1x32xf32>
      %cst_80 = arith.constant 0.00127551018 : f32
      %44 = vector.broadcast %cst_80 : f32 to vector<1x32xf32>
      %45 = arith.mulf %43, %44 : vector<1x32xf32>
      %c0_81 = arith.constant 0 : index
      %c0_82 = arith.constant 0 : index
      %c0_83 = arith.constant 0 : index
      %46 = vector.load %arg6[%c0_81, %c0_82, %c0_83] : memref<1x256x128xf32, #tpu.memory_space<vmem>>, vector<1x256x128xf32>
      %cst_84 = arith.constant dense<0.000000e+00> : vector<1x256xf32>
      %47 = vector.multi_reduction <add>, %46, %cst_84 [2] : vector<1x256x128xf32> to vector<1x256xf32>
      %cst_85 = arith.constant 0.00510204071 : f32
      %48 = vector.broadcast %cst_85 : f32 to vector<1x256xf32>
      %49 = arith.mulf %47, %48 : vector<1x256xf32>
      %50 = vector.shape_cast %45 : vector<1x32xf32> to vector<1x1x32xf32>
      %c0_86 = arith.constant 0 : index
      %c0_87 = arith.constant 0 : index
      %c0_88 = arith.constant 0 : index
      %51 = vector.load %arg4[%c0_86, %c0_87, %c0_88] : memref<1x1x288xf32, #tpu.memory_space<vmem>>, vector<1x1x32xf32>
      tpu.vector_store %arg4[%c0_86, %c0_87, %c0_88], %50 {strides = array<i32>} : memref<1x1x288xf32, #tpu.memory_space<vmem>>, vector<1x1x32xf32>,
      %52 = vector.shape_cast %49 : vector<1x256xf32> to vector<1x1x256xf32>
      %c0_89 = arith.constant 0 : index
      %c0_90 = arith.constant 0 : index
      %c32 = arith.constant 32 : index
      %53 = vector.load %arg4[%c0_89, %c0_90, %c32] : memref<1x1x288xf32, #tpu.memory_space<vmem>>, vector<1x1x256xf32>
      tpu.vector_store %arg4[%c0_89, %c0_90, %c32], %52 {strides = array<i32>} : memref<1x1x288xf32, #tpu.memory_space<vmem>>, vector<1x1x256xf32>,
    } else {
    }
    return
  }
  func.func @transform_0(%arg0: i32, %arg1: i32) -> (i32, i32, i32) {
    %c0_i32 = arith.constant 0 : i32
    %c0_i32_0 = arith.constant 0 : i32
    return %arg0, %c0_i32, %arg1 : i32, i32, i32
  }
  func.func @transform_1(%arg0: i32, %arg1: i32) -> (i32, i32, i32) {
    %c0_i32 = arith.constant 0 : i32
    %c0_i32_0 = arith.constant 0 : i32
    return %arg0, %c0_i32, %arg1 : i32, i32, i32
  }
  func.func @transform_2(%arg0: i32, %arg1: i32) -> (i32, i32, i32) {
    %c0_i32 = arith.constant 0 : i32
    %c0_i32_0 = arith.constant 0 : i32
    %c0_i32_1 = arith.constant 0 : i32
    return %arg0, %c0_i32, %c0_i32_0 : i32, i32, i32
  }
}

</mosaic_0001>

<llo_original>
// kernel: tpu_custom_call.1
$region0: #{tpu_custom_call.1}
  #allocation0 [shape = 'u32[]', space=smem, size = 0x4, offset = 0x4, fixed_abs, tag = 'smem constant byte address 0x4 - core index']
  #allocation1 [shape = 'u32[144,128]{1,0:T(1,128)}', space=vmem, size = 0x12000, scoped, tag = 'internal scratch']
  #allocation2 [shape = 'f32[1,32,128]{2,1,0:T(8,128)}', space=vmem, size = 0x4000, scoped, tag = 'scratch operand']
  #allocation3 [shape = 'f32[1,256,128]{2,1,0:T(8,128)}', space=vmem, size = 0x20000, scoped, tag = 'scratch operand']
  %s0 = inlined_call_operand.vmem [shape: f32[2,32,784], index: 0, kind: input, shape index: {}]
  %s1 = inlined_call_operand.vmem [shape: f32[2,256,196], index: 1, kind: input, shape index: {}]
  %s2 = inlined_call_operand.hbm [shape: f32[2,1,288], index: 2, kind: output, shape index: {}]
  %s3 = sld [smem:[#allocation0]]
  $region49: #{tpu_custom_call.1} parent=0
    _
  %s5 = ssub.s32 1, %s3
  %s6 = scalar_select 0, %s5, %s3
  $region1: #{tpu_custom_call.1} parent=0
    #allocation4 [shape = 'u8[3072]{0}', space=vmem, size = 0xc00, scoped, tag = 'output window, operand 0']
    #allocation5 [shape = 's32[2]{0}', space=sflag, size = 0x8, scoped, tag = 'scoped memory for tpu_custom_call.1']
    %7 = vsyncpa [#allocation5], 0
    %s8 = scalar_lea.sflag [#allocation5], 1
    %9 = vsyncpa %s8, 0
    loop: start=0, step=1, limit=4
    $region2: #{tpu_custom_call.1} parent=1 // loop_pre_header
      _
    $region3: #{tpu_custom_call.1} parent=1 // loop_header
      %s11 = sphi 0, %s15
      %p12 = scmp.ge.s32.totalorder %s11, 4
      %s18 = sphi 0, %s30
      %s19 = sphi 0, %s26
      %s20 = sphi 0, %s18
      %s21 = sphi 0, %s19
      %s22 = sphi 0, %s20
      %s23 = sphi 0, %s21
      %s35 = sphi 0, %s37
      %s38 = sphi 0, %s35
      %s39 = sphi 0, %s38
      %s55 = sphi 0, %s39
      %s63 = sphi 0, %s65
      %s66 = sphi 0, %s63
      %s67 = sphi 0, %s66
      %s83 = sphi 0, %s67
      %s89 = sphi 0, %s91
      %s92 = sphi 0, %s89
      %s93 = sphi 0, %s92
      %s109 = sphi 0, %s93
    $region4: #{tpu_custom_call.1} parent=1 // loop_header_branch
      %14 = sbr.rel (%p12) target = $region8
    $region5: #{tpu_custom_call.1} parent=1 // loop_body
      %s16 = ssub.s32 %s11, 1
      %s17 = ssub.s32 %s11, 2
      %s24 = sadd.s32 1, %s19
      %p25 = scmp.ge.s32.totalorder %s24, 1
      %s26 = scalar_select %p25, 0, %s24
      %s27 = sadd.s32 1, %s18
      %s28 = scalar_select %p25, %s27, %s18
      %p29 = scmp.ge.s32.totalorder %s28, 2
      %s30 = scalar_select %p29, 0, %s28
      %s31 = ssub.s32 %s18, %s30
      %s32 = ssub.s32 %s19, %s26
      %s33 = sor.u32 %s31, %s32
      %p34 = scmp.eq.s32.totalorder %s33, 0
      %s36 = sadd.s32 %s35, 1
      %s37 = scalar_select %p34, %s35, %s36
      %p40 = pneg %p34
      %p41 = scmp.eq.s32.totalorder %s11, 1
      %p42 = por %p40, %p41
      %p43 = scmp.ne.s32.totalorder %s35, %s38
      %p44 = scmp.eq.s32.totalorder %s11, 0
      %p45 = por %p43, %p44
      %p46 = scmp.ne.s32.totalorder %s35, %s38
      %p47 = scmp.eq.s32.totalorder %s16, 1
      %p48 = por %p46, %p47
      %p49 = scmp.ne.s32.totalorder %s38, %s39
      %p50 = scmp.eq.s32.totalorder %s16, 0
      %p51 = por %p49, %p50
      %p52 = scmp.ne.s32.totalorder %s38, %s39
      %p53 = scmp.eq.s32.totalorder %s17, 1
      %p54 = por %p52, %p53
      %p56 = scmp.ne.s32.totalorder %s39, %s55
      %p57 = scmp.eq.s32.totalorder %s17, 0
      %p58 = por %p56, %p57
      %s59 = ssub.s32 %s18, %s30
      %s60 = ssub.s32 %s19, %s26
      %s61 = sor.u32 %s59, %s60
      %p62 = scmp.eq.s32.totalorder %s61, 0
      %s64 = sadd.s32 %s63, 1
      %s65 = scalar_select %p62, %s63, %s64
      %p68 = pneg %p62
      %p69 = scmp.eq.s32.totalorder %s11, 1
      %p70 = por %p68, %p69
      %p71 = scmp.ne.s32.totalorder %s63, %s66
      %p72 = scmp.eq.s32.totalorder %s11, 0
      %p73 = por %p71, %p72
      %p74 = scmp.ne.s32.totalorder %s63, %s66
      %p75 = scmp.eq.s32.totalorder %s16, 1
      %p76 = por %p74, %p75
      %p77 = scmp.ne.s32.totalorder %s66, %s67
      %p78 = scmp.eq.s32.totalorder %s16, 0
      %p79 = por %p77, %p78
      %p80 = scmp.ne.s32.totalorder %s66, %s67
      %p81 = scmp.eq.s32.totalorder %s17, 1
      %p82 = por %p80, %p81
      %p84 = scmp.ne.s32.totalorder %s67, %s83
      %p85 = scmp.eq.s32.totalorder %s17, 0
      %p86 = por %p84, %p85
      %s87 = ssub.s32 %s18, %s30
      %p88 = scmp.eq.s32.totalorder %s87, 0
      %s90 = sadd.s32 %s89, 1
      %s91 = scalar_select %p88, %s89, %s90
      %p94 = pneg %p88
      %p95 = scmp.eq.s32.totalorder %s11, 1
      %p96 = por %p94, %p95
      %p97 = scmp.ne.s32.totalorder %s89, %s92
      %p98 = scmp.eq.s32.totalorder %s11, 0
      %p99 = por %p97, %p98
      %p100 = scmp.ne.s32.totalorder %s89, %s92
      %p101 = scmp.eq.s32.totalorder %s16, 1
      %p102 = por %p100, %p101
      %p103 = scmp.ne.s32.totalorder %s92, %s93
      %p104 = scmp.eq.s32.totalorder %s16, 0
      %p105 = por %p103, %p104
      %p106 = scmp.ne.s32.totalorder %s92, %s93
      %p107 = scmp.eq.s32.totalorder %s17, 1
      %p108 = por %p106, %p107
      %p110 = scmp.ne.s32.totalorder %s93, %s109
      %p111 = scmp.eq.s32.totalorder %s17, 0
      %p112 = por %p110, %p111
      %p113 = scmp.le.s32.totalorder 1, %s11
      %p114 = scmp.lt.s32.totalorder %s11, 3
      %p115 = pnand %p113, %p114
      %p116 = pneg %p115
      // Predicated region
      $region9: #{tpu_custom_call.1} parent=5 // pred_check
        _
      $region10: #{tpu_custom_call.1} parent=5 // pred_check_branch
        %118 = sbr.rel (%p115) target = $region12
      $region11: #{tpu_custom_call.1} parent=5 // pred_region
        %s119 = ssub.s32 %s11, 1
      $region12: #{tpu_custom_call.1} parent=5 // pred_fallthru
        _
      %p120 = scmp.lt.s32.totalorder %s11, 2
      // Predicated region
      $region13: #{tpu_custom_call.1} parent=5 // pred_check
        %p121 = pneg %p120
      $region14: #{tpu_custom_call.1} parent=5 // pred_check_branch
        %123 = sbr.rel (%p121) target = $region16
      $region15: #{tpu_custom_call.1} parent=5 // pred_region
        // Predicated region
        $region17: #{tpu_custom_call.1} parent=15 // pred_check
          %p124 = pneg %p45
        $region18: #{tpu_custom_call.1} parent=15 // pred_check_branch
          %126 = sbr.rel (%p124) target = $region20
        $region19: #{tpu_custom_call.1} parent=15 // pred_region
          %s127 = smul.u32 7, %s19
          %p128 = scmp.lt.s32.totalorder %s18, 1
          %s129 = scalar_select %p128, %s18, 1
          %p130 = scmp.lt.s32.totalorder %s127, 6
          %s131 = scalar_select %p130, %s127, 6
          %s132 = smul.addr %s129, 28
          %s133 = sadd.s32 %s131, %s132
          %s134 = smul.addr %s133, 8
          %s135 = scalar_lea.vmem %s0, %s134
          %s136 = smul.u32 7, %s19
        $region20: #{tpu_custom_call.1} parent=15 // pred_fallthru
          _
        // Predicated region
        $region21: #{tpu_custom_call.1} parent=15 // pred_check
          %p137 = pneg %p73
        $region22: #{tpu_custom_call.1} parent=15 // pred_check_branch
          %139 = sbr.rel (%p137) target = $region24
        $region23: #{tpu_custom_call.1} parent=15 // pred_region
          %s140 = smul.u32 2, %s19
          %p141 = scmp.lt.s32.totalorder %s18, 1
          %s142 = scalar_select %p141, %s18, 1
          %p143 = scmp.lt.s32.totalorder %s140, 1
          %s144 = scalar_select %p143, %s140, 1
          %s145 = smul.addr %s142, 64
          %s146 = sadd.s32 %s144, %s145
          %s147 = smul.addr %s146, 8
          %s148 = scalar_lea.vmem %s1, %s147
          %s149 = smul.u32 2, %s19
        $region24: #{tpu_custom_call.1} parent=15 // pred_fallthru
          _
      $region16: #{tpu_custom_call.1} parent=5 // pred_fallthru
        _
      %p150 = scmp.le.s32.totalorder 1, %s11
      %p151 = scmp.lt.s32.totalorder %s11, 3
      %p152 = pnand %p150, %p151
      %p153 = pneg %p152
      // Predicated region
      $region25: #{tpu_custom_call.1} parent=5 // pred_check
        _
      $region26: #{tpu_custom_call.1} parent=5 // pred_check_branch
        %155 = sbr.rel (%p152) target = $region28
      $region27: #{tpu_custom_call.1} parent=5 // pred_region
        %s156 = ssub.s32 %s11, 1
        %s157 = smul.u32 7, %s21
        %p158 = scmp.lt.s32.totalorder %s20, 1
        %s159 = scalar_select %p158, %s20, 1
        %p160 = scmp.lt.s32.totalorder %s157, 6
        %s161 = scalar_select %p160, %s157, 6
        %s162 = smul.addr %s159, 28
        %s163 = sadd.s32 %s161, %s162
        %s164 = smul.addr %s163, 8
        %s165 = scalar_lea.vmem %s0, %s164
        %p166 = pneg %p51
        %p167 = pneg %p48
        %s168 = smul.u32 2, %s21
        %p169 = scmp.lt.s32.totalorder %s20, 1
        %s170 = scalar_select %p169, %s20, 1
        %p171 = scmp.lt.s32.totalorder %s168, 1
        %s172 = scalar_select %p171, %s168, 1
        %s173 = smul.addr %s170, 64
        %s174 = sadd.s32 %s172, %s173
        %s175 = smul.addr %s174, 8
        %s176 = scalar_lea.vmem %s1, %s175
        %p177 = pneg %p79
        %p178 = pneg %p76
        %p179 = pneg %p105
        %p180 = pneg %p102
        %s181 = sand.u32 %s92, 1
        %s182 = scalar_lea.sflag [#allocation5], %s181
        %s183 = sand.u32 %s92, 1
        %s184 = smul.addr %s183, 3
        %s185 = scalar_lea.vmem [#allocation4], %s184
        %s186 = smul.u32 7, %s21
        %p187 = scmp.lt.s32.totalorder %s20, 1
        %s188 = scalar_select %p187, %s20, 1
        %p189 = scmp.lt.s32.totalorder %s186, 6
        %s190 = scalar_select %p189, %s186, 6
        %s191 = smul.addr %s188, 28
        %s192 = sadd.s32 %s190, %s191
        %s193 = smul.addr %s192, 8
        %s194 = scalar_lea.vmem %s0, %s193
        %s195 = smul.u32 7, %s21
        %s196 = smul.u32 2, %s21
        %p197 = scmp.lt.s32.totalorder %s20, 1
        %s198 = scalar_select %p197, %s20, 1
        %p199 = scmp.lt.s32.totalorder %s196, 1
        %s200 = scalar_select %p199, %s196, 1
        %s201 = smul.addr %s198, 64
        %s202 = sadd.s32 %s200, %s201
        %s203 = smul.addr %s202, 8
        %s204 = scalar_lea.vmem %s1, %s203
        %s205 = smul.u32 2, %s21
        %p206 = scmp.eq.s32.totalorder %s21, 0
        // Predicated region
        $region29: #{tpu_custom_call.1} parent=27 // pred_check
          %p207 = pneg %p206
        $region30: #{tpu_custom_call.1} parent=27 // pred_check_branch
          %209 = sbr.rel (%p207) target = $region32
        $region31: #{tpu_custom_call.1} parent=27 // pred_region
          %210 = vst [vmem:[#allocation2] sm:$0xff] 0.0
          %211 = vst [vmem:[#allocation2 + $0x8] sm:$0xff] 0.0
          %212 = vst [vmem:[#allocation2 + $0x10] sm:$0xff] 0.0
          %213 = vst [vmem:[#allocation2 + $0x18] sm:$0xff] 0.0
          %214 = vst [vmem:[#allocation3] sm:$0xff] 0.0
          %215 = vst [vmem:[#allocation3 + $0x8] sm:$0xff] 0.0
          %216 = vst [vmem:[#allocation3 + $0x10] sm:$0xff] 0.0
          %217 = vst [vmem:[#allocation3 + $0x18] sm:$0xff] 0.0
          %218 = vst [vmem:[#allocation3 + $0x20] sm:$0xff] 0.0
          %219 = vst [vmem:[#allocation3 + $0x28] sm:$0xff] 0.0
          %220 = vst [vmem:[#allocation3 + $0x30] sm:$0xff] 0.0
          %221 = vst [vmem:[#allocation3 + $0x38] sm:$0xff] 0.0
          %222 = vst [vmem:[#allocation3 + $0x40] sm:$0xff] 0.0
          %223 = vst [vmem:[#allocation3 + $0x48] sm:$0xff] 0.0
          %224 = vst [vmem:[#allocation3 + $0x50] sm:$0xff] 0.0
          %225 = vst [vmem:[#allocation3 + $0x58] sm:$0xff] 0.0
          %226 = vst [vmem:[#allocation3 + $0x60] sm:$0xff] 0.0
          %227 = vst [vmem:[#allocation3 + $0x68] sm:$0xff] 0.0
          %228 = vst [vmem:[#allocation3 + $0x70] sm:$0xff] 0.0
          %229 = vst [vmem:[#allocation3 + $0x78] sm:$0xff] 0.0
          %230 = vst [vmem:[#allocation3 + $0x80] sm:$0xff] 0.0
          %231 = vst [vmem:[#allocation3 + $0x88] sm:$0xff] 0.0
          %232 = vst [vmem:[#allocation3 + $0x90] sm:$0xff] 0.0
          %233 = vst [vmem:[#allocation3 + $0x98] sm:$0xff] 0.0
          %234 = vst [vmem:[#allocation3 + $0xa0] sm:$0xff] 0.0
          %235 = vst [vmem:[#allocation3 + $0xa8] sm:$0xff] 0.0
          %236 = vst [vmem:[#allocation3 + $0xb0] sm:$0xff] 0.0
          %237 = vst [vmem:[#allocation3 + $0xb8] sm:$0xff] 0.0
          %238 = vst [vmem:[#allocation3 + $0xc0] sm:$0xff] 0.0
          %239 = vst [vmem:[#allocation3 + $0xc8] sm:$0xff] 0.0
          %240 = vst [vmem:[#allocation3 + $0xd0] sm:$0xff] 0.0
          %241 = vst [vmem:[#allocation3 + $0xd8] sm:$0xff] 0.0
          %242 = vst [vmem:[#allocation3 + $0xe0] sm:$0xff] 0.0
          %243 = vst [vmem:[#allocation3 + $0xe8] sm:$0xff] 0.0
          %244 = vst [vmem:[#allocation3 + $0xf0] sm:$0xff] 0.0
          %245 = vst [vmem:[#allocation3 + $0xf8] sm:$0xff] 0.0
        $region32: #{tpu_custom_call.1} parent=27 // pred_fallthru
          _
        %v246 = vld [vmem:[#allocation2] sm:$0xff]
        %v247 = vld [vmem:[#allocation2 + $0x8] sm:$0xff]
        %v248 = vld [vmem:[#allocation2 + $0x10] sm:$0xff]
        %v249 = vld [vmem:[#allocation2 + $0x18] sm:$0xff]
        %v250 = vld [vmem:[%s194] sm:$0xff]
        %v251 = vld [vmem:[%s194 + $0x38] sm:$0xff]
        %v252 = vld [vmem:[%s194 + $0x70] sm:$0xff]
        %v253 = vld [vmem:[%s194 + $0xa8] sm:$0xff]
        %v254 = vadd.f32 %v246, %v250
        %v255 = vadd.f32 %v247, %v251
        %v256 = vadd.f32 %v248, %v252
        %v257 = vadd.f32 %v249, %v253
        %258 = vst [vmem:[#allocation2] sm:$0xff] %v254
        %259 = vst [vmem:[#allocation2 + $0x8] sm:$0xff] %v255
        %260 = vst [vmem:[#allocation2 + $0x10] sm:$0xff] %v256
        %261 = vst [vmem:[#allocation2 + $0x18] sm:$0xff] %v257
        %v262 = vld [vmem:[#allocation2] sm:$0xff]
        %v263 = vld [vmem:[#allocation2 + $0x8] sm:$0xff]
        %v264 = vld [vmem:[#allocation2 + $0x10] sm:$0xff]
        %v265 = vld [vmem:[#allocation2 + $0x18] sm:$0xff]
        %v266 = vld [vmem:[%s194 + $0x8] sm:$0xff]
        %v267 = vld [vmem:[%s194 + $0x40] sm:$0xff]
        %v268 = vld [vmem:[%s194 + $0x78] sm:$0xff]
        %v269 = vld [vmem:[%s194 + $0xb0] sm:$0xff]
        %v270 = vadd.f32 %v262, %v266
        %v271 = vadd.f32 %v263, %v267
        %v272 = vadd.f32 %v264, %v268
        %v273 = vadd.f32 %v265, %v269
        %274 = vst [vmem:[#allocation2] sm:$0xff] %v270
        %275 = vst [vmem:[#allocation2 + $0x8] sm:$0xff] %v271
        %276 = vst [vmem:[#allocation2 + $0x10] sm:$0xff] %v272
        %277 = vst [vmem:[#allocation2 + $0x18] sm:$0xff] %v273
        %v278 = vld [vmem:[#allocation2] sm:$0xff]
        %v279 = vld [vmem:[#allocation2 + $0x8] sm:$0xff]
        %v280 = vld [vmem:[#allocation2 + $0x10] sm:$0xff]
        %v281 = vld [vmem:[#allocation2 + $0x18] sm:$0xff]
        %v282 = vld [vmem:[%s194 + $0x10] sm:$0xff]
        %v283 = vld [vmem:[%s194 + $0x48] sm:$0xff]
        %v284 = vld [vmem:[%s194 + $0x80] sm:$0xff]
        %v285 = vld [vmem:[%s194 + $0xb8] sm:$0xff]
        %v286 = vadd.f32 %v278, %v282
        %v287 = vadd.f32 %v279, %v283
        %v288 = vadd.f32 %v280, %v284
        %v289 = vadd.f32 %v281, %v285
        %290 = vst [vmem:[#allocation2] sm:$0xff] %v286
        %291 = vst [vmem:[#allocation2 + $0x8] sm:$0xff] %v287
        %292 = vst [vmem:[#allocation2 + $0x10] sm:$0xff] %v288
        %293 = vst [vmem:[#allocation2 + $0x18] sm:$0xff] %v289
        %v294 = vld [vmem:[#allocation2] sm:$0xff]
        %v295 = vld [vmem:[#allocation2 + $0x8] sm:$0xff]
        %v296 = vld [vmem:[#allocation2 + $0x10] sm:$0xff]
        %v297 = vld [vmem:[#allocation2 + $0x18] sm:$0xff]
        %v298 = vld [vmem:[%s194 + $0x18] sm:$0xff]
        %v299 = vld [vmem:[%s194 + $0x50] sm:$0xff]
        %v300 = vld [vmem:[%s194 + $0x88] sm:$0xff]
        %v301 = vld [vmem:[%s194 + $0xc0] sm:$0xff]
        %v302 = vadd.f32 %v294, %v298
        %v303 = vadd.f32 %v295, %v299
        %v304 = vadd.f32 %v296, %v300
        %v305 = vadd.f32 %v297, %v301
        %306 = vst [vmem:[#allocation2] sm:$0xff] %v302
        %307 = vst [vmem:[#allocation2 + $0x8] sm:$0xff] %v303
        %308 = vst [vmem:[#allocation2 + $0x10] sm:$0xff] %v304
        %309 = vst [vmem:[#allocation2 + $0x18] sm:$0xff] %v305
        %v310 = vld [vmem:[#allocation2] sm:$0xff]
        %v311 = vld [vmem:[#allocation2 + $0x8] sm:$0xff]
        %v312 = vld [vmem:[#allocation2 + $0x10] sm:$0xff]
        %v313 = vld [vmem:[#allocation2 + $0x18] sm:$0xff]
        %v314 = vld [vmem:[%s194 + $0x20] sm:$0xff]
        %v315 = vld [vmem:[%s194 + $0x58] sm:$0xff]
        %v316 = vld [vmem:[%s194 + $0x90] sm:$0xff]
        %v317 = vld [vmem:[%s194 + $0xc8] sm:$0xff]
        %v318 = vadd.f32 %v310, %v314
        %v319 = vadd.f32 %v311, %v315
        %v320 = vadd.f32 %v312, %v316
        %v321 = vadd.f32 %v313, %v317
        %322 = vst [vmem:[#allocation2] sm:$0xff] %v318
        %323 = vst [vmem:[#allocation2 + $0x8] sm:$0xff] %v319
        %324 = vst [vmem:[#allocation2 + $0x10] sm:$0xff] %v320
        %325 = vst [vmem:[#allocation2 + $0x18] sm:$0xff] %v321
        %v326 = vld [vmem:[#allocation2] sm:$0xff]
        %v327 = vld [vmem:[#allocation2 + $0x8] sm:$0xff]
        %v328 = vld [vmem:[#allocation2 + $0x10] sm:$0xff]
        %v329 = vld [vmem:[#allocation2 + $0x18] sm:$0xff]
        %v330 = vld [vmem:[%s194 + $0x28] sm:$0xff]
        %v331 = vld [vmem:[%s194 + $0x60] sm:$0xff]
        %v332 = vld [vmem:[%s194 + $0x98] sm:$0xff]
        %v333 = vld [vmem:[%s194 + $0xd0] sm:$0xff]
        %v334 = vadd.f32 %v326, %v330
        %v335 = vadd.f32 %v327, %v331
        %v336 = vadd.f32 %v328, %v332
        %v337 = vadd.f32 %v329, %v333
        %338 = vst [vmem:[#allocation2] sm:$0xff] %v334
        %339 = vst [vmem:[#allocation2 + $0x8] sm:$0xff] %v335
        %340 = vst [vmem:[#allocation2 + $0x10] sm:$0xff] %v336
        %341 = vst [vmem:[#allocation2 + $0x18] sm:$0xff] %v337
        %v342 = vld [vmem:[#allocation2] sm:$0xff]
        %v343 = vld [vmem:[#allocation2 + $0x8] sm:$0xff]
        %v344 = vld [vmem:[#allocation2 + $0x10] sm:$0xff]
        %v345 = vld [vmem:[#allocation2 + $0x18] sm:$0xff]
        %v346 = vld [vmem:[%s194 + $0x30] sm:$0xff]
        %v347 = vld [vmem:[%s194 + $0x68] sm:$0xff]
        %v348 = vld [vmem:[%s194 + $0xa0] sm:$0xff]
        %v349 = vld [vmem:[%s194 + $0xd8] sm:$0xff]
        %v350 = vadd.f32 %v342, %v346
        %v351 = vadd.f32 %v343, %v347
        %v352 = vadd.f32 %v344, %v348
        %v353 = vadd.f32 %v345, %v349
        %vm354 = vcmask 130048
        %355 = vst.msk [vmem:[#allocation2] sm:$0xff] %vm354, %v350
        %356 = vst.msk [vmem:[#allocation2 + $0x8] sm:$0xff] %vm354, %v351
        %357 = vst.msk [vmem:[#allocation2 + $0x10] sm:$0xff] %vm354, %v352
        %358 = vst.msk [vmem:[#allocation2 + $0x18] sm:$0xff] %vm354, %v353
        %v359 = vld [vmem:[#allocation3] sm:$0xff]
        %v360 = vld [vmem:[#allocation3 + $0x8] sm:$0xff]
        %v361 = vld [vmem:[#allocation3 + $0x10] sm:$0xff]
        %v362 = vld [vmem:[#allocation3 + $0x18] sm:$0xff]
        %v363 = vld [vmem:[#allocation3 + $0x20] sm:$0xff]
        %v364 = vld [vmem:[#allocation3 + $0x28] sm:$0xff]
        %v365 = vld [vmem:[#allocation3 + $0x30] sm:$0xff]
        %v366 = vld [vmem:[#allocation3 + $0x38] sm:$0xff]
        %v367 = vld [vmem:[#allocation3 + $0x40] sm:$0xff]
        %v368 = vld [vmem:[#allocation3 + $0x48] sm:$0xff]
        %v369 = vld [vmem:[#allocation3 + $0x50] sm:$0xff]
        %v370 = vld [vmem:[#allocation3 + $0x58] sm:$0xff]
        %v371 = vld [vmem:[#allocation3 + $0x60] sm:$0xff]
        %v372 = vld [vmem:[#allocation3 + $0x68] sm:$0xff]
        %v373 = vld [vmem:[#allocation3 + $0x70] sm:$0xff]
        %v374 = vld [vmem:[#allocation3 + $0x78] sm:$0xff]
        %v375 = vld [vmem:[#allocation3 + $0x80] sm:$0xff]
        %v376 = vld [vmem:[#allocation3 + $0x88] sm:$0xff]
        %v377 = vld [vmem:[#allocation3 + $0x90] sm:$0xff]
        %v378 = vld [vmem:[#allocation3 + $0x98] sm:$0xff]
        %v379 = vld [vmem:[#allocation3 + $0xa0] sm:$0xff]
        %v380 = vld [vmem:[#allocation3 + $0xa8] sm:$0xff]
        %v381 = vld [vmem:[#allocation3 + $0xb0] sm:$0xff]
        %v382 = vld [vmem:[#allocation3 + $0xb8] sm:$0xff]
        %v383 = vld [vmem:[#allocation3 + $0xc0] sm:$0xff]
        %v384 = vld [vmem:[#allocation3 + $0xc8] sm:$0xff]
        %v385 = vld [vmem:[#allocation3 + $0xd0] sm:$0xff]
        %v386 = vld [vmem:[#allocation3 + $0xd8] sm:$0xff]
        %v387 = vld [vmem:[#allocation3 + $0xe0] sm:$0xff]
        %v388 = vld [vmem:[#allocation3 + $0xe8] sm:$0xff]
        %v389 = vld [vmem:[#allocation3 + $0xf0] sm:$0xff]
        %v390 = vld [vmem:[#allocation3 + $0xf8] sm:$0xff]
        %v391 = vld [vmem:[%s204] sm:$0xff]
        %v392 = vld [vmem:[%s204 + $0x10] sm:$0xff]
        %v393 = vld [vmem:[%s204 + $0x20] sm:$0xff]
        %v394 = vld [vmem:[%s204 + $0x30] sm:$0xff]
        %v395 = vld [vmem:[%s204 + $0x40] sm:$0xff]
        %v396 = vld [vmem:[%s204 + $0x50] sm:$0xff]
        %v397 = vld [vmem:[%s204 + $0x60] sm:$0xff]
        %v398 = vld [vmem:[%s204 + $0x70] sm:$0xff]
        %v399 = vld [vmem:[%s204 + $0x80] sm:$0xff]
        %v400 = vld [vmem:[%s204 + $0x90] sm:$0xff]
        %v401 = vld [vmem:[%s204 + $0xa0] sm:$0xff]
        %v402 = vld [vmem:[%s204 + $0xb0] sm:$0xff]
        %v403 = vld [vmem:[%s204 + $0xc0] sm:$0xff]
        %v404 = vld [vmem:[%s204 + $0xd0] sm:$0xff]
        %v405 = vld [vmem:[%s204 + $0xe0] sm:$0xff]
        %v406 = vld [vmem:[%s204 + $0xf0] sm:$0xff]
        %v407 = vld [vmem:[%s204 + $0x100] sm:$0xff]
        %v408 = vld [vmem:[%s204 + $0x110] sm:$0xff]
        %v409 = vld [vmem:[%s204 + $0x120] sm:$0xff]
        %v410 = vld [vmem:[%s204 + $0x130] sm:$0xff]
        %v411 = vld [vmem:[%s204 + $0x140] sm:$0xff]
        %v412 = vld [vmem:[%s204 + $0x150] sm:$0xff]
        %v413 = vld [vmem:[%s204 + $0x160] sm:$0xff]
        %v414 = vld [vmem:[%s204 + $0x170] sm:$0xff]
        %v415 = vld [vmem:[%s204 + $0x180] sm:$0xff]
        %v416 = vld [vmem:[%s204 + $0x190] sm:$0xff]
        %v417 = vld [vmem:[%s204 + $0x1a0] sm:$0xff]
        %v418 = vld [vmem:[%s204 + $0x1b0] sm:$0xff]
        %v419 = vld [vmem:[%s204 + $0x1c0] sm:$0xff]
        %v420 = vld [vmem:[%s204 + $0x1d0] sm:$0xff]
        %v421 = vld [vmem:[%s204 + $0x1e0] sm:$0xff]
        %v422 = vld [vmem:[%s204 + $0x1f0] sm:$0xff]
        %v423 = vadd.f32 %v359, %v391
        %v424 = vadd.f32 %v360, %v392
        %v425 = vadd.f32 %v361, %v393
        %v426 = vadd.f32 %v362, %v394
        %v427 = vadd.f32 %v363, %v395
        %v428 = vadd.f32 %v364, %v396
        %v429 = vadd.f32 %v365, %v397
        %v430 = vadd.f32 %v366, %v398
        %v431 = vadd.f32 %v367, %v399
        %v432 = vadd.f32 %v368, %v400
        %v433 = vadd.f32 %v369, %v401
        %v434 = vadd.f32 %v370, %v402
        %v435 = vadd.f32 %v371, %v403
        %v436 = vadd.f32 %v372, %v404
        %v437 = vadd.f32 %v373, %v405
        %v438 = vadd.f32 %v374, %v406
        %v439 = vadd.f32 %v375, %v407
        %v440 = vadd.f32 %v376, %v408
        %v441 = vadd.f32 %v377, %v409
        %v442 = vadd.f32 %v378, %v410
        %v443 = vadd.f32 %v379, %v411
        %v444 = vadd.f32 %v380, %v412
        %v445 = vadd.f32 %v381, %v413
        %v446 = vadd.f32 %v382, %v414
        %v447 = vadd.f32 %v383, %v415
        %v448 = vadd.f32 %v384, %v416
        %v449 = vadd.f32 %v385, %v417
        %v450 = vadd.f32 %v386, %v418
        %v451 = vadd.f32 %v387, %v419
        %v452 = vadd.f32 %v388, %v420
        %v453 = vadd.f32 %v389, %v421
        %v454 = vadd.f32 %v390, %v422
        %455 = vst [vmem:[#allocation3] sm:$0xff] %v423
        %456 = vst [vmem:[#allocation3 + $0x8] sm:$0xff] %v424
        %457 = vst [vmem:[#allocation3 + $0x10] sm:$0xff] %v425
        %458 = vst [vmem:[#allocation3 + $0x18] sm:$0xff] %v426
        %459 = vst [vmem:[#allocation3 + $0x20] sm:$0xff] %v427
        %460 = vst [vmem:[#allocation3 + $0x28] sm:$0xff] %v428
        %461 = vst [vmem:[#allocation3 + $0x30] sm:$0xff] %v429
        %462 = vst [vmem:[#allocation3 + $0x38] sm:$0xff] %v430
        %463 = vst [vmem:[#allocation3 + $0x40] sm:$0xff] %v431
        %464 = vst [vmem:[#allocation3 + $0x48] sm:$0xff] %v432
        %465 = vst [vmem:[#allocation3 + $0x50] sm:$0xff] %v433
        %466 = vst [vmem:[#allocation3 + $0x58] sm:$0xff] %v434
        %467 = vst [vmem:[#allocation3 + $0x60] sm:$0xff] %v435
        %468 = vst [vmem:[#allocation3 + $0x68] sm:$0xff] %v436
        %469 = vst [vmem:[#allocation3 + $0x70] sm:$0xff] %v437
        %470 = vst [vmem:[#allocation3 + $0x78] sm:$0xff] %v438
        %471 = vst [vmem:[#allocation3 + $0x80] sm:$0xff] %v439
        %472 = vst [vmem:[#allocation3 + $0x88] sm:$0xff] %v440
        %473 = vst [vmem:[#allocation3 + $0x90] sm:$0xff] %v441
        %474 = vst [vmem:[#allocation3 + $0x98] sm:$0xff] %v442
        %475 = vst [vmem:[#allocation3 + $0xa0] sm:$0xff] %v443
        %476 = vst [vmem:[#allocation3 + $0xa8] sm:$0xff] %v444
        %477 = vst [vmem:[#allocation3 + $0xb0] sm:$0xff] %v445
        %478 = vst [vmem:[#allocation3 + $0xb8] sm:$0xff] %v446
        %479 = vst [vmem:[#allocation3 + $0xc0] sm:$0xff] %v447
        %480 = vst [vmem:[#allocation3 + $0xc8] sm:$0xff] %v448
        %481 = vst [vmem:[#allocation3 + $0xd0] sm:$0xff] %v449
        %482 = vst [vmem:[#allocation3 + $0xd8] sm:$0xff] %v450
        %483 = vst [vmem:[#allocation3 + $0xe0] sm:$0xff] %v451
        %484 = vst [vmem:[#allocation3 + $0xe8] sm:$0xff] %v452
        %485 = vst [vmem:[#allocation3 + $0xf0] sm:$0xff] %v453
        %486 = vst [vmem:[#allocation3 + $0xf8] sm:$0xff] %v454
        %v487 = vld [vmem:[#allocation3] sm:$0xff]
        %v488 = vld [vmem:[#allocation3 + $0x8] sm:$0xff]
        %v489 = vld [vmem:[#allocation3 + $0x10] sm:$0xff]
        %v490 = vld [vmem:[#allocation3 + $0x18] sm:$0xff]
        %v491 = vld [vmem:[#allocation3 + $0x20] sm:$0xff]
        %v492 = vld [vmem:[#allocation3 + $0x28] sm:$0xff]
        %v493 = vld [vmem:[#allocation3 + $0x30] sm:$0xff]
        %v494 = vld [vmem:[#allocation3 + $0x38] sm:$0xff]
        %v495 = vld [vmem:[#allocation3 + $0x40] sm:$0xff]
        %v496 = vld [vmem:[#allocation3 + $0x48] sm:$0xff]
        %v497 = vld [vmem:[#allocation3 + $0x50] sm:$0xff]
        %v498 = vld [vmem:[#allocation3 + $0x58] sm:$0xff]
        %v499 = vld [vmem:[#allocation3 + $0x60] sm:$0xff]
        %v500 = vld [vmem:[#allocation3 + $0x68] sm:$0xff]
        %v501 = vld [vmem:[#allocation3 + $0x70] sm:$0xff]
        %v502 = vld [vmem:[#allocation3 + $0x78] sm:$0xff]
        %v503 = vld [vmem:[#allocation3 + $0x80] sm:$0xff]
        %v504 = vld [vmem:[#allocation3 + $0x88] sm:$0xff]
        %v505 = vld [vmem:[#allocation3 + $0x90] sm:$0xff]
        %v506 = vld [vmem:[#allocation3 + $0x98] sm:$0xff]
        %v507 = vld [vmem:[#allocation3 + $0xa0] sm:$0xff]
        %v508 = vld [vmem:[#allocation3 + $0xa8] sm:$0xff]
        %v509 = vld [vmem:[#allocation3 + $0xb0] sm:$0xff]
        %v510 = vld [vmem:[#allocation3 + $0xb8] sm:$0xff]
        %v511 = vld [vmem:[#allocation3 + $0xc0] sm:$0xff]
        %v512 = vld [vmem:[#allocation3 + $0xc8] sm:$0xff]
        %v513 = vld [vmem:[#allocation3 + $0xd0] sm:$0xff]
        %v514 = vld [vmem:[#allocation3 + $0xd8] sm:$0xff]
        %v515 = vld [vmem:[#allocation3 + $0xe0] sm:$0xff]
        %v516 = vld [vmem:[#allocation3 + $0xe8] sm:$0xff]
        %v517 = vld [vmem:[#allocation3 + $0xf0] sm:$0xff]
        %v518 = vld [vmem:[#allocation3 + $0xf8] sm:$0xff]
        %v519 = vld [vmem:[%s204 + $0x8] sm:$0xff]
        %v520 = vld [vmem:[%s204 + $0x18] sm:$0xff]
        %v521 = vld [vmem:[%s204 + $0x28] sm:$0xff]
        %v522 = vld [vmem:[%s204 + $0x38] sm:$0xff]
        %v523 = vld [vmem:[%s204 + $0x48] sm:$0xff]
        %v524 = vld [vmem:[%s204 + $0x58] sm:$0xff]
        %v525 = vld [vmem:[%s204 + $0x68] sm:$0xff]
        %v526 = vld [vmem:[%s204 + $0x78] sm:$0xff]
        %v527 = vld [vmem:[%s204 + $0x88] sm:$0xff]
        %v528 = vld [vmem:[%s204 + $0x98] sm:$0xff]
        %v529 = vld [vmem:[%s204 + $0xa8] sm:$0xff]
        %v530 = vld [vmem:[%s204 + $0xb8] sm:$0xff]
        %v531 = vld [vmem:[%s204 + $0xc8] sm:$0xff]
        %v532 = vld [vmem:[%s204 + $0xd8] sm:$0xff]
        %v533 = vld [vmem:[%s204 + $0xe8] sm:$0xff]
        %v534 = vld [vmem:[%s204 + $0xf8] sm:$0xff]
        %v535 = vld [vmem:[%s204 + $0x108] sm:$0xff]
        %v536 = vld [vmem:[%s204 + $0x118] sm:$0xff]
        %v537 = vld [vmem:[%s204 + $0x128] sm:$0xff]
        %v538 = vld [vmem:[%s204 + $0x138] sm:$0xff]
        %v539 = vld [vmem:[%s204 + $0x148] sm:$0xff]
        %v540 = vld [vmem:[%s204 + $0x158] sm:$0xff]
        %v541 = vld [vmem:[%s204 + $0x168] sm:$0xff]
        %v542 = vld [vmem:[%s204 + $0x178] sm:$0xff]
        %v543 = vld [vmem:[%s204 + $0x188] sm:$0xff]
        %v544 = vld [vmem:[%s204 + $0x198] sm:$0xff]
        %v545 = vld [vmem:[%s204 + $0x1a8] sm:$0xff]
        %v546 = vld [vmem:[%s204 + $0x1b8] sm:$0xff]
        %v547 = vld [vmem:[%s204 + $0x1c8] sm:$0xff]
        %v548 = vld [vmem:[%s204 + $0x1d8] sm:$0xff]
        %v549 = vld [vmem:[%s204 + $0x1e8] sm:$0xff]
        %v550 = vld [vmem:[%s204 + $0x1f8] sm:$0xff]
        %v551 = vadd.f32 %v487, %v519
        %v552 = vadd.f32 %v488, %v520
        %v553 = vadd.f32 %v489, %v521
        %v554 = vadd.f32 %v490, %v522
        %v555 = vadd.f32 %v491, %v523
        %v556 = vadd.f32 %v492, %v524
        %v557 = vadd.f32 %v493, %v525
        %v558 = vadd.f32 %v494, %v526
        %v559 = vadd.f32 %v495, %v527
        %v560 = vadd.f32 %v496, %v528
        %v561 = vadd.f32 %v497, %v529
        %v562 = vadd.f32 %v498, %v530
        %v563 = vadd.f32 %v499, %v531
        %v564 = vadd.f32 %v500, %v532
        %v565 = vadd.f32 %v501, %v533
        %v566 = vadd.f32 %v502, %v534
        %v567 = vadd.f32 %v503, %v535
        %v568 = vadd.f32 %v504, %v536
        %v569 = vadd.f32 %v505, %v537
        %v570 = vadd.f32 %v506, %v538
        %v571 = vadd.f32 %v507, %v539
        %v572 = vadd.f32 %v508, %v540
        %v573 = vadd.f32 %v509, %v541
        %v574 = vadd.f32 %v510, %v542
        %v575 = vadd.f32 %v511, %v543
        %v576 = vadd.f32 %v512, %v544
        %v577 = vadd.f32 %v513, %v545
        %v578 = vadd.f32 %v514, %v546
        %v579 = vadd.f32 %v515, %v547
        %v580 = vadd.f32 %v516, %v548
        %v581 = vadd.f32 %v517, %v549
        %v582 = vadd.f32 %v518, %v550
        %vm583 = vcmask 556032
        %584 = vst.msk [vmem:[#allocation3] sm:$0xff] %vm583, %v551
        %585 = vst.msk [vmem:[#allocation3 + $0x8] sm:$0xff] %vm583, %v552
        %586 = vst.msk [vmem:[#allocation3 + $0x10] sm:$0xff] %vm583, %v553
        %587 = vst.msk [vmem:[#allocation3 + $0x18] sm:$0xff] %vm583, %v554
        %588 = vst.msk [vmem:[#allocation3 + $0x20] sm:$0xff] %vm583, %v555
        %589 = vst.msk [vmem:[#allocation3 + $0x28] sm:$0xff] %vm583, %v556
        %590 = vst.msk [vmem:[#allocation3 + $0x30] sm:$0xff] %vm583, %v557
        %591 = vst.msk [vmem:[#allocation3 + $0x38] sm:$0xff] %vm583, %v558
        %592 = vst.msk [vmem:[#allocation3 + $0x40] sm:$0xff] %vm583, %v559
        %593 = vst.msk [vmem:[#allocation3 + $0x48] sm:$0xff] %vm583, %v560
        %594 = vst.msk [vmem:[#allocation3 + $0x50] sm:$0xff] %vm583, %v561
        %595 = vst.msk [vmem:[#allocation3 + $0x58] sm:$0xff] %vm583, %v562
        %596 = vst.msk [vmem:[#allocation3 + $0x60] sm:$0xff] %vm583, %v563
        %597 = vst.msk [vmem:[#allocation3 + $0x68] sm:$0xff] %vm583, %v564
        %598 = vst.msk [vmem:[#allocation3 + $0x70] sm:$0xff] %vm583, %v565
        %599 = vst.msk [vmem:[#allocation3 + $0x78] sm:$0xff] %vm583, %v566
        %600 = vst.msk [vmem:[#allocation3 + $0x80] sm:$0xff] %vm583, %v567
        %601 = vst.msk [vmem:[#allocation3 + $0x88] sm:$0xff] %vm583, %v568
        %602 = vst.msk [vmem:[#allocation3 + $0x90] sm:$0xff] %vm583, %v569
        %603 = vst.msk [vmem:[#allocation3 + $0x98] sm:$0xff] %vm583, %v570
        %604 = vst.msk [vmem:[#allocation3 + $0xa0] sm:$0xff] %vm583, %v571
        %605 = vst.msk [vmem:[#allocation3 + $0xa8] sm:$0xff] %vm583, %v572
        %606 = vst.msk [vmem:[#allocation3 + $0xb0] sm:$0xff] %vm583, %v573
        %607 = vst.msk [vmem:[#allocation3 + $0xb8] sm:$0xff] %vm583, %v574
        %608 = vst.msk [vmem:[#allocation3 + $0xc0] sm:$0xff] %vm583, %v575
        %609 = vst.msk [vmem:[#allocation3 + $0xc8] sm:$0xff] %vm583, %v576
        %610 = vst.msk [vmem:[#allocation3 + $0xd0] sm:$0xff] %vm583, %v577
        %611 = vst.msk [vmem:[#allocation3 + $0xd8] sm:$0xff] %vm583, %v578
        %612 = vst.msk [vmem:[#allocation3 + $0xe0] sm:$0xff] %vm583, %v579
        %613 = vst.msk [vmem:[#allocation3 + $0xe8] sm:$0xff] %vm583, %v580
        %614 = vst.msk [vmem:[#allocation3 + $0xf0] sm:$0xff] %vm583, %v581
        %615 = vst.msk [vmem:[#allocation3 + $0xf8] sm:$0xff] %vm583, %v582
        // Predicated region
        $region33: #{tpu_custom_call.1} parent=27 // pred_check
          %p616 = pneg %p206
        $region34: #{tpu_custom_call.1} parent=27 // pred_check_branch
          %618 = sbr.rel (%p616) target = $region36
        $region35: #{tpu_custom_call.1} parent=27 // pred_region
          %v619 = vld [vmem:[#allocation2] sm:$0xff]
          %v620 = vld [vmem:[#allocation2 + $0x8] sm:$0xff]
          %v621 = vld [vmem:[#allocation2 + $0x10] sm:$0xff]
          %v622 = vld [vmem:[#allocation2 + $0x18] sm:$0xff]
          %623 = vadd.xlane.f32.xlu0 %v619
          %v624 = vpop.xlane.xlu0 %623
          %625 = vadd.xlane.f32.xlu0 %v620
          %v626 = vpop.xlane.xlu0 %625
          %627 = vadd.xlane.f32.xlu0 %v621
          %v628 = vpop.xlane.xlu0 %627
          %629 = vadd.xlane.f32.xlu0 %v622
          %v630 = vpop.xlane.xlu0 %629
          %v631 = vmul.f32 %v624, 0.0012755102
          %v632 = vmul.f32 %v626, 0.0012755102
          %v633 = vmul.f32 %v628, 0.0012755102
          %v634 = vmul.f32 %v630, 0.0012755102
          %v635 = vld [vmem:[#allocation3] sm:$0xff]
          %v636 = vld [vmem:[#allocation3 + $0x8] sm:$0xff]
          %v637 = vld [vmem:[#allocation3 + $0x10] sm:$0xff]
          %v638 = vld [vmem:[#allocation3 + $0x18] sm:$0xff]
          %v639 = vld [vmem:[#allocation3 + $0x20] sm:$0xff]
          %v640 = vld [vmem:[#allocation3 + $0x28] sm:$0xff]
          %v641 = vld [vmem:[#allocation3 + $0x30] sm:$0xff]
          %v642 = vld [vmem:[#allocation3 + $0x38] sm:$0xff]
          %v643 = vld [vmem:[#allocation3 + $0x40] sm:$0xff]
          %v644 = vld [vmem:[#allocation3 + $0x48] sm:$0xff]
          %v645 = vld [vmem:[#allocation3 + $0x50] sm:$0xff]
          %v646 = vld [vmem:[#allocation3 + $0x58] sm:$0xff]
          %v647 = vld [vmem:[#allocation3 + $0x60] sm:$0xff]
          %v648 = vld [vmem:[#allocation3 + $0x68] sm:$0xff]
          %v649 = vld [vmem:[#allocation3 + $0x70] sm:$0xff]
          %v650 = vld [vmem:[#allocation3 + $0x78] sm:$0xff]
          %v651 = vld [vmem:[#allocation3 + $0x80] sm:$0xff]
          %v652 = vld [vmem:[#allocation3 + $0x88] sm:$0xff]
          %v653 = vld [vmem:[#allocation3 + $0x90] sm:$0xff]
          %v654 = vld [vmem:[#allocation3 + $0x98] sm:$0xff]
          %v655 = vld [vmem:[#allocation3 + $0xa0] sm:$0xff]
          %v656 = vld [vmem:[#allocation3 + $0xa8] sm:$0xff]
          %v657 = vld [vmem:[#allocation3 + $0xb0] sm:$0xff]
          %v658 = vld [vmem:[#allocation3 + $0xb8] sm:$0xff]
          %v659 = vld [vmem:[#allocation3 + $0xc0] sm:$0xff]
          %v660 = vld [vmem:[#allocation3 + $0xc8] sm:$0xff]
          %v661 = vld [vmem:[#allocation3 + $0xd0] sm:$0xff]
          %v662 = vld [vmem:[#allocation3 + $0xd8] sm:$0xff]
          %v663 = vld [vmem:[#allocation3 + $0xe0] sm:$0xff]
          %v664 = vld [vmem:[#allocation3 + $0xe8] sm:$0xff]
          %v665 = vld [vmem:[#allocation3 + $0xf0] sm:$0xff]
          %v666 = vld [vmem:[#allocation3 + $0xf8] sm:$0xff]
          %667 = vadd.xlane.f32.xlu0 %v635
          %v668 = vpop.xlane.xlu0 %667
          %669 = vadd.xlane.f32.xlu0 %v636
          %v670 = vpop.xlane.xlu0 %669
          %671 = vadd.xlane.f32.xlu0 %v637
          %v672 = vpop.xlane.xlu0 %671
          %673 = vadd.xlane.f32.xlu0 %v638
          %v674 = vpop.xlane.xlu0 %673
          %675 = vadd.xlane.f32.xlu0 %v639
          %v676 = vpop.xlane.xlu0 %675
          %677 = vadd.xlane.f32.xlu0 %v640
          %v678 = vpop.xlane.xlu0 %677
          %679 = vadd.xlane.f32.xlu0 %v641
          %v680 = vpop.xlane.xlu0 %679
          %681 = vadd.xlane.f32.xlu0 %v642
          %v682 = vpop.xlane.xlu0 %681
          %683 = vadd.xlane.f32.xlu0 %v643
          %v684 = vpop.xlane.xlu0 %683
          %685 = vadd.xlane.f32.xlu0 %v644
          %v686 = vpop.xlane.xlu0 %685
          %687 = vadd.xlane.f32.xlu0 %v645
          %v688 = vpop.xlane.xlu0 %687
          %689 = vadd.xlane.f32.xlu0 %v646
          %v690 = vpop.xlane.xlu0 %689
          %691 = vadd.xlane.f32.xlu0 %v647
          %v692 = vpop.xlane.xlu0 %691
          %693 = vadd.xlane.f32.xlu0 %v648
          %v694 = vpop.xlane.xlu0 %693
          %695 = vadd.xlane.f32.xlu0 %v649
          %v696 = vpop.xlane.xlu0 %695
          %697 = vadd.xlane.f32.xlu0 %v650
          %v698 = vpop.xlane.xlu0 %697
          %699 = vadd.xlane.f32.xlu0 %v651
          %v700 = vpop.xlane.xlu0 %699
          %701 = vadd.xlane.f32.xlu0 %v652
          %v702 = vpop.xlane.xlu0 %701
          %703 = vadd.xlane.f32.xlu0 %v653
          %v704 = vpop.xlane.xlu0 %703
          %705 = vadd.xlane.f32.xlu0 %v654
          %v706 = vpop.xlane.xlu0 %705
          %707 = vadd.xlane.f32.xlu0 %v655
          %v708 = vpop.xlane.xlu0 %707
          %709 = vadd.xlane.f32.xlu0 %v656
          %v710 = vpop.xlane.xlu0 %709
          %711 = vadd.xlane.f32.xlu0 %v657
          %v712 = vpop.xlane.xlu0 %711
          %713 = vadd.xlane.f32.xlu0 %v658
          %v714 = vpop.xlane.xlu0 %713
          %715 = vadd.xlane.f32.xlu0 %v659
          %v716 = vpop.xlane.xlu0 %715
          %717 = vadd.xlane.f32.xlu0 %v660
          %v718 = vpop.xlane.xlu0 %717
          %719 = vadd.xlane.f32.xlu0 %v661
          %v720 = vpop.xlane.xlu0 %719
          %721 = vadd.xlane.f32.xlu0 %v662
          %v722 = vpop.xlane.xlu0 %721
          %723 = vadd.xlane.f32.xlu0 %v663
          %v724 = vpop.xlane.xlu0 %723
          %725 = vadd.xlane.f32.xlu0 %v664
          %v726 = vpop.xlane.xlu0 %725
          %727 = vadd.xlane.f32.xlu0 %v665
          %v728 = vpop.xlane.xlu0 %727
          %729 = vadd.xlane.f32.xlu0 %v666
          %v730 = vpop.xlane.xlu0 %729
          %v731 = vmul.f32 %v668, 0.0051020407
          %v732 = vmul.f32 %v670, 0.0051020407
          %v733 = vmul.f32 %v672, 0.0051020407
          %v734 = vmul.f32 %v674, 0.0051020407
          %v735 = vmul.f32 %v676, 0.0051020407
          %v736 = vmul.f32 %v678, 0.0051020407
          %v737 = vmul.f32 %v680, 0.0051020407
          %v738 = vmul.f32 %v682, 0.0051020407
          %v739 = vmul.f32 %v684, 0.0051020407
          %v740 = vmul.f32 %v686, 0.0051020407
          %v741 = vmul.f32 %v688, 0.0051020407
          %v742 = vmul.f32 %v690, 0.0051020407
          %v743 = vmul.f32 %v692, 0.0051020407
          %v744 = vmul.f32 %v694, 0.0051020407
          %v745 = vmul.f32 %v696, 0.0051020407
          %v746 = vmul.f32 %v698, 0.0051020407
          %v747 = vmul.f32 %v700, 0.0051020407
          %v748 = vmul.f32 %v702, 0.0051020407
          %v749 = vmul.f32 %v704, 0.0051020407
          %v750 = vmul.f32 %v706, 0.0051020407
          %v751 = vmul.f32 %v708, 0.0051020407
          %v752 = vmul.f32 %v710, 0.0051020407
          %v753 = vmul.f32 %v712, 0.0051020407
          %v754 = vmul.f32 %v714, 0.0051020407
          %v755 = vmul.f32 %v716, 0.0051020407
          %v756 = vmul.f32 %v718, 0.0051020407
          %v757 = vmul.f32 %v720, 0.0051020407
          %v758 = vmul.f32 %v722, 0.0051020407
          %v759 = vmul.f32 %v724, 0.0051020407
          %v760 = vmul.f32 %v726, 0.0051020407
          %v761 = vmul.f32 %v728, 0.0051020407
          %v762 = vmul.f32 %v730, 0.0051020407
          %v767 = vlaneseq
          %v768 = vshrl.u32 %v767, 7
          %v769 = vsub.s32 0, %v768
          %v770 = vrot.slane %v631, %v769
          %v771 = vlaneseq
          %v772 = vshrl.u32 %v771, 7
          %v773 = vsub.s32 1, %v772
          %v774 = vrot.slane %v631, %v773
          %v775 = vlaneseq
          %v776 = vshrl.u32 %v775, 7
          %v777 = vsub.s32 2, %v776
          %v778 = vrot.slane %v631, %v777
          %v779 = vlaneseq
          %v780 = vshrl.u32 %v779, 7
          %v781 = vsub.s32 3, %v780
          %v782 = vrot.slane %v631, %v781
          %v783 = vlaneseq
          %v784 = vshrl.u32 %v783, 7
          %v785 = vsub.s32 4, %v784
          %v786 = vrot.slane %v631, %v785
          %v787 = vlaneseq
          %v788 = vshrl.u32 %v787, 7
          %v789 = vsub.s32 5, %v788
          %v790 = vrot.slane %v631, %v789
          %v791 = vlaneseq
          %v792 = vshrl.u32 %v791, 7
          %v793 = vsub.s32 6, %v792
          %v794 = vrot.slane %v631, %v793
          %v795 = vlaneseq
          %v796 = vshrl.u32 %v795, 7
          %v797 = vsub.s32 7, %v796
          %v798 = vrot.slane %v631, %v797
          %v799 = vlaneseq
          %v800 = vshrl.u32 %v799, 7
          %v801 = vsub.s32 0, %v800
          %v802 = vrot.slane %v632, %v801
          %v803 = vlaneseq
          %v804 = vshrl.u32 %v803, 7
          %v805 = vsub.s32 1, %v804
          %v806 = vrot.slane %v632, %v805
          %v807 = vlaneseq
          %v808 = vshrl.u32 %v807, 7
          %v809 = vsub.s32 2, %v808
          %v810 = vrot.slane %v632, %v809
          %v811 = vlaneseq
          %v812 = vshrl.u32 %v811, 7
          %v813 = vsub.s32 3, %v812
          %v814 = vrot.slane %v632, %v813
          %v815 = vlaneseq
          %v816 = vshrl.u32 %v815, 7
          %v817 = vsub.s32 4, %v816
          %v818 = vrot.slane %v632, %v817
          %v819 = vlaneseq
          %v820 = vshrl.u32 %v819, 7
          %v821 = vsub.s32 5, %v820
          %v822 = vrot.slane %v632, %v821
          %v823 = vlaneseq
          %v824 = vshrl.u32 %v823, 7
          %v825 = vsub.s32 6, %v824
          %v826 = vrot.slane %v632, %v825
          %v827 = vlaneseq
          %v828 = vshrl.u32 %v827, 7
          %v829 = vsub.s32 7, %v828
          %v830 = vrot.slane %v632, %v829
          %v831 = vlaneseq
          %v832 = vshrl.u32 %v831, 7
          %v833 = vsub.s32 0, %v832
          %v834 = vrot.slane %v633, %v833
          %v835 = vlaneseq
          %v836 = vshrl.u32 %v835, 7
          %v837 = vsub.s32 1, %v836
          %v838 = vrot.slane %v633, %v837
          %v839 = vlaneseq
          %v840 = vshrl.u32 %v839, 7
          %v841 = vsub.s32 2, %v840
          %v842 = vrot.slane %v633, %v841
          %v843 = vlaneseq
          %v844 = vshrl.u32 %v843, 7
          %v845 = vsub.s32 3, %v844
          %v846 = vrot.slane %v633, %v845
          %v847 = vlaneseq
          %v848 = vshrl.u32 %v847, 7
          %v849 = vsub.s32 4, %v848
          %v850 = vrot.slane %v633, %v849
          %v851 = vlaneseq
          %v852 = vshrl.u32 %v851, 7
          %v853 = vsub.s32 5, %v852
          %v854 = vrot.slane %v633, %v853
          %v855 = vlaneseq
          %v856 = vshrl.u32 %v855, 7
          %v857 = vsub.s32 6, %v856
          %v858 = vrot.slane %v633, %v857
          %v859 = vlaneseq
          %v860 = vshrl.u32 %v859, 7
          %v861 = vsub.s32 7, %v860
          %v862 = vrot.slane %v633, %v861
          %v863 = vlaneseq
          %v864 = vshrl.u32 %v863, 7
          %v865 = vsub.s32 0, %v864
          %v866 = vrot.slane %v634, %v865
          %v867 = vlaneseq
          %v868 = vshrl.u32 %v867, 7
          %v869 = vsub.s32 1, %v868
          %v870 = vrot.slane %v634, %v869
          %v871 = vlaneseq
          %v872 = vshrl.u32 %v871, 7
          %v873 = vsub.s32 2, %v872
          %v874 = vrot.slane %v634, %v873
          %v875 = vlaneseq
          %v876 = vshrl.u32 %v875, 7
          %v877 = vsub.s32 3, %v876
          %v878 = vrot.slane %v634, %v877
          %v879 = vlaneseq
          %v880 = vshrl.u32 %v879, 7
          %v881 = vsub.s32 4, %v880
          %v882 = vrot.slane %v634, %v881
          %v883 = vlaneseq
          %v884 = vshrl.u32 %v883, 7
          %v885 = vsub.s32 5, %v884
          %v886 = vrot.slane %v634, %v885
          %v887 = vlaneseq
          %v888 = vshrl.u32 %v887, 7
          %v889 = vsub.s32 6, %v888
          %v890 = vrot.slane %v634, %v889
          %v891 = vlaneseq
          %v892 = vshrl.u32 %v891, 7
          %v893 = vsub.s32 7, %v892
          %v894 = vrot.slane %v634, %v893
          %v895 = vcombine.low %v770, %v774
          %v896 = vcombine.low %v778, %v782
          %v897 = vcombine.low %v786, %v790
          %v898 = vcombine.low %v794, %v798
          %v900 = vunpack.c.l.s4 1966171168
          %v901 = vunpack.c.0.s8 %v900
          %v902 = vlaneseq
          %v903 = vshrl.u32 %v902, 7
          %v904 = vsub.s32 %v901, %v903
          %v905 = vrot.slane %v895, %v904
          %v907 = vunpack.c.l.s4 1966171168
          %v908 = vunpack.c.0.s8 %v907
          %v909 = vlaneseq
          %v910 = vshrl.u32 %v909, 7
          %v911 = vsub.s32 %v908, %v910
          %v912 = vrot.slane %v896, %v911
          %v914 = vunpack.c.l.s4 1966171168
          %v915 = vunpack.c.0.s8 %v914
          %v916 = vlaneseq
          %v917 = vshrl.u32 %v916, 7
          %v918 = vsub.s32 %v915, %v917
          %v919 = vrot.slane %v897, %v918
          %v921 = vunpack.c.l.s4 1966171168
          %v922 = vunpack.c.0.s8 %v921
          %v923 = vlaneseq
          %v924 = vshrl.u32 %v923, 7
          %v925 = vsub.s32 %v922, %v924
          %v926 = vrot.slane %v898, %v925
          %v927 = vcombine.low %v905, %v912
          %v928 = vcombine.low %v919, %v926
          %v930 = vunpack.c.l.s4 1966171168
          %v931 = vunpack.c.0.s8 %v930
          %v932 = vlaneseq
          %v933 = vshrl.u32 %v932, 7
          %v934 = vsub.s32 %v931, %v933
          %v935 = vrot.slane %v927, %v934
          %v937 = vunpack.c.l.s4 1966171168
          %v938 = vunpack.c.0.s8 %v937
          %v939 = vlaneseq
          %v940 = vshrl.u32 %v939, 7
          %v941 = vsub.s32 %v938, %v940
          %v942 = vrot.slane %v928, %v941
          %v943 = vcombine.low %v935, %v942
          %v944 = vcombine.low %v802, %v806
          %v945 = vcombine.low %v810, %v814
          %v946 = vcombine.low %v818, %v822
          %v947 = vcombine.low %v826, %v830
          %v949 = vunpack.c.l.s4 1966171168
          %v950 = vunpack.c.0.s8 %v949
          %v951 = vlaneseq
          %v952 = vshrl.u32 %v951, 7
          %v953 = vsub.s32 %v950, %v952
          %v954 = vrot.slane %v944, %v953
          %v956 = vunpack.c.l.s4 1966171168
          %v957 = vunpack.c.0.s8 %v956
          %v958 = vlaneseq
          %v959 = vshrl.u32 %v958, 7
          %v960 = vsub.s32 %v957, %v959
          %v961 = vrot.slane %v945, %v960
          %v963 = vunpack.c.l.s4 1966171168
          %v964 = vunpack.c.0.s8 %v963
          %v965 = vlaneseq
          %v966 = vshrl.u32 %v965, 7
          %v967 = vsub.s32 %v964, %v966
          %v968 = vrot.slane %v946, %v967
          %v970 = vunpack.c.l.s4 1966171168
          %v971 = vunpack.c.0.s8 %v970
          %v972 = vlaneseq
          %v973 = vshrl.u32 %v972, 7
          %v974 = vsub.s32 %v971, %v973
          %v975 = vrot.slane %v947, %v974
          %v976 = vcombine.low %v954, %v961
          %v977 = vcombine.low %v968, %v975
          %v979 = vunpack.c.l.s4 1966171168
          %v980 = vunpack.c.0.s8 %v979
          %v981 = vlaneseq
          %v982 = vshrl.u32 %v981, 7
          %v983 = vsub.s32 %v980, %v982
          %v984 = vrot.slane %v976, %v983
          %v986 = vunpack.c.l.s4 1966171168
          %v987 = vunpack.c.0.s8 %v986
          %v988 = vlaneseq
          %v989 = vshrl.u32 %v988, 7
          %v990 = vsub.s32 %v987, %v989
          %v991 = vrot.slane %v977, %v990
          %v992 = vcombine.low %v984, %v991
          %v993 = vcombine.low %v834, %v838
          %v994 = vcombine.low %v842, %v846
          %v995 = vcombine.low %v850, %v854
          %v996 = vcombine.low %v858, %v862
          %v998 = vunpack.c.l.s4 1966171168
          %v999 = vunpack.c.0.s8 %v998
          %v1000 = vlaneseq
          %v1001 = vshrl.u32 %v1000, 7
          %v1002 = vsub.s32 %v999, %v1001
          %v1003 = vrot.slane %v993, %v1002
          %v1005 = vunpack.c.l.s4 1966171168
          %v1006 = vunpack.c.0.s8 %v1005
          %v1007 = vlaneseq
          %v1008 = vshrl.u32 %v1007, 7
          %v1009 = vsub.s32 %v1006, %v1008
          %v1010 = vrot.slane %v994, %v1009
          %v1012 = vunpack.c.l.s4 1966171168
          %v1013 = vunpack.c.0.s8 %v1012
          %v1014 = vlaneseq
          %v1015 = vshrl.u32 %v1014, 7
          %v1016 = vsub.s32 %v1013, %v1015
          %v1017 = vrot.slane %v995, %v1016
          %v1019 = vunpack.c.l.s4 1966171168
          %v1020 = vunpack.c.0.s8 %v1019
          %v1021 = vlaneseq
          %v1022 = vshrl.u32 %v1021, 7
          %v1023 = vsub.s32 %v1020, %v1022
          %v1024 = vrot.slane %v996, %v1023
          %v1025 = vcombine.low %v1003, %v1010
          %v1026 = vcombine.low %v1017, %v1024
          %v1028 = vunpack.c.l.s4 1966171168
          %v1029 = vunpack.c.0.s8 %v1028
          %v1030 = vlaneseq
          %v1031 = vshrl.u32 %v1030, 7
          %v1032 = vsub.s32 %v1029, %v1031
          %v1033 = vrot.slane %v1025, %v1032
          %v1035 = vunpack.c.l.s4 1966171168
          %v1036 = vunpack.c.0.s8 %v1035
          %v1037 = vlaneseq
          %v1038 = vshrl.u32 %v1037, 7
          %v1039 = vsub.s32 %v1036, %v1038
          %v1040 = vrot.slane %v1026, %v1039
          %v1041 = vcombine.low %v1033, %v1040
          %v1042 = vcombine.low %v866, %v870
          %v1043 = vcombine.low %v874, %v878
          %v1044 = vcombine.low %v882, %v886
          %v1045 = vcombine.low %v890, %v894
          %v1047 = vunpack.c.l.s4 1966171168
          %v1048 = vunpack.c.0.s8 %v1047
          %v1049 = vlaneseq
          %v1050 = vshrl.u32 %v1049, 7
          %v1051 = vsub.s32 %v1048, %v1050
          %v1052 = vrot.slane %v1042, %v1051
          %v1054 = vunpack.c.l.s4 1966171168
          %v1055 = vunpack.c.0.s8 %v1054
          %v1056 = vlaneseq
          %v1057 = vshrl.u32 %v1056, 7
          %v1058 = vsub.s32 %v1055, %v1057
          %v1059 = vrot.slane %v1043, %v1058
          %v1061 = vunpack.c.l.s4 1966171168
          %v1062 = vunpack.c.0.s8 %v1061
          %v1063 = vlaneseq
          %v1064 = vshrl.u32 %v1063, 7
          %v1065 = vsub.s32 %v1062, %v1064
          %v1066 = vrot.slane %v1044, %v1065
          %v1068 = vunpack.c.l.s4 1966171168
          %v1069 = vunpack.c.0.s8 %v1068
          %v1070 = vlaneseq
          %v1071 = vshrl.u32 %v1070, 7
          %v1072 = vsub.s32 %v1069, %v1071
          %v1073 = vrot.slane %v1045, %v1072
          %v1074 = vcombine.low %v1052, %v1059
          %v1075 = vcombine.low %v1066, %v1073
          %v1077 = vunpack.c.l.s4 1966171168
          %v1078 = vunpack.c.0.s8 %v1077
          %v1079 = vlaneseq
          %v1080 = vshrl.u32 %v1079, 7
          %v1081 = vsub.s32 %v1078, %v1080
          %v1082 = vrot.slane %v1074, %v1081
          %v1084 = vunpack.c.l.s4 1966171168
          %v1085 = vunpack.c.0.s8 %v1084
          %v1086 = vlaneseq
          %v1087 = vshrl.u32 %v1086, 7
          %v1088 = vsub.s32 %v1085, %v1087
          %v1089 = vrot.slane %v1075, %v1088
          %v1090 = vcombine.low %v1082, %v1089
          %1091 = vset.pattern.permute.xlu0 0
          %1092 = vperm.xlu0 %1091, %v943
          %v1093 = vpop.permute.xlu0 %1092
          %1094 = vset.pattern.permute.xlu0 0
          %1095 = vperm.xlu0 %1094, %v992
          %v1096 = vpop.permute.xlu0 %1095
          %1097 = vset.pattern.permute.xlu0 0
          %1098 = vperm.xlu0 %1097, %v1041
          %v1099 = vpop.permute.xlu0 %1098
          %1100 = vset.pattern.permute.xlu0 0
          %1101 = vperm.xlu0 %1100, %v1090
          %v1102 = vpop.permute.xlu0 %1101
          %v1103 = vlaneseq
          %v1104 = vand.u32 %v1103, 127
          %v1105 = vlaneseq
          %v1106 = vshrl.u32 %v1105, 7
          %v1107 = vsub.s32 %v1104, %v1106
          %v1108 = vrot.slane %v1093, %v1107
          %v1109 = vadd.s32 %v1104, 4294967288
          %v1110 = vlaneseq
          %v1111 = vshrl.u32 %v1110, 7
          %v1112 = vsub.s32 %v1109, %v1111
          %v1113 = vrot.slane %v1096, %v1112
          %vm1114 = vcmask 130112
          %v1115 = vsel %vm1114, %v1113, %v1108
          %v1116 = vadd.s32 %v1104, 4294967280
          %v1117 = vlaneseq
          %v1118 = vshrl.u32 %v1117, 7
          %v1119 = vsub.s32 %v1116, %v1118
          %v1120 = vrot.slane %v1099, %v1119
          %vm1121 = vcmask 195712
          %v1122 = vsel %vm1121, %v1120, %v1115
          %v1123 = vadd.s32 %v1104, 4294967272
          %v1124 = vlaneseq
          %v1125 = vshrl.u32 %v1124, 7
          %v1126 = vsub.s32 %v1123, %v1125
          %v1127 = vrot.slane %v1102, %v1126
          %vm1128 = vcmask 261312
          %v1129 = vsel %vm1128, %v1127, %v1122
          %v1131 = vunpack.c.l.s4 1966171168
          %v1132 = vunpack.c.0.s8 %v1131
          %v1133 = vlaneseq
          %v1134 = vshrl.u32 %v1133, 7
          %v1135 = vsub.s32 %v1132, %v1134
          %v1136 = vrot.slane %v1129, %v1135
          %v1138 = vunpack.c.l.s4 1966171168
          %v1139 = vunpack.c.0.s8 %v1138
          %v1140 = vlaneseq
          %v1141 = vshrl.u32 %v1140, 7
          %v1142 = vsub.s32 %v1139, %v1141
          %v1143 = vrot.slane %v1136, %v1142
          %v1145 = vlaneseq
          %vm1146 = vcmp.ge.s32.totalorder %v1145, 0
          %vm1147 = vcmp.lt.s32.totalorder %v1145, 32
          %vm1148 = vmand %vm1146, %vm1147
          %1149 = vst.msk [vmem:[%s185] sm:$0x1] %vm1148, %v1143
          %v1182 = vlaneseq
          %v1183 = vshrl.u32 %v1182, 7
          %v1184 = vsub.s32 0, %v1183
          %v1185 = vrot.slane %v731, %v1184
          %v1186 = vlaneseq
          %v1187 = vshrl.u32 %v1186, 7
          %v1188 = vsub.s32 1, %v1187
          %v1189 = vrot.slane %v731, %v1188
          %v1190 = vlaneseq
          %v1191 = vshrl.u32 %v1190, 7
          %v1192 = vsub.s32 2, %v1191
          %v1193 = vrot.slane %v731, %v1192
          %v1194 = vlaneseq
          %v1195 = vshrl.u32 %v1194, 7
          %v1196 = vsub.s32 3, %v1195
          %v1197 = vrot.slane %v731, %v1196
          %v1198 = vlaneseq
          %v1199 = vshrl.u32 %v1198, 7
          %v1200 = vsub.s32 4, %v1199
          %v1201 = vrot.slane %v731, %v1200
          %v1202 = vlaneseq
          %v1203 = vshrl.u32 %v1202, 7
          %v1204 = vsub.s32 5, %v1203
          %v1205 = vrot.slane %v731, %v1204
          %v1206 = vlaneseq
          %v1207 = vshrl.u32 %v1206, 7
          %v1208 = vsub.s32 6, %v1207
          %v1209 = vrot.slane %v731, %v1208
          %v1210 = vlaneseq
          %v1211 = vshrl.u32 %v1210, 7
          %v1212 = vsub.s32 7, %v1211
          %v1213 = vrot.slane %v731, %v1212
          %v1214 = vlaneseq
          %v1215 = vshrl.u32 %v1214, 7
          %v1216 = vsub.s32 0, %v1215
          %v1217 = vrot.slane %v732, %v1216
          %v1218 = vlaneseq
          %v1219 = vshrl.u32 %v1218, 7
          %v1220 = vsub.s32 1, %v1219
          %v1221 = vrot.slane %v732, %v1220
          %v1222 = vlaneseq
          %v1223 = vshrl.u32 %v1222, 7
          %v1224 = vsub.s32 2, %v1223
          %v1225 = vrot.slane %v732, %v1224
          %v1226 = vlaneseq
          %v1227 = vshrl.u32 %v1226, 7
          %v1228 = vsub.s32 3, %v1227
          %v1229 = vrot.slane %v732, %v1228
          %v1230 = vlaneseq
          %v1231 = vshrl.u32 %v1230, 7
          %v1232 = vsub.s32 4, %v1231
          %v1233 = vrot.slane %v732, %v1232
          %v1234 = vlaneseq
          %v1235 = vshrl.u32 %v1234, 7
          %v1236 = vsub.s32 5, %v1235
          %v1237 = vrot.slane %v732, %v1236
          %v1238 = vlaneseq
          %v1239 = vshrl.u32 %v1238, 7
          %v1240 = vsub.s32 6, %v1239
          %v1241 = vrot.slane %v732, %v1240
          %v1242 = vlaneseq
          %v1243 = vshrl.u32 %v1242, 7
          %v1244 = vsub.s32 7, %v1243
          %v1245 = vrot.slane %v732, %v1244
          %v1246 = vlaneseq
          %v1247 = vshrl.u32 %v1246, 7
          %v1248 = vsub.s32 0, %v1247
          %v1249 = vrot.slane %v733, %v1248
          %v1250 = vlaneseq
          %v1251 = vshrl.u32 %v1250, 7
          %v1252 = vsub.s32 1, %v1251
          %v1253 = vrot.slane %v733, %v1252
          %v1254 = vlaneseq
          %v1255 = vshrl.u32 %v1254, 7
          %v1256 = vsub.s32 2, %v1255
          %v1257 = vrot.slane %v733, %v1256
          %v1258 = vlaneseq
          %v1259 = vshrl.u32 %v1258, 7
          %v1260 = vsub.s32 3, %v1259
          %v1261 = vrot.slane %v733, %v1260
          %v1262 = vlaneseq
          %v1263 = vshrl.u32 %v1262, 7
          %v1264 = vsub.s32 4, %v1263
          %v1265 = vrot.slane %v733, %v1264
          %v1266 = vlaneseq
          %v1267 = vshrl.u32 %v1266, 7
          %v1268 = vsub.s32 5, %v1267
          %v1269 = vrot.slane %v733, %v1268
          %v1270 = vlaneseq
          %v1271 = vshrl.u32 %v1270, 7
          %v1272 = vsub.s32 6, %v1271
          %v1273 = vrot.slane %v733, %v1272
          %v1274 = vlaneseq
          %v1275 = vshrl.u32 %v1274, 7
          %v1276 = vsub.s32 7, %v1275
          %v1277 = vrot.slane %v733, %v1276
          %v1278 = vlaneseq
          %v1279 = vshrl.u32 %v1278, 7
          %v1280 = vsub.s32 0, %v1279
          %v1281 = vrot.slane %v734, %v1280
          %v1282 = vlaneseq
          %v1283 = vshrl.u32 %v1282, 7
          %v1284 = vsub.s32 1, %v1283
          %v1285 = vrot.slane %v734, %v1284
          %v1286 = vlaneseq
          %v1287 = vshrl.u32 %v1286, 7
          %v1288 = vsub.s32 2, %v1287
          %v1289 = vrot.slane %v734, %v1288
          %v1290 = vlaneseq
          %v1291 = vshrl.u32 %v1290, 7
          %v1292 = vsub.s32 3, %v1291
          %v1293 = vrot.slane %v734, %v1292
          %v1294 = vlaneseq
          %v1295 = vshrl.u32 %v1294, 7
          %v1296 = vsub.s32 4, %v1295
          %v1297 = vrot.slane %v734, %v1296
          %v1298 = vlaneseq
          %v1299 = vshrl.u32 %v1298, 7
          %v1300 = vsub.s32 5, %v1299
          %v1301 = vrot.slane %v734, %v1300
          %v1302 = vlaneseq
          %v1303 = vshrl.u32 %v1302, 7
          %v1304 = vsub.s32 6, %v1303
          %v1305 = vrot.slane %v734, %v1304
          %v1306 = vlaneseq
          %v1307 = vshrl.u32 %v1306, 7
          %v1308 = vsub.s32 7, %v1307
          %v1309 = vrot.slane %v734, %v1308
          %v1310 = vlaneseq
          %v1311 = vshrl.u32 %v1310, 7
          %v1312 = vsub.s32 0, %v1311
          %v1313 = vrot.slane %v735, %v1312
          %v1314 = vlaneseq
          %v1315 = vshrl.u32 %v1314, 7
          %v1316 = vsub.s32 1, %v1315
          %v1317 = vrot.slane %v735, %v1316
          %v1318 = vlaneseq
          %v1319 = vshrl.u32 %v1318, 7
          %v1320 = vsub.s32 2, %v1319
          %v1321 = vrot.slane %v735, %v1320
          %v1322 = vlaneseq
          %v1323 = vshrl.u32 %v1322, 7
          %v1324 = vsub.s32 3, %v1323
          %v1325 = vrot.slane %v735, %v1324
          %v1326 = vlaneseq
          %v1327 = vshrl.u32 %v1326, 7
          %v1328 = vsub.s32 4, %v1327
          %v1329 = vrot.slane %v735, %v1328
          %v1330 = vlaneseq
          %v1331 = vshrl.u32 %v1330, 7
          %v1332 = vsub.s32 5, %v1331
          %v1333 = vrot.slane %v735, %v1332
          %v1334 = vlaneseq
          %v1335 = vshrl.u32 %v1334, 7
          %v1336 = vsub.s32 6, %v1335
          %v1337 = vrot.slane %v735, %v1336
          %v1338 = vlaneseq
          %v1339 = vshrl.u32 %v1338, 7
          %v1340 = vsub.s32 7, %v1339
          %v1341 = vrot.slane %v735, %v1340
          %v1342 = vlaneseq
          %v1343 = vshrl.u32 %v1342, 7
          %v1344 = vsub.s32 0, %v1343
          %v1345 = vrot.slane %v736, %v1344
          %v1346 = vlaneseq
          %v1347 = vshrl.u32 %v1346, 7
          %v1348 = vsub.s32 1, %v1347
          %v1349 = vrot.slane %v736, %v1348
          %v1350 = vlaneseq
          %v1351 = vshrl.u32 %v1350, 7
          %v1352 = vsub.s32 2, %v1351
          %v1353 = vrot.slane %v736, %v1352
          %v1354 = vlaneseq
          %v1355 = vshrl.u32 %v1354, 7
          %v1356 = vsub.s32 3, %v1355
          %v1357 = vrot.slane %v736, %v1356
          %v1358 = vlaneseq
          %v1359 = vshrl.u32 %v1358, 7
          %v1360 = vsub.s32 4, %v1359
          %v1361 = vrot.slane %v736, %v1360
          %v1362 = vlaneseq
          %v1363 = vshrl.u32 %v1362, 7
          %v1364 = vsub.s32 5, %v1363
          %v1365 = vrot.slane %v736, %v1364
          %v1366 = vlaneseq
          %v1367 = vshrl.u32 %v1366, 7
          %v1368 = vsub.s32 6, %v1367
          %v1369 = vrot.slane %v736, %v1368
          %v1370 = vlaneseq
          %v1371 = vshrl.u32 %v1370, 7
          %v1372 = vsub.s32 7, %v1371
          %v1373 = vrot.slane %v736, %v1372
          %v1374 = vlaneseq
          %v1375 = vshrl.u32 %v1374, 7
          %v1376 = vsub.s32 0, %v1375
          %v1377 = vrot.slane %v737, %v1376
          %v1378 = vlaneseq
          %v1379 = vshrl.u32 %v1378, 7
          %v1380 = vsub.s32 1, %v1379
          %v1381 = vrot.slane %v737, %v1380
          %v1382 = vlaneseq
          %v1383 = vshrl.u32 %v1382, 7
          %v1384 = vsub.s32 2, %v1383
          %v1385 = vrot.slane %v737, %v1384
          %v1386 = vlaneseq
          %v1387 = vshrl.u32 %v1386, 7
          %v1388 = vsub.s32 3, %v1387
          %v1389 = vrot.slane %v737, %v1388
          %v1390 = vlaneseq
          %v1391 = vshrl.u32 %v1390, 7
          %v1392 = vsub.s32 4, %v1391
          %v1393 = vrot.slane %v737, %v1392
          %v1394 = vlaneseq
          %v1395 = vshrl.u32 %v1394, 7
          %v1396 = vsub.s32 5, %v1395
          %v1397 = vrot.slane %v737, %v1396
          %v1398 = vlaneseq
          %v1399 = vshrl.u32 %v1398, 7
          %v1400 = vsub.s32 6, %v1399
          %v1401 = vrot.slane %v737, %v1400
          %v1402 = vlaneseq
          %v1403 = vshrl.u32 %v1402, 7
          %v1404 = vsub.s32 7, %v1403
          %v1405 = vrot.slane %v737, %v1404
          %v1406 = vlaneseq
          %v1407 = vshrl.u32 %v1406, 7
          %v1408 = vsub.s32 0, %v1407
          %v1409 = vrot.slane %v738, %v1408
          %v1410 = vlaneseq
          %v1411 = vshrl.u32 %v1410, 7
          %v1412 = vsub.s32 1, %v1411
          %v1413 = vrot.slane %v738, %v1412
          %v1414 = vlaneseq
          %v1415 = vshrl.u32 %v1414, 7
          %v1416 = vsub.s32 2, %v1415
          %v1417 = vrot.slane %v738, %v1416
          %v1418 = vlaneseq
          %v1419 = vshrl.u32 %v1418, 7
          %v1420 = vsub.s32 3, %v1419
          %v1421 = vrot.slane %v738, %v1420
          %v1422 = vlaneseq
          %v1423 = vshrl.u32 %v1422, 7
          %v1424 = vsub.s32 4, %v1423
          %v1425 = vrot.slane %v738, %v1424
          %v1426 = vlaneseq
          %v1427 = vshrl.u32 %v1426, 7
          %v1428 = vsub.s32 5, %v1427
          %v1429 = vrot.slane %v738, %v1428
          %v1430 = vlaneseq
          %v1431 = vshrl.u32 %v1430, 7
          %v1432 = vsub.s32 6, %v1431
          %v1433 = vrot.slane %v738, %v1432
          %v1434 = vlaneseq
          %v1435 = vshrl.u32 %v1434, 7
          %v1436 = vsub.s32 7, %v1435
          %v1437 = vrot.slane %v738, %v1436
          %v1438 = vlaneseq
          %v1439 = vshrl.u32 %v1438, 7
          %v1440 = vsub.s32 0, %v1439
          %v1441 = vrot.slane %v739, %v1440
          %v1442 = vlaneseq
          %v1443 = vshrl.u32 %v1442, 7
          %v1444 = vsub.s32 1, %v1443
          %v1445 = vrot.slane %v739, %v1444
          %v1446 = vlaneseq
          %v1447 = vshrl.u32 %v1446, 7
          %v1448 = vsub.s32 2, %v1447
          %v1449 = vrot.slane %v739, %v1448
          %v1450 = vlaneseq
          %v1451 = vshrl.u32 %v1450, 7
          %v1452 = vsub.s32 3, %v1451
          %v1453 = vrot.slane %v739, %v1452
          %v1454 = vlaneseq
          %v1455 = vshrl.u32 %v1454, 7
          %v1456 = vsub.s32 4, %v1455
          %v1457 = vrot.slane %v739, %v1456
          %v1458 = vlaneseq
          %v1459 = vshrl.u32 %v1458, 7
          %v1460 = vsub.s32 5, %v1459
          %v1461 = vrot.slane %v739, %v1460
          %v1462 = vlaneseq
          %v1463 = vshrl.u32 %v1462, 7
          %v1464 = vsub.s32 6, %v1463
          %v1465 = vrot.slane %v739, %v1464
          %v1466 = vlaneseq
          %v1467 = vshrl.u32 %v1466, 7
          %v1468 = vsub.s32 7, %v1467
          %v1469 = vrot.slane %v739, %v1468
          %v1470 = vlaneseq
          %v1471 = vshrl.u32 %v1470, 7
          %v1472 = vsub.s32 0, %v1471
          %v1473 = vrot.slane %v740, %v1472
          %v1474 = vlaneseq
          %v1475 = vshrl.u32 %v1474, 7
          %v1476 = vsub.s32 1, %v1475
          %v1477 = vrot.slane %v740, %v1476
          %v1478 = vlaneseq
          %v1479 = vshrl.u32 %v1478, 7
          %v1480 = vsub.s32 2, %v1479
          %v1481 = vrot.slane %v740, %v1480
          %v1482 = vlaneseq
          %v1483 = vshrl.u32 %v1482, 7
          %v1484 = vsub.s32 3, %v1483
          %v1485 = vrot.slane %v740, %v1484
          %v1486 = vlaneseq
          %v1487 = vshrl.u32 %v1486, 7
          %v1488 = vsub.s32 4, %v1487
          %v1489 = vrot.slane %v740, %v1488
          %v1490 = vlaneseq
          %v1491 = vshrl.u32 %v1490, 7
          %v1492 = vsub.s32 5, %v1491
          %v1493 = vrot.slane %v740, %v1492
          %v1494 = vlaneseq
          %v1495 = vshrl.u32 %v1494, 7
          %v1496 = vsub.s32 6, %v1495
          %v1497 = vrot.slane %v740, %v1496
          %v1498 = vlaneseq
          %v1499 = vshrl.u32 %v1498, 7
          %v1500 = vsub.s32 7, %v1499
          %v1501 = vrot.slane %v740, %v1500
          %v1502 = vlaneseq
          %v1503 = vshrl.u32 %v1502, 7
          %v1504 = vsub.s32 0, %v1503
          %v1505 = vrot.slane %v741, %v1504
          %v1506 = vlaneseq
          %v1507 = vshrl.u32 %v1506, 7
          %v1508 = vsub.s32 1, %v1507
          %v1509 = vrot.slane %v741, %v1508
          %v1510 = vlaneseq
          %v1511 = vshrl.u32 %v1510, 7
          %v1512 = vsub.s32 2, %v1511
          %v1513 = vrot.slane %v741, %v1512
          %v1514 = vlaneseq
          %v1515 = vshrl.u32 %v1514, 7
          %v1516 = vsub.s32 3, %v1515
          %v1517 = vrot.slane %v741, %v1516
          %v1518 = vlaneseq
          %v1519 = vshrl.u32 %v1518, 7
          %v1520 = vsub.s32 4, %v1519
          %v1521 = vrot.slane %v741, %v1520
          %v1522 = vlaneseq
          %v1523 = vshrl.u32 %v1522, 7
          %v1524 = vsub.s32 5, %v1523
          %v1525 = vrot.slane %v741, %v1524
          %v1526 = vlaneseq
          %v1527 = vshrl.u32 %v1526, 7
          %v1528 = vsub.s32 6, %v1527
          %v1529 = vrot.slane %v741, %v1528
          %v1530 = vlaneseq
          %v1531 = vshrl.u32 %v1530, 7
          %v1532 = vsub.s32 7, %v1531
          %v1533 = vrot.slane %v741, %v1532
          %v1534 = vlaneseq
          %v1535 = vshrl.u32 %v1534, 7
          %v1536 = vsub.s32 0, %v1535
          %v1537 = vrot.slane %v742, %v1536
          %v1538 = vlaneseq
          %v1539 = vshrl.u32 %v1538, 7
          %v1540 = vsub.s32 1, %v1539
          %v1541 = vrot.slane %v742, %v1540
          %v1542 = vlaneseq
          %v1543 = vshrl.u32 %v1542, 7
          %v1544 = vsub.s32 2, %v1543
          %v1545 = vrot.slane %v742, %v1544
          %v1546 = vlaneseq
          %v1547 = vshrl.u32 %v1546, 7
          %v1548 = vsub.s32 3, %v1547
          %v1549 = vrot.slane %v742, %v1548
          %v1550 = vlaneseq
          %v1551 = vshrl.u32 %v1550, 7
          %v1552 = vsub.s32 4, %v1551
          %v1553 = vrot.slane %v742, %v1552
          %v1554 = vlaneseq
          %v1555 = vshrl.u32 %v1554, 7
          %v1556 = vsub.s32 5, %v1555
          %v1557 = vrot.slane %v742, %v1556
          %v1558 = vlaneseq
          %v1559 = vshrl.u32 %v1558, 7
          %v1560 = vsub.s32 6, %v1559
          %v1561 = vrot.slane %v742, %v1560
          %v1562 = vlaneseq
          %v1563 = vshrl.u32 %v1562, 7
          %v1564 = vsub.s32 7, %v1563
          %v1565 = vrot.slane %v742, %v1564
          %v1566 = vlaneseq
          %v1567 = vshrl.u32 %v1566, 7
          %v1568 = vsub.s32 0, %v1567
          %v1569 = vrot.slane %v743, %v1568
          %v1570 = vlaneseq
          %v1571 = vshrl.u32 %v1570, 7
          %v1572 = vsub.s32 1, %v1571
          %v1573 = vrot.slane %v743, %v1572
          %v1574 = vlaneseq
          %v1575 = vshrl.u32 %v1574, 7
          %v1576 = vsub.s32 2, %v1575
          %v1577 = vrot.slane %v743, %v1576
          %v1578 = vlaneseq
          %v1579 = vshrl.u32 %v1578, 7
          %v1580 = vsub.s32 3, %v1579
          %v1581 = vrot.slane %v743, %v1580
          %v1582 = vlaneseq
          %v1583 = vshrl.u32 %v1582, 7
          %v1584 = vsub.s32 4, %v1583
          %v1585 = vrot.slane %v743, %v1584
          %v1586 = vlaneseq
          %v1587 = vshrl.u32 %v1586, 7
          %v1588 = vsub.s32 5, %v1587
          %v1589 = vrot.slane %v743, %v1588
          %v1590 = vlaneseq
          %v1591 = vshrl.u32 %v1590, 7
          %v1592 = vsub.s32 6, %v1591
          %v1593 = vrot.slane %v743, %v1592
          %v1594 = vlaneseq
          %v1595 = vshrl.u32 %v1594, 7
          %v1596 = vsub.s32 7, %v1595
          %v1597 = vrot.slane %v743, %v1596
          %v1598 = vlaneseq
          %v1599 = vshrl.u32 %v1598, 7
          %v1600 = vsub.s32 0, %v1599
          %v1601 = vrot.slane %v744, %v1600
          %v1602 = vlaneseq
          %v1603 = vshrl.u32 %v1602, 7
          %v1604 = vsub.s32 1, %v1603
          %v1605 = vrot.slane %v744, %v1604
          %v1606 = vlaneseq
          %v1607 = vshrl.u32 %v1606, 7
          %v1608 = vsub.s32 2, %v1607
          %v1609 = vrot.slane %v744, %v1608
          %v1610 = vlaneseq
          %v1611 = vshrl.u32 %v1610, 7
          %v1612 = vsub.s32 3, %v1611
          %v1613 = vrot.slane %v744, %v1612
          %v1614 = vlaneseq
          %v1615 = vshrl.u32 %v1614, 7
          %v1616 = vsub.s32 4, %v1615
          %v1617 = vrot.slane %v744, %v1616
          %v1618 = vlaneseq
          %v1619 = vshrl.u32 %v1618, 7
          %v1620 = vsub.s32 5, %v1619
          %v1621 = vrot.slane %v744, %v1620
          %v1622 = vlaneseq
          %v1623 = vshrl.u32 %v1622, 7
          %v1624 = vsub.s32 6, %v1623
          %v1625 = vrot.slane %v744, %v1624
          %v1626 = vlaneseq
          %v1627 = vshrl.u32 %v1626, 7
          %v1628 = vsub.s32 7, %v1627
          %v1629 = vrot.slane %v744, %v1628
          %v1630 = vlaneseq
          %v1631 = vshrl.u32 %v1630, 7
          %v1632 = vsub.s32 0, %v1631
          %v1633 = vrot.slane %v745, %v1632
          %v1634 = vlaneseq
          %v1635 = vshrl.u32 %v1634, 7
          %v1636 = vsub.s32 1, %v1635
          %v1637 = vrot.slane %v745, %v1636
          %v1638 = vlaneseq
          %v1639 = vshrl.u32 %v1638, 7
          %v1640 = vsub.s32 2, %v1639
          %v1641 = vrot.slane %v745, %v1640
          %v1642 = vlaneseq
          %v1643 = vshrl.u32 %v1642, 7
          %v1644 = vsub.s32 3, %v1643
          %v1645 = vrot.slane %v745, %v1644
          %v1646 = vlaneseq
          %v1647 = vshrl.u32 %v1646, 7
          %v1648 = vsub.s32 4, %v1647
          %v1649 = vrot.slane %v745, %v1648
          %v1650 = vlaneseq
          %v1651 = vshrl.u32 %v1650, 7
          %v1652 = vsub.s32 5, %v1651
          %v1653 = vrot.slane %v745, %v1652
          %v1654 = vlaneseq
          %v1655 = vshrl.u32 %v1654, 7
          %v1656 = vsub.s32 6, %v1655
          %v1657 = vrot.slane %v745, %v1656
          %v1658 = vlaneseq
          %v1659 = vshrl.u32 %v1658, 7
          %v1660 = vsub.s32 7, %v1659
          %v1661 = vrot.slane %v745, %v1660
          %v1662 = vlaneseq
          %v1663 = vshrl.u32 %v1662, 7
          %v1664 = vsub.s32 0, %v1663
          %v1665 = vrot.slane %v746, %v1664
          %v1666 = vlaneseq
          %v1667 = vshrl.u32 %v1666, 7
          %v1668 = vsub.s32 1, %v1667
          %v1669 = vrot.slane %v746, %v1668
          %v1670 = vlaneseq
          %v1671 = vshrl.u32 %v1670, 7
          %v1672 = vsub.s32 2, %v1671
          %v1673 = vrot.slane %v746, %v1672
          %v1674 = vlaneseq
          %v1675 = vshrl.u32 %v1674, 7
          %v1676 = vsub.s32 3, %v1675
          %v1677 = vrot.slane %v746, %v1676
          %v1678 = vlaneseq
          %v1679 = vshrl.u32 %v1678, 7
          %v1680 = vsub.s32 4, %v1679
          %v1681 = vrot.slane %v746, %v1680
          %v1682 = vlaneseq
          %v1683 = vshrl.u32 %v1682, 7
          %v1684 = vsub.s32 5, %v1683
          %v1685 = vrot.slane %v746, %v1684
          %v1686 = vlaneseq
          %v1687 = vshrl.u32 %v1686, 7
          %v1688 = vsub.s32 6, %v1687
          %v1689 = vrot.slane %v746, %v1688
          %v1690 = vlaneseq
          %v1691 = vshrl.u32 %v1690, 7
          %v1692 = vsub.s32 7, %v1691
          %v1693 = vrot.slane %v746, %v1692
          %v1694 = vlaneseq
          %v1695 = vshrl.u32 %v1694, 7
          %v1696 = vsub.s32 0, %v1695
          %v1697 = vrot.slane %v747, %v1696
          %v1698 = vlaneseq
          %v1699 = vshrl.u32 %v1698, 7
          %v1700 = vsub.s32 1, %v1699
          %v1701 = vrot.slane %v747, %v1700
          %v1702 = vlaneseq
          %v1703 = vshrl.u32 %v1702, 7
          %v1704 = vsub.s32 2, %v1703
          %v1705 = vrot.slane %v747, %v1704
          %v1706 = vlaneseq
          %v1707 = vshrl.u32 %v1706, 7
          %v1708 = vsub.s32 3, %v1707
          %v1709 = vrot.slane %v747, %v1708
          %v1710 = vlaneseq
          %v1711 = vshrl.u32 %v1710, 7
          %v1712 = vsub.s32 4, %v1711
          %v1713 = vrot.slane %v747, %v1712
          %v1714 = vlaneseq
          %v1715 = vshrl.u32 %v1714, 7
          %v1716 = vsub.s32 5, %v1715
          %v1717 = vrot.slane %v747, %v1716
          %v1718 = vlaneseq
          %v1719 = vshrl.u32 %v1718, 7
          %v1720 = vsub.s32 6, %v1719
          %v1721 = vrot.slane %v747, %v1720
          %v1722 = vlaneseq
          %v1723 = vshrl.u32 %v1722, 7
          %v1724 = vsub.s32 7, %v1723
          %v1725 = vrot.slane %v747, %v1724
          %v1726 = vlaneseq
          %v1727 = vshrl.u32 %v1726, 7
          %v1728 = vsub.s32 0, %v1727
          %v1729 = vrot.slane %v748, %v1728
          %v1730 = vlaneseq
          %v1731 = vshrl.u32 %v1730, 7
          %v1732 = vsub.s32 1, %v1731
          %v1733 = vrot.slane %v748, %v1732
          %v1734 = vlaneseq
          %v1735 = vshrl.u32 %v1734, 7
          %v1736 = vsub.s32 2, %v1735
          %v1737 = vrot.slane %v748, %v1736
          %v1738 = vlaneseq
          %v1739 = vshrl.u32 %v1738, 7
          %v1740 = vsub.s32 3, %v1739
          %v1741 = vrot.slane %v748, %v1740
          %v1742 = vlaneseq
          %v1743 = vshrl.u32 %v1742, 7
          %v1744 = vsub.s32 4, %v1743
          %v1745 = vrot.slane %v748, %v1744
          %v1746 = vlaneseq
          %v1747 = vshrl.u32 %v1746, 7
          %v1748 = vsub.s32 5, %v1747
          %v1749 = vrot.slane %v748, %v1748
          %v1750 = vlaneseq
          %v1751 = vshrl.u32 %v1750, 7
          %v1752 = vsub.s32 6, %v1751
          %v1753 = vrot.slane %v748, %v1752
          %v1754 = vlaneseq
          %v1755 = vshrl.u32 %v1754, 7
          %v1756 = vsub.s32 7, %v1755
          %v1757 = vrot.slane %v748, %v1756
          %v1758 = vlaneseq
          %v1759 = vshrl.u32 %v1758, 7
          %v1760 = vsub.s32 0, %v1759
          %v1761 = vrot.slane %v749, %v1760
          %v1762 = vlaneseq
          %v1763 = vshrl.u32 %v1762, 7
          %v1764 = vsub.s32 1, %v1763
          %v1765 = vrot.slane %v749, %v1764
          %v1766 = vlaneseq
          %v1767 = vshrl.u32 %v1766, 7
          %v1768 = vsub.s32 2, %v1767
          %v1769 = vrot.slane %v749, %v1768
          %v1770 = vlaneseq
          %v1771 = vshrl.u32 %v1770, 7
          %v1772 = vsub.s32 3, %v1771
          %v1773 = vrot.slane %v749, %v1772
          %v1774 = vlaneseq
          %v1775 = vshrl.u32 %v1774, 7
          %v1776 = vsub.s32 4, %v1775
          %v1777 = vrot.slane %v749, %v1776
          %v1778 = vlaneseq
          %v1779 = vshrl.u32 %v1778, 7
          %v1780 = vsub.s32 5, %v1779
          %v1781 = vrot.slane %v749, %v1780
          %v1782 = vlaneseq
          %v1783 = vshrl.u32 %v1782, 7
          %v1784 = vsub.s32 6, %v1783
          %v1785 = vrot.slane %v749, %v1784
          %v1786 = vlaneseq
          %v1787 = vshrl.u32 %v1786, 7
          %v1788 = vsub.s32 7, %v1787
          %v1789 = vrot.slane %v749, %v1788
          %v1790 = vlaneseq
          %v1791 = vshrl.u32 %v1790, 7
          %v1792 = vsub.s32 0, %v1791
          %v1793 = vrot.slane %v750, %v1792
          %v1794 = vlaneseq
          %v1795 = vshrl.u32 %v1794, 7
          %v1796 = vsub.s32 1, %v1795
          %v1797 = vrot.slane %v750, %v1796
          %v1798 = vlaneseq
          %v1799 = vshrl.u32 %v1798, 7
          %v1800 = vsub.s32 2, %v1799
          %v1801 = vrot.slane %v750, %v1800
          %v1802 = vlaneseq
          %v1803 = vshrl.u32 %v1802, 7
          %v1804 = vsub.s32 3, %v1803
          %v1805 = vrot.slane %v750, %v1804
          %v1806 = vlaneseq
          %v1807 = vshrl.u32 %v1806, 7
          %v1808 = vsub.s32 4, %v1807
          %v1809 = vrot.slane %v750, %v1808
          %v1810 = vlaneseq
          %v1811 = vshrl.u32 %v1810, 7
          %v1812 = vsub.s32 5, %v1811
          %v1813 = vrot.slane %v750, %v1812
          %v1814 = vlaneseq
          %v1815 = vshrl.u32 %v1814, 7
          %v1816 = vsub.s32 6, %v1815
          %v1817 = vrot.slane %v750, %v1816
          %v1818 = vlaneseq
          %v1819 = vshrl.u32 %v1818, 7
          %v1820 = vsub.s32 7, %v1819
          %v1821 = vrot.slane %v750, %v1820
          %v1822 = vlaneseq
          %v1823 = vshrl.u32 %v1822, 7
          %v1824 = vsub.s32 0, %v1823
          %v1825 = vrot.slane %v751, %v1824
          %v1826 = vlaneseq
          %v1827 = vshrl.u32 %v1826, 7
          %v1828 = vsub.s32 1, %v1827
          %v1829 = vrot.slane %v751, %v1828
          %v1830 = vlaneseq
          %v1831 = vshrl.u32 %v1830, 7
          %v1832 = vsub.s32 2, %v1831
          %v1833 = vrot.slane %v751, %v1832
          %v1834 = vlaneseq
          %v1835 = vshrl.u32 %v1834, 7
          %v1836 = vsub.s32 3, %v1835
          %v1837 = vrot.slane %v751, %v1836
          %v1838 = vlaneseq
          %v1839 = vshrl.u32 %v1838, 7
          %v1840 = vsub.s32 4, %v1839
          %v1841 = vrot.slane %v751, %v1840
          %v1842 = vlaneseq
          %v1843 = vshrl.u32 %v1842, 7
          %v1844 = vsub.s32 5, %v1843
          %v1845 = vrot.slane %v751, %v1844
          %v1846 = vlaneseq
          %v1847 = vshrl.u32 %v1846, 7
          %v1848 = vsub.s32 6, %v1847
          %v1849 = vrot.slane %v751, %v1848
          %v1850 = vlaneseq
          %v1851 = vshrl.u32 %v1850, 7
          %v1852 = vsub.s32 7, %v1851
          %v1853 = vrot.slane %v751, %v1852
          %v1854 = vlaneseq
          %v1855 = vshrl.u32 %v1854, 7
          %v1856 = vsub.s32 0, %v1855
          %v1857 = vrot.slane %v752, %v1856
          %v1858 = vlaneseq
          %v1859 = vshrl.u32 %v1858, 7
          %v1860 = vsub.s32 1, %v1859
          %v1861 = vrot.slane %v752, %v1860
          %v1862 = vlaneseq
          %v1863 = vshrl.u32 %v1862, 7
          %v1864 = vsub.s32 2, %v1863
          %v1865 = vrot.slane %v752, %v1864
          %v1866 = vlaneseq
          %v1867 = vshrl.u32 %v1866, 7
          %v1868 = vsub.s32 3, %v1867
          %v1869 = vrot.slane %v752, %v1868
          %v1870 = vlaneseq
          %v1871 = vshrl.u32 %v1870, 7
          %v1872 = vsub.s32 4, %v1871
          %v1873 = vrot.slane %v752, %v1872
          %v1874 = vlaneseq
          %v1875 = vshrl.u32 %v1874, 7
          %v1876 = vsub.s32 5, %v1875
          %v1877 = vrot.slane %v752, %v1876
          %v1878 = vlaneseq
          %v1879 = vshrl.u32 %v1878, 7
          %v1880 = vsub.s32 6, %v1879
          %v1881 = vrot.slane %v752, %v1880
          %v1882 = vlaneseq
          %v1883 = vshrl.u32 %v1882, 7
          %v1884 = vsub.s32 7, %v1883
          %v1885 = vrot.slane %v752, %v1884
          %v1886 = vlaneseq
          %v1887 = vshrl.u32 %v1886, 7
          %v1888 = vsub.s32 0, %v1887
          %v1889 = vrot.slane %v753, %v1888
          %v1890 = vlaneseq
          %v1891 = vshrl.u32 %v1890, 7
          %v1892 = vsub.s32 1, %v1891
          %v1893 = vrot.slane %v753, %v1892
          %v1894 = vlaneseq
          %v1895 = vshrl.u32 %v1894, 7
          %v1896 = vsub.s32 2, %v1895
          %v1897 = vrot.slane %v753, %v1896
          %v1898 = vlaneseq
          %v1899 = vshrl.u32 %v1898, 7
          %v1900 = vsub.s32 3, %v1899
          %v1901 = vrot.slane %v753, %v1900
          %v1902 = vlaneseq
          %v1903 = vshrl.u32 %v1902, 7
          %v1904 = vsub.s32 4, %v1903
          %v1905 = vrot.slane %v753, %v1904
          %v1906 = vlaneseq
          %v1907 = vshrl.u32 %v1906, 7
          %v1908 = vsub.s32 5, %v1907
          %v1909 = vrot.slane %v753, %v1908
          %v1910 = vlaneseq
          %v1911 = vshrl.u32 %v1910, 7
          %v1912 = vsub.s32 6, %v1911
          %v1913 = vrot.slane %v753, %v1912
          %v1914 = vlaneseq
          %v1915 = vshrl.u32 %v1914, 7
          %v1916 = vsub.s32 7, %v1915
          %v1917 = vrot.slane %v753, %v1916
          %v1918 = vlaneseq
          %v1919 = vshrl.u32 %v1918, 7
          %v1920 = vsub.s32 0, %v1919
          %v1921 = vrot.slane %v754, %v1920
          %v1922 = vlaneseq
          %v1923 = vshrl.u32 %v1922, 7
          %v1924 = vsub.s32 1, %v1923
          %v1925 = vrot.slane %v754, %v1924
          %v1926 = vlaneseq
          %v1927 = vshrl.u32 %v1926, 7
          %v1928 = vsub.s32 2, %v1927
          %v1929 = vrot.slane %v754, %v1928
          %v1930 = vlaneseq
          %v1931 = vshrl.u32 %v1930, 7
          %v1932 = vsub.s32 3, %v1931
          %v1933 = vrot.slane %v754, %v1932
          %v1934 = vlaneseq
          %v1935 = vshrl.u32 %v1934, 7
          %v1936 = vsub.s32 4, %v1935
          %v1937 = vrot.slane %v754, %v1936
          %v1938 = vlaneseq
          %v1939 = vshrl.u32 %v1938, 7
          %v1940 = vsub.s32 5, %v1939
          %v1941 = vrot.slane %v754, %v1940
          %v1942 = vlaneseq
          %v1943 = vshrl.u32 %v1942, 7
          %v1944 = vsub.s32 6, %v1943
          %v1945 = vrot.slane %v754, %v1944
          %v1946 = vlaneseq
          %v1947 = vshrl.u32 %v1946, 7
          %v1948 = vsub.s32 7, %v1947
          %v1949 = vrot.slane %v754, %v1948
          %v1950 = vlaneseq
          %v1951 = vshrl.u32 %v1950, 7
          %v1952 = vsub.s32 0, %v1951
          %v1953 = vrot.slane %v755, %v1952
          %v1954 = vlaneseq
          %v1955 = vshrl.u32 %v1954, 7
          %v1956 = vsub.s32 1, %v1955
          %v1957 = vrot.slane %v755, %v1956
          %v1958 = vlaneseq
          %v1959 = vshrl.u32 %v1958, 7
          %v1960 = vsub.s32 2, %v1959
          %v1961 = vrot.slane %v755, %v1960
          %v1962 = vlaneseq
          %v1963 = vshrl.u32 %v1962, 7
          %v1964 = vsub.s32 3, %v1963
          %v1965 = vrot.slane %v755, %v1964
          %v1966 = vlaneseq
          %v1967 = vshrl.u32 %v1966, 7
          %v1968 = vsub.s32 4, %v1967
          %v1969 = vrot.slane %v755, %v1968
          %v1970 = vlaneseq
          %v1971 = vshrl.u32 %v1970, 7
          %v1972 = vsub.s32 5, %v1971
          %v1973 = vrot.slane %v755, %v1972
          %v1974 = vlaneseq
          %v1975 = vshrl.u32 %v1974, 7
          %v1976 = vsub.s32 6, %v1975
          %v1977 = vrot.slane %v755, %v1976
          %v1978 = vlaneseq
          %v1979 = vshrl.u32 %v1978, 7
          %v1980 = vsub.s32 7, %v1979
          %v1981 = vrot.slane %v755, %v1980
          %v1982 = vlaneseq
          %v1983 = vshrl.u32 %v1982, 7
          %v1984 = vsub.s32 0, %v1983
          %v1985 = vrot.slane %v756, %v1984
          %v1986 = vlaneseq
          %v1987 = vshrl.u32 %v1986, 7
          %v1988 = vsub.s32 1, %v1987
          %v1989 = vrot.slane %v756, %v1988
          %v1990 = vlaneseq
          %v1991 = vshrl.u32 %v1990, 7
          %v1992 = vsub.s32 2, %v1991
          %v1993 = vrot.slane %v756, %v1992
          %v1994 = vlaneseq
          %v1995 = vshrl.u32 %v1994, 7
          %v1996 = vsub.s32 3, %v1995
          %v1997 = vrot.slane %v756, %v1996
          %v1998 = vlaneseq
          %v1999 = vshrl.u32 %v1998, 7
          %v2000 = vsub.s32 4, %v1999
          %v2001 = vrot.slane %v756, %v2000
          %v2002 = vlaneseq
          %v2003 = vshrl.u32 %v2002, 7
          %v2004 = vsub.s32 5, %v2003
          %v2005 = vrot.slane %v756, %v2004
          %v2006 = vlaneseq
          %v2007 = vshrl.u32 %v2006, 7
          %v2008 = vsub.s32 6, %v2007
          %v2009 = vrot.slane %v756, %v2008
          %v2010 = vlaneseq
          %v2011 = vshrl.u32 %v2010, 7
          %v2012 = vsub.s32 7, %v2011
          %v2013 = vrot.slane %v756, %v2012
          %v2014 = vlaneseq
          %v2015 = vshrl.u32 %v2014, 7
          %v2016 = vsub.s32 0, %v2015
          %v2017 = vrot.slane %v757, %v2016
          %v2018 = vlaneseq
          %v2019 = vshrl.u32 %v2018, 7
          %v2020 = vsub.s32 1, %v2019
          %v2021 = vrot.slane %v757, %v2020
          %v2022 = vlaneseq
          %v2023 = vshrl.u32 %v2022, 7
          %v2024 = vsub.s32 2, %v2023
          %v2025 = vrot.slane %v757, %v2024
          %v2026 = vlaneseq
          %v2027 = vshrl.u32 %v2026, 7
          %v2028 = vsub.s32 3, %v2027
          %v2029 = vrot.slane %v757, %v2028
          %v2030 = vlaneseq
          %v2031 = vshrl.u32 %v2030, 7
          %v2032 = vsub.s32 4, %v2031
          %v2033 = vrot.slane %v757, %v2032
          %v2034 = vlaneseq
          %v2035 = vshrl.u32 %v2034, 7
          %v2036 = vsub.s32 5, %v2035
          %v2037 = vrot.slane %v757, %v2036
          %v2038 = vlaneseq
          %v2039 = vshrl.u32 %v2038, 7
          %v2040 = vsub.s32 6, %v2039
          %v2041 = vrot.slane %v757, %v2040
          %v2042 = vlaneseq
          %v2043 = vshrl.u32 %v2042, 7
          %v2044 = vsub.s32 7, %v2043
          %v2045 = vrot.slane %v757, %v2044
          %v2046 = vlaneseq
          %v2047 = vshrl.u32 %v2046, 7
          %v2048 = vsub.s32 0, %v2047
          %v2049 = vrot.slane %v758, %v2048
          %v2050 = vlaneseq
          %v2051 = vshrl.u32 %v2050, 7
          %v2052 = vsub.s32 1, %v2051
          %v2053 = vrot.slane %v758, %v2052
          %v2054 = vlaneseq
          %v2055 = vshrl.u32 %v2054, 7
          %v2056 = vsub.s32 2, %v2055
          %v2057 = vrot.slane %v758, %v2056
          %v2058 = vlaneseq
          %v2059 = vshrl.u32 %v2058, 7
          %v2060 = vsub.s32 3, %v2059
          %v2061 = vrot.slane %v758, %v2060
          %v2062 = vlaneseq
          %v2063 = vshrl.u32 %v2062, 7
          %v2064 = vsub.s32 4, %v2063
          %v2065 = vrot.slane %v758, %v2064
          %v2066 = vlaneseq
          %v2067 = vshrl.u32 %v2066, 7
          %v2068 = vsub.s32 5, %v2067
          %v2069 = vrot.slane %v758, %v2068
          %v2070 = vlaneseq
          %v2071 = vshrl.u32 %v2070, 7
          %v2072 = vsub.s32 6, %v2071
          %v2073 = vrot.slane %v758, %v2072
          %v2074 = vlaneseq
          %v2075 = vshrl.u32 %v2074, 7
          %v2076 = vsub.s32 7, %v2075
          %v2077 = vrot.slane %v758, %v2076
          %v2078 = vlaneseq
          %v2079 = vshrl.u32 %v2078, 7
          %v2080 = vsub.s32 0, %v2079
          %v2081 = vrot.slane %v759, %v2080
          %v2082 = vlaneseq
          %v2083 = vshrl.u32 %v2082, 7
          %v2084 = vsub.s32 1, %v2083
          %v2085 = vrot.slane %v759, %v2084
          %v2086 = vlaneseq
          %v2087 = vshrl.u32 %v2086, 7
          %v2088 = vsub.s32 2, %v2087
          %v2089 = vrot.slane %v759, %v2088
          %v2090 = vlaneseq
          %v2091 = vshrl.u32 %v2090, 7
          %v2092 = vsub.s32 3, %v2091
          %v2093 = vrot.slane %v759, %v2092
          %v2094 = vlaneseq
          %v2095 = vshrl.u32 %v2094, 7
          %v2096 = vsub.s32 4, %v2095
          %v2097 = vrot.slane %v759, %v2096
          %v2098 = vlaneseq
          %v2099 = vshrl.u32 %v2098, 7
          %v2100 = vsub.s32 5, %v2099
          %v2101 = vrot.slane %v759, %v2100
          %v2102 = vlaneseq
          %v2103 = vshrl.u32 %v2102, 7
          %v2104 = vsub.s32 6, %v2103
          %v2105 = vrot.slane %v759, %v2104
          %v2106 = vlaneseq
          %v2107 = vshrl.u32 %v2106, 7
          %v2108 = vsub.s32 7, %v2107
          %v2109 = vrot.slane %v759, %v2108
          %v2110 = vlaneseq
          %v2111 = vshrl.u32 %v2110, 7
          %v2112 = vsub.s32 0, %v2111
          %v2113 = vrot.slane %v760, %v2112
          %v2114 = vlaneseq
          %v2115 = vshrl.u32 %v2114, 7
          %v2116 = vsub.s32 1, %v2115
          %v2117 = vrot.slane %v760, %v2116
          %v2118 = vlaneseq
          %v2119 = vshrl.u32 %v2118, 7
          %v2120 = vsub.s32 2, %v2119
          %v2121 = vrot.slane %v760, %v2120
          %v2122 = vlaneseq
          %v2123 = vshrl.u32 %v2122, 7
          %v2124 = vsub.s32 3, %v2123
          %v2125 = vrot.slane %v760, %v2124
          %v2126 = vlaneseq
          %v2127 = vshrl.u32 %v2126, 7
          %v2128 = vsub.s32 4, %v2127
          %v2129 = vrot.slane %v760, %v2128
          %v2130 = vlaneseq
          %v2131 = vshrl.u32 %v2130, 7
          %v2132 = vsub.s32 5, %v2131
          %v2133 = vrot.slane %v760, %v2132
          %v2134 = vlaneseq
          %v2135 = vshrl.u32 %v2134, 7
          %v2136 = vsub.s32 6, %v2135
          %v2137 = vrot.slane %v760, %v2136
          %v2138 = vlaneseq
          %v2139 = vshrl.u32 %v2138, 7
          %v2140 = vsub.s32 7, %v2139
          %v2141 = vrot.slane %v760, %v2140
          %v2142 = vlaneseq
          %v2143 = vshrl.u32 %v2142, 7
          %v2144 = vsub.s32 0, %v2143
          %v2145 = vrot.slane %v761, %v2144
          %v2146 = vlaneseq
          %v2147 = vshrl.u32 %v2146, 7
          %v2148 = vsub.s32 1, %v2147
          %v2149 = vrot.slane %v761, %v2148
          %v2150 = vlaneseq
          %v2151 = vshrl.u32 %v2150, 7
          %v2152 = vsub.s32 2, %v2151
          %v2153 = vrot.slane %v761, %v2152
          %v2154 = vlaneseq
          %v2155 = vshrl.u32 %v2154, 7
          %v2156 = vsub.s32 3, %v2155
          %v2157 = vrot.slane %v761, %v2156
          %v2158 = vlaneseq
          %v2159 = vshrl.u32 %v2158, 7
          %v2160 = vsub.s32 4, %v2159
          %v2161 = vrot.slane %v761, %v2160
          %v2162 = vlaneseq
          %v2163 = vshrl.u32 %v2162, 7
          %v2164 = vsub.s32 5, %v2163
          %v2165 = vrot.slane %v761, %v2164
          %v2166 = vlaneseq
          %v2167 = vshrl.u32 %v2166, 7
          %v2168 = vsub.s32 6, %v2167
          %v2169 = vrot.slane %v761, %v2168
          %v2170 = vlaneseq
          %v2171 = vshrl.u32 %v2170, 7
          %v2172 = vsub.s32 7, %v2171
          %v2173 = vrot.slane %v761, %v2172
          %v2174 = vlaneseq
          %v2175 = vshrl.u32 %v2174, 7
          %v2176 = vsub.s32 0, %v2175
          %v2177 = vrot.slane %v762, %v2176
          %v2178 = vlaneseq
          %v2179 = vshrl.u32 %v2178, 7
          %v2180 = vsub.s32 1, %v2179
          %v2181 = vrot.slane %v762, %v2180
          %v2182 = vlaneseq
          %v2183 = vshrl.u32 %v2182, 7
          %v2184 = vsub.s32 2, %v2183
          %v2185 = vrot.slane %v762, %v2184
          %v2186 = vlaneseq
          %v2187 = vshrl.u32 %v2186, 7
          %v2188 = vsub.s32 3, %v2187
          %v2189 = vrot.slane %v762, %v2188
          %v2190 = vlaneseq
          %v2191 = vshrl.u32 %v2190, 7
          %v2192 = vsub.s32 4, %v2191
          %v2193 = vrot.slane %v762, %v2192
          %v2194 = vlaneseq
          %v2195 = vshrl.u32 %v2194, 7
          %v2196 = vsub.s32 5, %v2195
          %v2197 = vrot.slane %v762, %v2196
          %v2198 = vlaneseq
          %v2199 = vshrl.u32 %v2198, 7
          %v2200 = vsub.s32 6, %v2199
          %v2201 = vrot.slane %v762, %v2200
          %v2202 = vlaneseq
          %v2203 = vshrl.u32 %v2202, 7
          %v2204 = vsub.s32 7, %v2203
          %v2205 = vrot.slane %v762, %v2204
          %v2206 = vcombine.low %v1185, %v1189
          %v2207 = vcombine.low %v1193, %v1197
          %v2208 = vcombine.low %v1201, %v1205
          %v2209 = vcombine.low %v1209, %v1213
          %v2211 = vunpack.c.l.s4 1966171168
          %v2212 = vunpack.c.0.s8 %v2211
          %v2213 = vlaneseq
          %v2214 = vshrl.u32 %v2213, 7
          %v2215 = vsub.s32 %v2212, %v2214
          %v2216 = vrot.slane %v2206, %v2215
          %v2218 = vunpack.c.l.s4 1966171168
          %v2219 = vunpack.c.0.s8 %v2218
          %v2220 = vlaneseq
          %v2221 = vshrl.u32 %v2220, 7
          %v2222 = vsub.s32 %v2219, %v2221
          %v2223 = vrot.slane %v2207, %v2222
          %v2225 = vunpack.c.l.s4 1966171168
          %v2226 = vunpack.c.0.s8 %v2225
          %v2227 = vlaneseq
          %v2228 = vshrl.u32 %v2227, 7
          %v2229 = vsub.s32 %v2226, %v2228
          %v2230 = vrot.slane %v2208, %v2229
          %v2232 = vunpack.c.l.s4 1966171168
          %v2233 = vunpack.c.0.s8 %v2232
          %v2234 = vlaneseq
          %v2235 = vshrl.u32 %v2234, 7
          %v2236 = vsub.s32 %v2233, %v2235
          %v2237 = vrot.slane %v2209, %v2236
          %v2238 = vcombine.low %v2216, %v2223
          %v2239 = vcombine.low %v2230, %v2237
          %v2241 = vunpack.c.l.s4 1966171168
          %v2242 = vunpack.c.0.s8 %v2241
          %v2243 = vlaneseq
          %v2244 = vshrl.u32 %v2243, 7
          %v2245 = vsub.s32 %v2242, %v2244
          %v2246 = vrot.slane %v2238, %v2245
          %v2248 = vunpack.c.l.s4 1966171168
          %v2249 = vunpack.c.0.s8 %v2248
          %v2250 = vlaneseq
          %v2251 = vshrl.u32 %v2250, 7
          %v2252 = vsub.s32 %v2249, %v2251
          %v2253 = vrot.slane %v2239, %v2252
          %v2254 = vcombine.low %v2246, %v2253
          %v2255 = vcombine.low %v1217, %v1221
          %v2256 = vcombine.low %v1225, %v1229
          %v2257 = vcombine.low %v1233, %v1237
          %v2258 = vcombine.low %v1241, %v1245
          %v2260 = vunpack.c.l.s4 1966171168
          %v2261 = vunpack.c.0.s8 %v2260
          %v2262 = vlaneseq
          %v2263 = vshrl.u32 %v2262, 7
          %v2264 = vsub.s32 %v2261, %v2263
          %v2265 = vrot.slane %v2255, %v2264
          %v2267 = vunpack.c.l.s4 1966171168
          %v2268 = vunpack.c.0.s8 %v2267
          %v2269 = vlaneseq
          %v2270 = vshrl.u32 %v2269, 7
          %v2271 = vsub.s32 %v2268, %v2270
          %v2272 = vrot.slane %v2256, %v2271
          %v2274 = vunpack.c.l.s4 1966171168
          %v2275 = vunpack.c.0.s8 %v2274
          %v2276 = vlaneseq
          %v2277 = vshrl.u32 %v2276, 7
          %v2278 = vsub.s32 %v2275, %v2277
          %v2279 = vrot.slane %v2257, %v2278
          %v2281 = vunpack.c.l.s4 1966171168
          %v2282 = vunpack.c.0.s8 %v2281
          %v2283 = vlaneseq
          %v2284 = vshrl.u32 %v2283, 7
          %v2285 = vsub.s32 %v2282, %v2284
          %v2286 = vrot.slane %v2258, %v2285
          %v2287 = vcombine.low %v2265, %v2272
          %v2288 = vcombine.low %v2279, %v2286
          %v2290 = vunpack.c.l.s4 1966171168
          %v2291 = vunpack.c.0.s8 %v2290
          %v2292 = vlaneseq
          %v2293 = vshrl.u32 %v2292, 7
          %v2294 = vsub.s32 %v2291, %v2293
          %v2295 = vrot.slane %v2287, %v2294
          %v2297 = vunpack.c.l.s4 1966171168
          %v2298 = vunpack.c.0.s8 %v2297
          %v2299 = vlaneseq
          %v2300 = vshrl.u32 %v2299, 7
          %v2301 = vsub.s32 %v2298, %v2300
          %v2302 = vrot.slane %v2288, %v2301
          %v2303 = vcombine.low %v2295, %v2302
          %v2304 = vcombine.low %v1249, %v1253
          %v2305 = vcombine.low %v1257, %v1261
          %v2306 = vcombine.low %v1265, %v1269
          %v2307 = vcombine.low %v1273, %v1277
          %v2309 = vunpack.c.l.s4 1966171168
          %v2310 = vunpack.c.0.s8 %v2309
          %v2311 = vlaneseq
          %v2312 = vshrl.u32 %v2311, 7
          %v2313 = vsub.s32 %v2310, %v2312
          %v2314 = vrot.slane %v2304, %v2313
          %v2316 = vunpack.c.l.s4 1966171168
          %v2317 = vunpack.c.0.s8 %v2316
          %v2318 = vlaneseq
          %v2319 = vshrl.u32 %v2318, 7
          %v2320 = vsub.s32 %v2317, %v2319
          %v2321 = vrot.slane %v2305, %v2320
          %v2323 = vunpack.c.l.s4 1966171168
          %v2324 = vunpack.c.0.s8 %v2323
          %v2325 = vlaneseq
          %v2326 = vshrl.u32 %v2325, 7
          %v2327 = vsub.s32 %v2324, %v2326
          %v2328 = vrot.slane %v2306, %v2327
          %v2330 = vunpack.c.l.s4 1966171168
          %v2331 = vunpack.c.0.s8 %v2330
          %v2332 = vlaneseq
          %v2333 = vshrl.u32 %v2332, 7
          %v2334 = vsub.s32 %v2331, %v2333
          %v2335 = vrot.slane %v2307, %v2334
          %v2336 = vcombine.low %v2314, %v2321
          %v2337 = vcombine.low %v2328, %v2335
          %v2339 = vunpack.c.l.s4 1966171168
          %v2340 = vunpack.c.0.s8 %v2339
          %v2341 = vlaneseq
          %v2342 = vshrl.u32 %v2341, 7
          %v2343 = vsub.s32 %v2340, %v2342
          %v2344 = vrot.slane %v2336, %v2343
          %v2346 = vunpack.c.l.s4 1966171168
          %v2347 = vunpack.c.0.s8 %v2346
          %v2348 = vlaneseq
          %v2349 = vshrl.u32 %v2348, 7
          %v2350 = vsub.s32 %v2347, %v2349
          %v2351 = vrot.slane %v2337, %v2350
          %v2352 = vcombine.low %v2344, %v2351
          %v2353 = vcombine.low %v1281, %v1285
          %v2354 = vcombine.low %v1289, %v1293
          %v2355 = vcombine.low %v1297, %v1301
          %v2356 = vcombine.low %v1305, %v1309
          %v2358 = vunpack.c.l.s4 1966171168
          %v2359 = vunpack.c.0.s8 %v2358
          %v2360 = vlaneseq
          %v2361 = vshrl.u32 %v2360, 7
          %v2362 = vsub.s32 %v2359, %v2361
          %v2363 = vrot.slane %v2353, %v2362
          %v2365 = vunpack.c.l.s4 1966171168
          %v2366 = vunpack.c.0.s8 %v2365
          %v2367 = vlaneseq
          %v2368 = vshrl.u32 %v2367, 7
          %v2369 = vsub.s32 %v2366, %v2368
          %v2370 = vrot.slane %v2354, %v2369
          %v2372 = vunpack.c.l.s4 1966171168
          %v2373 = vunpack.c.0.s8 %v2372
          %v2374 = vlaneseq
          %v2375 = vshrl.u32 %v2374, 7
          %v2376 = vsub.s32 %v2373, %v2375
          %v2377 = vrot.slane %v2355, %v2376
          %v2379 = vunpack.c.l.s4 1966171168
          %v2380 = vunpack.c.0.s8 %v2379
          %v2381 = vlaneseq
          %v2382 = vshrl.u32 %v2381, 7
          %v2383 = vsub.s32 %v2380, %v2382
          %v2384 = vrot.slane %v2356, %v2383
          %v2385 = vcombine.low %v2363, %v2370
          %v2386 = vcombine.low %v2377, %v2384
          %v2388 = vunpack.c.l.s4 1966171168
          %v2389 = vunpack.c.0.s8 %v2388
          %v2390 = vlaneseq
          %v2391 = vshrl.u32 %v2390, 7
          %v2392 = vsub.s32 %v2389, %v2391
          %v2393 = vrot.slane %v2385, %v2392
          %v2395 = vunpack.c.l.s4 1966171168
          %v2396 = vunpack.c.0.s8 %v2395
          %v2397 = vlaneseq
          %v2398 = vshrl.u32 %v2397, 7
          %v2399 = vsub.s32 %v2396, %v2398
          %v2400 = vrot.slane %v2386, %v2399
          %v2401 = vcombine.low %v2393, %v2400
          %v2402 = vcombine.low %v1313, %v1317
          %v2403 = vcombine.low %v1321, %v1325
          %v2404 = vcombine.low %v1329, %v1333
          %v2405 = vcombine.low %v1337, %v1341
          %v2407 = vunpack.c.l.s4 1966171168
          %v2408 = vunpack.c.0.s8 %v2407
          %v2409 = vlaneseq
          %v2410 = vshrl.u32 %v2409, 7
          %v2411 = vsub.s32 %v2408, %v2410
          %v2412 = vrot.slane %v2402, %v2411
          %v2414 = vunpack.c.l.s4 1966171168
          %v2415 = vunpack.c.0.s8 %v2414
          %v2416 = vlaneseq
          %v2417 = vshrl.u32 %v2416, 7
          %v2418 = vsub.s32 %v2415, %v2417
          %v2419 = vrot.slane %v2403, %v2418
          %v2421 = vunpack.c.l.s4 1966171168
          %v2422 = vunpack.c.0.s8 %v2421
          %v2423 = vlaneseq
          %v2424 = vshrl.u32 %v2423, 7
          %v2425 = vsub.s32 %v2422, %v2424
          %v2426 = vrot.slane %v2404, %v2425
          %v2428 = vunpack.c.l.s4 1966171168
          %v2429 = vunpack.c.0.s8 %v2428
          %v2430 = vlaneseq
          %v2431 = vshrl.u32 %v2430, 7
          %v2432 = vsub.s32 %v2429, %v2431
          %v2433 = vrot.slane %v2405, %v2432
          %v2434 = vcombine.low %v2412, %v2419
          %v2435 = vcombine.low %v2426, %v2433
          %v2437 = vunpack.c.l.s4 1966171168
          %v2438 = vunpack.c.0.s8 %v2437
          %v2439 = vlaneseq
          %v2440 = vshrl.u32 %v2439, 7
          %v2441 = vsub.s32 %v2438, %v2440
          %v2442 = vrot.slane %v2434, %v2441
          %v2444 = vunpack.c.l.s4 1966171168
          %v2445 = vunpack.c.0.s8 %v2444
          %v2446 = vlaneseq
          %v2447 = vshrl.u32 %v2446, 7
          %v2448 = vsub.s32 %v2445, %v2447
          %v2449 = vrot.slane %v2435, %v2448
          %v2450 = vcombine.low %v2442, %v2449
          %v2451 = vcombine.low %v1345, %v1349
          %v2452 = vcombine.low %v1353, %v1357
          %v2453 = vcombine.low %v1361, %v1365
          %v2454 = vcombine.low %v1369, %v1373
          %v2456 = vunpack.c.l.s4 1966171168
          %v2457 = vunpack.c.0.s8 %v2456
          %v2458 = vlaneseq
          %v2459 = vshrl.u32 %v2458, 7
          %v2460 = vsub.s32 %v2457, %v2459
          %v2461 = vrot.slane %v2451, %v2460
          %v2463 = vunpack.c.l.s4 1966171168
          %v2464 = vunpack.c.0.s8 %v2463
          %v2465 = vlaneseq
          %v2466 = vshrl.u32 %v2465, 7
          %v2467 = vsub.s32 %v2464, %v2466
          %v2468 = vrot.slane %v2452, %v2467
          %v2470 = vunpack.c.l.s4 1966171168
          %v2471 = vunpack.c.0.s8 %v2470
          %v2472 = vlaneseq
          %v2473 = vshrl.u32 %v2472, 7
          %v2474 = vsub.s32 %v2471, %v2473
          %v2475 = vrot.slane %v2453, %v2474
          %v2477 = vunpack.c.l.s4 1966171168
          %v2478 = vunpack.c.0.s8 %v2477
          %v2479 = vlaneseq
          %v2480 = vshrl.u32 %v2479, 7
          %v2481 = vsub.s32 %v2478, %v2480
          %v2482 = vrot.slane %v2454, %v2481
          %v2483 = vcombine.low %v2461, %v2468
          %v2484 = vcombine.low %v2475, %v2482
          %v2486 = vunpack.c.l.s4 1966171168
          %v2487 = vunpack.c.0.s8 %v2486
          %v2488 = vlaneseq
          %v2489 = vshrl.u32 %v2488, 7
          %v2490 = vsub.s32 %v2487, %v2489
          %v2491 = vrot.slane %v2483, %v2490
          %v2493 = vunpack.c.l.s4 1966171168
          %v2494 = vunpack.c.0.s8 %v2493
          %v2495 = vlaneseq
          %v2496 = vshrl.u32 %v2495, 7
          %v2497 = vsub.s32 %v2494, %v2496
          %v2498 = vrot.slane %v2484, %v2497
          %v2499 = vcombine.low %v2491, %v2498
          %v2500 = vcombine.low %v1377, %v1381
          %v2501 = vcombine.low %v1385, %v1389
          %v2502 = vcombine.low %v1393, %v1397
          %v2503 = vcombine.low %v1401, %v1405
          %v2505 = vunpack.c.l.s4 1966171168
          %v2506 = vunpack.c.0.s8 %v2505
          %v2507 = vlaneseq
          %v2508 = vshrl.u32 %v2507, 7
          %v2509 = vsub.s32 %v2506, %v2508
          %v2510 = vrot.slane %v2500, %v2509
          %v2512 = vunpack.c.l.s4 1966171168
          %v2513 = vunpack.c.0.s8 %v2512
          %v2514 = vlaneseq
          %v2515 = vshrl.u32 %v2514, 7
          %v2516 = vsub.s32 %v2513, %v2515
          %v2517 = vrot.slane %v2501, %v2516
          %v2519 = vunpack.c.l.s4 1966171168
          %v2520 = vunpack.c.0.s8 %v2519
          %v2521 = vlaneseq
          %v2522 = vshrl.u32 %v2521, 7
          %v2523 = vsub.s32 %v2520, %v2522
          %v2524 = vrot.slane %v2502, %v2523
          %v2526 = vunpack.c.l.s4 1966171168
          %v2527 = vunpack.c.0.s8 %v2526
          %v2528 = vlaneseq
          %v2529 = vshrl.u32 %v2528, 7
          %v2530 = vsub.s32 %v2527, %v2529
          %v2531 = vrot.slane %v2503, %v2530
          %v2532 = vcombine.low %v2510, %v2517
          %v2533 = vcombine.low %v2524, %v2531
          %v2535 = vunpack.c.l.s4 1966171168
          %v2536 = vunpack.c.0.s8 %v2535
          %v2537 = vlaneseq
          %v2538 = vshrl.u32 %v2537, 7
          %v2539 = vsub.s32 %v2536, %v2538
          %v2540 = vrot.slane %v2532, %v2539
          %v2542 = vunpack.c.l.s4 1966171168
          %v2543 = vunpack.c.0.s8 %v2542
          %v2544 = vlaneseq
          %v2545 = vshrl.u32 %v2544, 7
          %v2546 = vsub.s32 %v2543, %v2545
          %v2547 = vrot.slane %v2533, %v2546
          %v2548 = vcombine.low %v2540, %v2547
          %v2549 = vcombine.low %v1409, %v1413
          %v2550 = vcombine.low %v1417, %v1421
          %v2551 = vcombine.low %v1425, %v1429
          %v2552 = vcombine.low %v1433, %v1437
          %v2554 = vunpack.c.l.s4 1966171168
          %v2555 = vunpack.c.0.s8 %v2554
          %v2556 = vlaneseq
          %v2557 = vshrl.u32 %v2556, 7
          %v2558 = vsub.s32 %v2555, %v2557
          %v2559 = vrot.slane %v2549, %v2558
          %v2561 = vunpack.c.l.s4 1966171168
          %v2562 = vunpack.c.0.s8 %v2561
          %v2563 = vlaneseq
          %v2564 = vshrl.u32 %v2563, 7
          %v2565 = vsub.s32 %v2562, %v2564
          %v2566 = vrot.slane %v2550, %v2565
          %v2568 = vunpack.c.l.s4 1966171168
          %v2569 = vunpack.c.0.s8 %v2568
          %v2570 = vlaneseq
          %v2571 = vshrl.u32 %v2570, 7
          %v2572 = vsub.s32 %v2569, %v2571
          %v2573 = vrot.slane %v2551, %v2572
          %v2575 = vunpack.c.l.s4 1966171168
          %v2576 = vunpack.c.0.s8 %v2575
          %v2577 = vlaneseq
          %v2578 = vshrl.u32 %v2577, 7
          %v2579 = vsub.s32 %v2576, %v2578
          %v2580 = vrot.slane %v2552, %v2579
          %v2581 = vcombine.low %v2559, %v2566
          %v2582 = vcombine.low %v2573, %v2580
          %v2584 = vunpack.c.l.s4 1966171168
          %v2585 = vunpack.c.0.s8 %v2584
          %v2586 = vlaneseq
          %v2587 = vshrl.u32 %v2586, 7
          %v2588 = vsub.s32 %v2585, %v2587
          %v2589 = vrot.slane %v2581, %v2588
          %v2591 = vunpack.c.l.s4 1966171168
          %v2592 = vunpack.c.0.s8 %v2591
          %v2593 = vlaneseq
          %v2594 = vshrl.u32 %v2593, 7
          %v2595 = vsub.s32 %v2592, %v2594
          %v2596 = vrot.slane %v2582, %v2595
          %v2597 = vcombine.low %v2589, %v2596
          %v2598 = vcombine.low %v1441, %v1445
          %v2599 = vcombine.low %v1449, %v1453
          %v2600 = vcombine.low %v1457, %v1461
          %v2601 = vcombine.low %v1465, %v1469
          %v2603 = vunpack.c.l.s4 1966171168
          %v2604 = vunpack.c.0.s8 %v2603
          %v2605 = vlaneseq
          %v2606 = vshrl.u32 %v2605, 7
          %v2607 = vsub.s32 %v2604, %v2606
          %v2608 = vrot.slane %v2598, %v2607
          %v2610 = vunpack.c.l.s4 1966171168
          %v2611 = vunpack.c.0.s8 %v2610
          %v2612 = vlaneseq
          %v2613 = vshrl.u32 %v2612, 7
          %v2614 = vsub.s32 %v2611, %v2613
          %v2615 = vrot.slane %v2599, %v2614
          %v2617 = vunpack.c.l.s4 1966171168
          %v2618 = vunpack.c.0.s8 %v2617
          %v2619 = vlaneseq
          %v2620 = vshrl.u32 %v2619, 7
          %v2621 = vsub.s32 %v2618, %v2620
          %v2622 = vrot.slane %v2600, %v2621
          %v2624 = vunpack.c.l.s4 1966171168
          %v2625 = vunpack.c.0.s8 %v2624
          %v2626 = vlaneseq
          %v2627 = vshrl.u32 %v2626, 7
          %v2628 = vsub.s32 %v2625, %v2627
          %v2629 = vrot.slane %v2601, %v2628
          %v2630 = vcombine.low %v2608, %v2615
          %v2631 = vcombine.low %v2622, %v2629
          %v2633 = vunpack.c.l.s4 1966171168
          %v2634 = vunpack.c.0.s8 %v2633
          %v2635 = vlaneseq
          %v2636 = vshrl.u32 %v2635, 7
          %v2637 = vsub.s32 %v2634, %v2636
          %v2638 = vrot.slane %v2630, %v2637
          %v2640 = vunpack.c.l.s4 1966171168
          %v2641 = vunpack.c.0.s8 %v2640
          %v2642 = vlaneseq
          %v2643 = vshrl.u32 %v2642, 7
          %v2644 = vsub.s32 %v2641, %v2643
          %v2645 = vrot.slane %v2631, %v2644
          %v2646 = vcombine.low %v2638, %v2645
          %v2647 = vcombine.low %v1473, %v1477
          %v2648 = vcombine.low %v1481, %v1485
          %v2649 = vcombine.low %v1489, %v1493
          %v2650 = vcombine.low %v1497, %v1501
          %v2652 = vunpack.c.l.s4 1966171168
          %v2653 = vunpack.c.0.s8 %v2652
          %v2654 = vlaneseq
          %v2655 = vshrl.u32 %v2654, 7
          %v2656 = vsub.s32 %v2653, %v2655
          %v2657 = vrot.slane %v2647, %v2656
          %v2659 = vunpack.c.l.s4 1966171168
          %v2660 = vunpack.c.0.s8 %v2659
          %v2661 = vlaneseq
          %v2662 = vshrl.u32 %v2661, 7
          %v2663 = vsub.s32 %v2660, %v2662
          %v2664 = vrot.slane %v2648, %v2663
          %v2666 = vunpack.c.l.s4 1966171168
          %v2667 = vunpack.c.0.s8 %v2666
          %v2668 = vlaneseq
          %v2669 = vshrl.u32 %v2668, 7
          %v2670 = vsub.s32 %v2667, %v2669
          %v2671 = vrot.slane %v2649, %v2670
          %v2673 = vunpack.c.l.s4 1966171168
          %v2674 = vunpack.c.0.s8 %v2673
          %v2675 = vlaneseq
          %v2676 = vshrl.u32 %v2675, 7
          %v2677 = vsub.s32 %v2674, %v2676
          %v2678 = vrot.slane %v2650, %v2677
          %v2679 = vcombine.low %v2657, %v2664
          %v2680 = vcombine.low %v2671, %v2678
          %v2682 = vunpack.c.l.s4 1966171168
          %v2683 = vunpack.c.0.s8 %v2682
          %v2684 = vlaneseq
          %v2685 = vshrl.u32 %v2684, 7
          %v2686 = vsub.s32 %v2683, %v2685
          %v2687 = vrot.slane %v2679, %v2686
          %v2689 = vunpack.c.l.s4 1966171168
          %v2690 = vunpack.c.0.s8 %v2689
          %v2691 = vlaneseq
          %v2692 = vshrl.u32 %v2691, 7
          %v2693 = vsub.s32 %v2690, %v2692
          %v2694 = vrot.slane %v2680, %v2693
          %v2695 = vcombine.low %v2687, %v2694
          %v2696 = vcombine.low %v1505, %v1509
          %v2697 = vcombine.low %v1513, %v1517
          %v2698 = vcombine.low %v1521, %v1525
          %v2699 = vcombine.low %v1529, %v1533
          %v2701 = vunpack.c.l.s4 1966171168
          %v2702 = vunpack.c.0.s8 %v2701
          %v2703 = vlaneseq
          %v2704 = vshrl.u32 %v2703, 7
          %v2705 = vsub.s32 %v2702, %v2704
          %v2706 = vrot.slane %v2696, %v2705
          %v2708 = vunpack.c.l.s4 1966171168
          %v2709 = vunpack.c.0.s8 %v2708
          %v2710 = vlaneseq
          %v2711 = vshrl.u32 %v2710, 7
          %v2712 = vsub.s32 %v2709, %v2711
          %v2713 = vrot.slane %v2697, %v2712
          %v2715 = vunpack.c.l.s4 1966171168
          %v2716 = vunpack.c.0.s8 %v2715
          %v2717 = vlaneseq
          %v2718 = vshrl.u32 %v2717, 7
          %v2719 = vsub.s32 %v2716, %v2718
          %v2720 = vrot.slane %v2698, %v2719
          %v2722 = vunpack.c.l.s4 1966171168
          %v2723 = vunpack.c.0.s8 %v2722
          %v2724 = vlaneseq
          %v2725 = vshrl.u32 %v2724, 7
          %v2726 = vsub.s32 %v2723, %v2725
          %v2727 = vrot.slane %v2699, %v2726
          %v2728 = vcombine.low %v2706, %v2713
          %v2729 = vcombine.low %v2720, %v2727
          %v2731 = vunpack.c.l.s4 1966171168
          %v2732 = vunpack.c.0.s8 %v2731
          %v2733 = vlaneseq
          %v2734 = vshrl.u32 %v2733, 7
          %v2735 = vsub.s32 %v2732, %v2734
          %v2736 = vrot.slane %v2728, %v2735
          %v2738 = vunpack.c.l.s4 1966171168
          %v2739 = vunpack.c.0.s8 %v2738
          %v2740 = vlaneseq
          %v2741 = vshrl.u32 %v2740, 7
          %v2742 = vsub.s32 %v2739, %v2741
          %v2743 = vrot.slane %v2729, %v2742
          %v2744 = vcombine.low %v2736, %v2743
          %v2745 = vcombine.low %v1537, %v1541
          %v2746 = vcombine.low %v1545, %v1549
          %v2747 = vcombine.low %v1553, %v1557
          %v2748 = vcombine.low %v1561, %v1565
          %v2750 = vunpack.c.l.s4 1966171168
          %v2751 = vunpack.c.0.s8 %v2750
          %v2752 = vlaneseq
          %v2753 = vshrl.u32 %v2752, 7
          %v2754 = vsub.s32 %v2751, %v2753
          %v2755 = vrot.slane %v2745, %v2754
          %v2757 = vunpack.c.l.s4 1966171168
          %v2758 = vunpack.c.0.s8 %v2757
          %v2759 = vlaneseq
          %v2760 = vshrl.u32 %v2759, 7
          %v2761 = vsub.s32 %v2758, %v2760
          %v2762 = vrot.slane %v2746, %v2761
          %v2764 = vunpack.c.l.s4 1966171168
          %v2765 = vunpack.c.0.s8 %v2764
          %v2766 = vlaneseq
          %v2767 = vshrl.u32 %v2766, 7
          %v2768 = vsub.s32 %v2765, %v2767
          %v2769 = vrot.slane %v2747, %v2768
          %v2771 = vunpack.c.l.s4 1966171168
          %v2772 = vunpack.c.0.s8 %v2771
          %v2773 = vlaneseq
          %v2774 = vshrl.u32 %v2773, 7
          %v2775 = vsub.s32 %v2772, %v2774
          %v2776 = vrot.slane %v2748, %v2775
          %v2777 = vcombine.low %v2755, %v2762
          %v2778 = vcombine.low %v2769, %v2776
          %v2780 = vunpack.c.l.s4 1966171168
          %v2781 = vunpack.c.0.s8 %v2780
          %v2782 = vlaneseq
          %v2783 = vshrl.u32 %v2782, 7
          %v2784 = vsub.s32 %v2781, %v2783
          %v2785 = vrot.slane %v2777, %v2784
          %v2787 = vunpack.c.l.s4 1966171168
          %v2788 = vunpack.c.0.s8 %v2787
          %v2789 = vlaneseq
          %v2790 = vshrl.u32 %v2789, 7
          %v2791 = vsub.s32 %v2788, %v2790
          %v2792 = vrot.slane %v2778, %v2791
          %v2793 = vcombine.low %v2785, %v2792
          %v2794 = vcombine.low %v1569, %v1573
          %v2795 = vcombine.low %v1577, %v1581
          %v2796 = vcombine.low %v1585, %v1589
          %v2797 = vcombine.low %v1593, %v1597
          %v2799 = vunpack.c.l.s4 1966171168
          %v2800 = vunpack.c.0.s8 %v2799
          %v2801 = vlaneseq
          %v2802 = vshrl.u32 %v2801, 7
          %v2803 = vsub.s32 %v2800, %v2802
          %v2804 = vrot.slane %v2794, %v2803
          %v2806 = vunpack.c.l.s4 1966171168
          %v2807 = vunpack.c.0.s8 %v2806
          %v2808 = vlaneseq
          %v2809 = vshrl.u32 %v2808, 7
          %v2810 = vsub.s32 %v2807, %v2809
          %v2811 = vrot.slane %v2795, %v2810
          %v2813 = vunpack.c.l.s4 1966171168
          %v2814 = vunpack.c.0.s8 %v2813
          %v2815 = vlaneseq
          %v2816 = vshrl.u32 %v2815, 7
          %v2817 = vsub.s32 %v2814, %v2816
          %v2818 = vrot.slane %v2796, %v2817
          %v2820 = vunpack.c.l.s4 1966171168
          %v2821 = vunpack.c.0.s8 %v2820
          %v2822 = vlaneseq
          %v2823 = vshrl.u32 %v2822, 7
          %v2824 = vsub.s32 %v2821, %v2823
          %v2825 = vrot.slane %v2797, %v2824
          %v2826 = vcombine.low %v2804, %v2811
          %v2827 = vcombine.low %v2818, %v2825
          %v2829 = vunpack.c.l.s4 1966171168
          %v2830 = vunpack.c.0.s8 %v2829
          %v2831 = vlaneseq
          %v2832 = vshrl.u32 %v2831, 7
          %v2833 = vsub.s32 %v2830, %v2832
          %v2834 = vrot.slane %v2826, %v2833
          %v2836 = vunpack.c.l.s4 1966171168
          %v2837 = vunpack.c.0.s8 %v2836
          %v2838 = vlaneseq
          %v2839 = vshrl.u32 %v2838, 7
          %v2840 = vsub.s32 %v2837, %v2839
          %v2841 = vrot.slane %v2827, %v2840
          %v2842 = vcombine.low %v2834, %v2841
          %v2843 = vcombine.low %v1601, %v1605
          %v2844 = vcombine.low %v1609, %v1613
          %v2845 = vcombine.low %v1617, %v1621
          %v2846 = vcombine.low %v1625, %v1629
          %v2848 = vunpack.c.l.s4 1966171168
          %v2849 = vunpack.c.0.s8 %v2848
          %v2850 = vlaneseq
          %v2851 = vshrl.u32 %v2850, 7
          %v2852 = vsub.s32 %v2849, %v2851
          %v2853 = vrot.slane %v2843, %v2852
          %v2855 = vunpack.c.l.s4 1966171168
          %v2856 = vunpack.c.0.s8 %v2855
          %v2857 = vlaneseq
          %v2858 = vshrl.u32 %v2857, 7
          %v2859 = vsub.s32 %v2856, %v2858
          %v2860 = vrot.slane %v2844, %v2859
          %v2862 = vunpack.c.l.s4 1966171168
          %v2863 = vunpack.c.0.s8 %v2862
          %v2864 = vlaneseq
          %v2865 = vshrl.u32 %v2864, 7
          %v2866 = vsub.s32 %v2863, %v2865
          %v2867 = vrot.slane %v2845, %v2866
          %v2869 = vunpack.c.l.s4 1966171168
          %v2870 = vunpack.c.0.s8 %v2869
          %v2871 = vlaneseq
          %v2872 = vshrl.u32 %v2871, 7
          %v2873 = vsub.s32 %v2870, %v2872
          %v2874 = vrot.slane %v2846, %v2873
          %v2875 = vcombine.low %v2853, %v2860
          %v2876 = vcombine.low %v2867, %v2874
          %v2878 = vunpack.c.l.s4 1966171168
          %v2879 = vunpack.c.0.s8 %v2878
          %v2880 = vlaneseq
          %v2881 = vshrl.u32 %v2880, 7
          %v2882 = vsub.s32 %v2879, %v2881
          %v2883 = vrot.slane %v2875, %v2882
          %v2885 = vunpack.c.l.s4 1966171168
          %v2886 = vunpack.c.0.s8 %v2885
          %v2887 = vlaneseq
          %v2888 = vshrl.u32 %v2887, 7
          %v2889 = vsub.s32 %v2886, %v2888
          %v2890 = vrot.slane %v2876, %v2889
          %v2891 = vcombine.low %v2883, %v2890
          %v2892 = vcombine.low %v1633, %v1637
          %v2893 = vcombine.low %v1641, %v1645
          %v2894 = vcombine.low %v1649, %v1653
          %v2895 = vcombine.low %v1657, %v1661
          %v2897 = vunpack.c.l.s4 1966171168
          %v2898 = vunpack.c.0.s8 %v2897
          %v2899 = vlaneseq
          %v2900 = vshrl.u32 %v2899, 7
          %v2901 = vsub.s32 %v2898, %v2900
          %v2902 = vrot.slane %v2892, %v2901
          %v2904 = vunpack.c.l.s4 1966171168
          %v2905 = vunpack.c.0.s8 %v2904
          %v2906 = vlaneseq
          %v2907 = vshrl.u32 %v2906, 7
          %v2908 = vsub.s32 %v2905, %v2907
          %v2909 = vrot.slane %v2893, %v2908
          %v2911 = vunpack.c.l.s4 1966171168
          %v2912 = vunpack.c.0.s8 %v2911
          %v2913 = vlaneseq
          %v2914 = vshrl.u32 %v2913, 7
          %v2915 = vsub.s32 %v2912, %v2914
          %v2916 = vrot.slane %v2894, %v2915
          %v2918 = vunpack.c.l.s4 1966171168
          %v2919 = vunpack.c.0.s8 %v2918
          %v2920 = vlaneseq
          %v2921 = vshrl.u32 %v2920, 7
          %v2922 = vsub.s32 %v2919, %v2921
          %v2923 = vrot.slane %v2895, %v2922
          %v2924 = vcombine.low %v2902, %v2909
          %v2925 = vcombine.low %v2916, %v2923
          %v2927 = vunpack.c.l.s4 1966171168
          %v2928 = vunpack.c.0.s8 %v2927
          %v2929 = vlaneseq
          %v2930 = vshrl.u32 %v2929, 7
          %v2931 = vsub.s32 %v2928, %v2930
          %v2932 = vrot.slane %v2924, %v2931
          %v2934 = vunpack.c.l.s4 1966171168
          %v2935 = vunpack.c.0.s8 %v2934
          %v2936 = vlaneseq
          %v2937 = vshrl.u32 %v2936, 7
          %v2938 = vsub.s32 %v2935, %v2937
          %v2939 = vrot.slane %v2925, %v2938
          %v2940 = vcombine.low %v2932, %v2939
          %v2941 = vcombine.low %v1665, %v1669
          %v2942 = vcombine.low %v1673, %v1677
          %v2943 = vcombine.low %v1681, %v1685
          %v2944 = vcombine.low %v1689, %v1693
          %v2946 = vunpack.c.l.s4 1966171168
          %v2947 = vunpack.c.0.s8 %v2946
          %v2948 = vlaneseq
          %v2949 = vshrl.u32 %v2948, 7
          %v2950 = vsub.s32 %v2947, %v2949
          %v2951 = vrot.slane %v2941, %v2950
          %v2953 = vunpack.c.l.s4 1966171168
          %v2954 = vunpack.c.0.s8 %v2953
          %v2955 = vlaneseq
          %v2956 = vshrl.u32 %v2955, 7
          %v2957 = vsub.s32 %v2954, %v2956
          %v2958 = vrot.slane %v2942, %v2957
          %v2960 = vunpack.c.l.s4 1966171168
          %v2961 = vunpack.c.0.s8 %v2960
          %v2962 = vlaneseq
          %v2963 = vshrl.u32 %v2962, 7
          %v2964 = vsub.s32 %v2961, %v2963
          %v2965 = vrot.slane %v2943, %v2964
          %v2967 = vunpack.c.l.s4 1966171168
          %v2968 = vunpack.c.0.s8 %v2967
          %v2969 = vlaneseq
          %v2970 = vshrl.u32 %v2969, 7
          %v2971 = vsub.s32 %v2968, %v2970
          %v2972 = vrot.slane %v2944, %v2971
          %v2973 = vcombine.low %v2951, %v2958
          %v2974 = vcombine.low %v2965, %v2972
          %v2976 = vunpack.c.l.s4 1966171168
          %v2977 = vunpack.c.0.s8 %v2976
          %v2978 = vlaneseq
          %v2979 = vshrl.u32 %v2978, 7
          %v2980 = vsub.s32 %v2977, %v2979
          %v2981 = vrot.slane %v2973, %v2980
          %v2983 = vunpack.c.l.s4 1966171168
          %v2984 = vunpack.c.0.s8 %v2983
          %v2985 = vlaneseq
          %v2986 = vshrl.u32 %v2985, 7
          %v2987 = vsub.s32 %v2984, %v2986
          %v2988 = vrot.slane %v2974, %v2987
          %v2989 = vcombine.low %v2981, %v2988
          %v2990 = vcombine.low %v1697, %v1701
          %v2991 = vcombine.low %v1705, %v1709
          %v2992 = vcombine.low %v1713, %v1717
          %v2993 = vcombine.low %v1721, %v1725
          %v2995 = vunpack.c.l.s4 1966171168
          %v2996 = vunpack.c.0.s8 %v2995
          %v2997 = vlaneseq
          %v2998 = vshrl.u32 %v2997, 7
          %v2999 = vsub.s32 %v2996, %v2998
          %v3000 = vrot.slane %v2990, %v2999
          %v3002 = vunpack.c.l.s4 1966171168
          %v3003 = vunpack.c.0.s8 %v3002
          %v3004 = vlaneseq
          %v3005 = vshrl.u32 %v3004, 7
          %v3006 = vsub.s32 %v3003, %v3005
          %v3007 = vrot.slane %v2991, %v3006
          %v3009 = vunpack.c.l.s4 1966171168
          %v3010 = vunpack.c.0.s8 %v3009
          %v3011 = vlaneseq
          %v3012 = vshrl.u32 %v3011, 7
          %v3013 = vsub.s32 %v3010, %v3012
          %v3014 = vrot.slane %v2992, %v3013
          %v3016 = vunpack.c.l.s4 1966171168
          %v3017 = vunpack.c.0.s8 %v3016
          %v3018 = vlaneseq
          %v3019 = vshrl.u32 %v3018, 7
          %v3020 = vsub.s32 %v3017, %v3019
          %v3021 = vrot.slane %v2993, %v3020
          %v3022 = vcombine.low %v3000, %v3007
          %v3023 = vcombine.low %v3014, %v3021
          %v3025 = vunpack.c.l.s4 1966171168
          %v3026 = vunpack.c.0.s8 %v3025
          %v3027 = vlaneseq
          %v3028 = vshrl.u32 %v3027, 7
          %v3029 = vsub.s32 %v3026, %v3028
          %v3030 = vrot.slane %v3022, %v3029
          %v3032 = vunpack.c.l.s4 1966171168
          %v3033 = vunpack.c.0.s8 %v3032
          %v3034 = vlaneseq
          %v3035 = vshrl.u32 %v3034, 7
          %v3036 = vsub.s32 %v3033, %v3035
          %v3037 = vrot.slane %v3023, %v3036
          %v3038 = vcombine.low %v3030, %v3037
          %v3039 = vcombine.low %v1729, %v1733
          %v3040 = vcombine.low %v1737, %v1741
          %v3041 = vcombine.low %v1745, %v1749
          %v3042 = vcombine.low %v1753, %v1757
          %v3044 = vunpack.c.l.s4 1966171168
          %v3045 = vunpack.c.0.s8 %v3044
          %v3046 = vlaneseq
          %v3047 = vshrl.u32 %v3046, 7
          %v3048 = vsub.s32 %v3045, %v3047
          %v3049 = vrot.slane %v3039, %v3048
          %v3051 = vunpack.c.l.s4 1966171168
          %v3052 = vunpack.c.0.s8 %v3051
          %v3053 = vlaneseq
          %v3054 = vshrl.u32 %v3053, 7
          %v3055 = vsub.s32 %v3052, %v3054
          %v3056 = vrot.slane %v3040, %v3055
          %v3058 = vunpack.c.l.s4 1966171168
          %v3059 = vunpack.c.0.s8 %v3058
          %v3060 = vlaneseq
          %v3061 = vshrl.u32 %v3060, 7
          %v3062 = vsub.s32 %v3059, %v3061
          %v3063 = vrot.slane %v3041, %v3062
          %v3065 = vunpack.c.l.s4 1966171168
          %v3066 = vunpack.c.0.s8 %v3065
          %v3067 = vlaneseq
          %v3068 = vshrl.u32 %v3067, 7
          %v3069 = vsub.s32 %v3066, %v3068
          %v3070 = vrot.slane %v3042, %v3069
          %v3071 = vcombine.low %v3049, %v3056
          %v3072 = vcombine.low %v3063, %v3070
          %v3074 = vunpack.c.l.s4 1966171168
          %v3075 = vunpack.c.0.s8 %v3074
          %v3076 = vlaneseq
          %v3077 = vshrl.u32 %v3076, 7
          %v3078 = vsub.s32 %v3075, %v3077
          %v3079 = vrot.slane %v3071, %v3078
          %v3081 = vunpack.c.l.s4 1966171168
          %v3082 = vunpack.c.0.s8 %v3081
          %v3083 = vlaneseq
          %v3084 = vshrl.u32 %v3083, 7
          %v3085 = vsub.s32 %v3082, %v3084
          %v3086 = vrot.slane %v3072, %v3085
          %v3087 = vcombine.low %v3079, %v3086
          %v3088 = vcombine.low %v1761, %v1765
          %v3089 = vcombine.low %v1769, %v1773
          %v3090 = vcombine.low %v1777, %v1781
          %v3091 = vcombine.low %v1785, %v1789
          %v3093 = vunpack.c.l.s4 1966171168
          %v3094 = vunpack.c.0.s8 %v3093
          %v3095 = vlaneseq
          %v3096 = vshrl.u32 %v3095, 7
          %v3097 = vsub.s32 %v3094, %v3096
          %v3098 = vrot.slane %v3088, %v3097
          %v3100 = vunpack.c.l.s4 1966171168
          %v3101 = vunpack.c.0.s8 %v3100
          %v3102 = vlaneseq
          %v3103 = vshrl.u32 %v3102, 7
          %v3104 = vsub.s32 %v3101, %v3103
          %v3105 = vrot.slane %v3089, %v3104
          %v3107 = vunpack.c.l.s4 1966171168
          %v3108 = vunpack.c.0.s8 %v3107
          %v3109 = vlaneseq
          %v3110 = vshrl.u32 %v3109, 7
          %v3111 = vsub.s32 %v3108, %v3110
          %v3112 = vrot.slane %v3090, %v3111
          %v3114 = vunpack.c.l.s4 1966171168
          %v3115 = vunpack.c.0.s8 %v3114
          %v3116 = vlaneseq
          %v3117 = vshrl.u32 %v3116, 7
          %v3118 = vsub.s32 %v3115, %v3117
          %v3119 = vrot.slane %v3091, %v3118
          %v3120 = vcombine.low %v3098, %v3105
          %v3121 = vcombine.low %v3112, %v3119
          %v3123 = vunpack.c.l.s4 1966171168
          %v3124 = vunpack.c.0.s8 %v3123
          %v3125 = vlaneseq
          %v3126 = vshrl.u32 %v3125, 7
          %v3127 = vsub.s32 %v3124, %v3126
          %v3128 = vrot.slane %v3120, %v3127
          %v3130 = vunpack.c.l.s4 1966171168
          %v3131 = vunpack.c.0.s8 %v3130
          %v3132 = vlaneseq
          %v3133 = vshrl.u32 %v3132, 7
          %v3134 = vsub.s32 %v3131, %v3133
          %v3135 = vrot.slane %v3121, %v3134
          %v3136 = vcombine.low %v3128, %v3135
          %v3137 = vcombine.low %v1793, %v1797
          %v3138 = vcombine.low %v1801, %v1805
          %v3139 = vcombine.low %v1809, %v1813
          %v3140 = vcombine.low %v1817, %v1821
          %v3142 = vunpack.c.l.s4 1966171168
          %v3143 = vunpack.c.0.s8 %v3142
          %v3144 = vlaneseq
          %v3145 = vshrl.u32 %v3144, 7
          %v3146 = vsub.s32 %v3143, %v3145
          %v3147 = vrot.slane %v3137, %v3146
          %v3149 = vunpack.c.l.s4 1966171168
          %v3150 = vunpack.c.0.s8 %v3149
          %v3151 = vlaneseq
          %v3152 = vshrl.u32 %v3151, 7
          %v3153 = vsub.s32 %v3150, %v3152
          %v3154 = vrot.slane %v3138, %v3153
          %v3156 = vunpack.c.l.s4 1966171168
          %v3157 = vunpack.c.0.s8 %v3156
          %v3158 = vlaneseq
          %v3159 = vshrl.u32 %v3158, 7
          %v3160 = vsub.s32 %v3157, %v3159
          %v3161 = vrot.slane %v3139, %v3160
          %v3163 = vunpack.c.l.s4 1966171168
          %v3164 = vunpack.c.0.s8 %v3163
          %v3165 = vlaneseq
          %v3166 = vshrl.u32 %v3165, 7
          %v3167 = vsub.s32 %v3164, %v3166
          %v3168 = vrot.slane %v3140, %v3167
          %v3169 = vcombine.low %v3147, %v3154
          %v3170 = vcombine.low %v3161, %v3168
          %v3172 = vunpack.c.l.s4 1966171168
          %v3173 = vunpack.c.0.s8 %v3172
          %v3174 = vlaneseq
          %v3175 = vshrl.u32 %v3174, 7
          %v3176 = vsub.s32 %v3173, %v3175
          %v3177 = vrot.slane %v3169, %v3176
          %v3179 = vunpack.c.l.s4 1966171168
          %v3180 = vunpack.c.0.s8 %v3179
          %v3181 = vlaneseq
          %v3182 = vshrl.u32 %v3181, 7
          %v3183 = vsub.s32 %v3180, %v3182
          %v3184 = vrot.slane %v3170, %v3183
          %v3185 = vcombine.low %v3177, %v3184
          %v3186 = vcombine.low %v1825, %v1829
          %v3187 = vcombine.low %v1833, %v1837
          %v3188 = vcombine.low %v1841, %v1845
          %v3189 = vcombine.low %v1849, %v1853
          %v3191 = vunpack.c.l.s4 1966171168
          %v3192 = vunpack.c.0.s8 %v3191
          %v3193 = vlaneseq
          %v3194 = vshrl.u32 %v3193, 7
          %v3195 = vsub.s32 %v3192, %v3194
          %v3196 = vrot.slane %v3186, %v3195
          %v3198 = vunpack.c.l.s4 1966171168
          %v3199 = vunpack.c.0.s8 %v3198
          %v3200 = vlaneseq
          %v3201 = vshrl.u32 %v3200, 7
          %v3202 = vsub.s32 %v3199, %v3201
          %v3203 = vrot.slane %v3187, %v3202
          %v3205 = vunpack.c.l.s4 1966171168
          %v3206 = vunpack.c.0.s8 %v3205
          %v3207 = vlaneseq
          %v3208 = vshrl.u32 %v3207, 7
          %v3209 = vsub.s32 %v3206, %v3208
          %v3210 = vrot.slane %v3188, %v3209
          %v3212 = vunpack.c.l.s4 1966171168
          %v3213 = vunpack.c.0.s8 %v3212
          %v3214 = vlaneseq
          %v3215 = vshrl.u32 %v3214, 7
          %v3216 = vsub.s32 %v3213, %v3215
          %v3217 = vrot.slane %v3189, %v3216
          %v3218 = vcombine.low %v3196, %v3203
          %v3219 = vcombine.low %v3210, %v3217
          %v3221 = vunpack.c.l.s4 1966171168
          %v3222 = vunpack.c.0.s8 %v3221
          %v3223 = vlaneseq
          %v3224 = vshrl.u32 %v3223, 7
          %v3225 = vsub.s32 %v3222, %v3224
          %v3226 = vrot.slane %v3218, %v3225
          %v3228 = vunpack.c.l.s4 1966171168
          %v3229 = vunpack.c.0.s8 %v3228
          %v3230 = vlaneseq
          %v3231 = vshrl.u32 %v3230, 7
          %v3232 = vsub.s32 %v3229, %v3231
          %v3233 = vrot.slane %v3219, %v3232
          %v3234 = vcombine.low %v3226, %v3233
          %v3235 = vcombine.low %v1857, %v1861
          %v3236 = vcombine.low %v1865, %v1869
          %v3237 = vcombine.low %v1873, %v1877
          %v3238 = vcombine.low %v1881, %v1885
          %v3240 = vunpack.c.l.s4 1966171168
          %v3241 = vunpack.c.0.s8 %v3240
          %v3242 = vlaneseq
          %v3243 = vshrl.u32 %v3242, 7
          %v3244 = vsub.s32 %v3241, %v3243
          %v3245 = vrot.slane %v3235, %v3244
          %v3247 = vunpack.c.l.s4 1966171168
          %v3248 = vunpack.c.0.s8 %v3247
          %v3249 = vlaneseq
          %v3250 = vshrl.u32 %v3249, 7
          %v3251 = vsub.s32 %v3248, %v3250
          %v3252 = vrot.slane %v3236, %v3251
          %v3254 = vunpack.c.l.s4 1966171168
          %v3255 = vunpack.c.0.s8 %v3254
          %v3256 = vlaneseq
          %v3257 = vshrl.u32 %v3256, 7
          %v3258 = vsub.s32 %v3255, %v3257
          %v3259 = vrot.slane %v3237, %v3258
          %v3261 = vunpack.c.l.s4 1966171168
          %v3262 = vunpack.c.0.s8 %v3261
          %v3263 = vlaneseq
          %v3264 = vshrl.u32 %v3263, 7
          %v3265 = vsub.s32 %v3262, %v3264
          %v3266 = vrot.slane %v3238, %v3265
          %v3267 = vcombine.low %v3245, %v3252
          %v3268 = vcombine.low %v3259, %v3266
          %v3270 = vunpack.c.l.s4 1966171168
          %v3271 = vunpack.c.0.s8 %v3270
          %v3272 = vlaneseq
          %v3273 = vshrl.u32 %v3272, 7
          %v3274 = vsub.s32 %v3271, %v3273
          %v3275 = vrot.slane %v3267, %v3274
          %v3277 = vunpack.c.l.s4 1966171168
          %v3278 = vunpack.c.0.s8 %v3277
          %v3279 = vlaneseq
          %v3280 = vshrl.u32 %v3279, 7
          %v3281 = vsub.s32 %v3278, %v3280
          %v3282 = vrot.slane %v3268, %v3281
          %v3283 = vcombine.low %v3275, %v3282
          %v3284 = vcombine.low %v1889, %v1893
          %v3285 = vcombine.low %v1897, %v1901
          %v3286 = vcombine.low %v1905, %v1909
          %v3287 = vcombine.low %v1913, %v1917
          %v3289 = vunpack.c.l.s4 1966171168
          %v3290 = vunpack.c.0.s8 %v3289
          %v3291 = vlaneseq
          %v3292 = vshrl.u32 %v3291, 7
          %v3293 = vsub.s32 %v3290, %v3292
          %v3294 = vrot.slane %v3284, %v3293
          %v3296 = vunpack.c.l.s4 1966171168
          %v3297 = vunpack.c.0.s8 %v3296
          %v3298 = vlaneseq
          %v3299 = vshrl.u32 %v3298, 7
          %v3300 = vsub.s32 %v3297, %v3299
          %v3301 = vrot.slane %v3285, %v3300
          %v3303 = vunpack.c.l.s4 1966171168
          %v3304 = vunpack.c.0.s8 %v3303
          %v3305 = vlaneseq
          %v3306 = vshrl.u32 %v3305, 7
          %v3307 = vsub.s32 %v3304, %v3306
          %v3308 = vrot.slane %v3286, %v3307
          %v3310 = vunpack.c.l.s4 1966171168
          %v3311 = vunpack.c.0.s8 %v3310
          %v3312 = vlaneseq
          %v3313 = vshrl.u32 %v3312, 7
          %v3314 = vsub.s32 %v3311, %v3313
          %v3315 = vrot.slane %v3287, %v3314
          %v3316 = vcombine.low %v3294, %v3301
          %v3317 = vcombine.low %v3308, %v3315
          %v3319 = vunpack.c.l.s4 1966171168
          %v3320 = vunpack.c.0.s8 %v3319
          %v3321 = vlaneseq
          %v3322 = vshrl.u32 %v3321, 7
          %v3323 = vsub.s32 %v3320, %v3322
          %v3324 = vrot.slane %v3316, %v3323
          %v3326 = vunpack.c.l.s4 1966171168
          %v3327 = vunpack.c.0.s8 %v3326
          %v3328 = vlaneseq
          %v3329 = vshrl.u32 %v3328, 7
          %v3330 = vsub.s32 %v3327, %v3329
          %v3331 = vrot.slane %v3317, %v3330
          %v3332 = vcombine.low %v3324, %v3331
          %v3333 = vcombine.low %v1921, %v1925
          %v3334 = vcombine.low %v1929, %v1933
          %v3335 = vcombine.low %v1937, %v1941
          %v3336 = vcombine.low %v1945, %v1949
          %v3338 = vunpack.c.l.s4 1966171168
          %v3339 = vunpack.c.0.s8 %v3338
          %v3340 = vlaneseq
          %v3341 = vshrl.u32 %v3340, 7
          %v3342 = vsub.s32 %v3339, %v3341
          %v3343 = vrot.slane %v3333, %v3342
          %v3345 = vunpack.c.l.s4 1966171168
          %v3346 = vunpack.c.0.s8 %v3345
          %v3347 = vlaneseq
          %v3348 = vshrl.u32 %v3347, 7
          %v3349 = vsub.s32 %v3346, %v3348
          %v3350 = vrot.slane %v3334, %v3349
          %v3352 = vunpack.c.l.s4 1966171168
          %v3353 = vunpack.c.0.s8 %v3352
          %v3354 = vlaneseq
          %v3355 = vshrl.u32 %v3354, 7
          %v3356 = vsub.s32 %v3353, %v3355
          %v3357 = vrot.slane %v3335, %v3356
          %v3359 = vunpack.c.l.s4 1966171168
          %v3360 = vunpack.c.0.s8 %v3359
          %v3361 = vlaneseq
          %v3362 = vshrl.u32 %v3361, 7
          %v3363 = vsub.s32 %v3360, %v3362
          %v3364 = vrot.slane %v3336, %v3363
          %v3365 = vcombine.low %v3343, %v3350
          %v3366 = vcombine.low %v3357, %v3364
          %v3368 = vunpack.c.l.s4 1966171168
          %v3369 = vunpack.c.0.s8 %v3368
          %v3370 = vlaneseq
          %v3371 = vshrl.u32 %v3370, 7
          %v3372 = vsub.s32 %v3369, %v3371
          %v3373 = vrot.slane %v3365, %v3372
          %v3375 = vunpack.c.l.s4 1966171168
          %v3376 = vunpack.c.0.s8 %v3375
          %v3377 = vlaneseq
          %v3378 = vshrl.u32 %v3377, 7
          %v3379 = vsub.s32 %v3376, %v3378
          %v3380 = vrot.slane %v3366, %v3379
          %v3381 = vcombine.low %v3373, %v3380
          %v3382 = vcombine.low %v1953, %v1957
          %v3383 = vcombine.low %v1961, %v1965
          %v3384 = vcombine.low %v1969, %v1973
          %v3385 = vcombine.low %v1977, %v1981
          %v3387 = vunpack.c.l.s4 1966171168
          %v3388 = vunpack.c.0.s8 %v3387
          %v3389 = vlaneseq
          %v3390 = vshrl.u32 %v3389, 7
          %v3391 = vsub.s32 %v3388, %v3390
          %v3392 = vrot.slane %v3382, %v3391
          %v3394 = vunpack.c.l.s4 1966171168
          %v3395 = vunpack.c.0.s8 %v3394
          %v3396 = vlaneseq
          %v3397 = vshrl.u32 %v3396, 7
          %v3398 = vsub.s32 %v3395, %v3397
          %v3399 = vrot.slane %v3383, %v3398
          %v3401 = vunpack.c.l.s4 1966171168
          %v3402 = vunpack.c.0.s8 %v3401
          %v3403 = vlaneseq
          %v3404 = vshrl.u32 %v3403, 7
          %v3405 = vsub.s32 %v3402, %v3404
          %v3406 = vrot.slane %v3384, %v3405
          %v3408 = vunpack.c.l.s4 1966171168
          %v3409 = vunpack.c.0.s8 %v3408
          %v3410 = vlaneseq
          %v3411 = vshrl.u32 %v3410, 7
          %v3412 = vsub.s32 %v3409, %v3411
          %v3413 = vrot.slane %v3385, %v3412
          %v3414 = vcombine.low %v3392, %v3399
          %v3415 = vcombine.low %v3406, %v3413
          %v3417 = vunpack.c.l.s4 1966171168
          %v3418 = vunpack.c.0.s8 %v3417
          %v3419 = vlaneseq
          %v3420 = vshrl.u32 %v3419, 7
          %v3421 = vsub.s32 %v3418, %v3420
          %v3422 = vrot.slane %v3414, %v3421
          %v3424 = vunpack.c.l.s4 1966171168
          %v3425 = vunpack.c.0.s8 %v3424
          %v3426 = vlaneseq
          %v3427 = vshrl.u32 %v3426, 7
          %v3428 = vsub.s32 %v3425, %v3427
          %v3429 = vrot.slane %v3415, %v3428
          %v3430 = vcombine.low %v3422, %v3429
          %v3431 = vcombine.low %v1985, %v1989
          %v3432 = vcombine.low %v1993, %v1997
          %v3433 = vcombine.low %v2001, %v2005
          %v3434 = vcombine.low %v2009, %v2013
          %v3436 = vunpack.c.l.s4 1966171168
          %v3437 = vunpack.c.0.s8 %v3436
          %v3438 = vlaneseq
          %v3439 = vshrl.u32 %v3438, 7
          %v3440 = vsub.s32 %v3437, %v3439
          %v3441 = vrot.slane %v3431, %v3440
          %v3443 = vunpack.c.l.s4 1966171168
          %v3444 = vunpack.c.0.s8 %v3443
          %v3445 = vlaneseq
          %v3446 = vshrl.u32 %v3445, 7
          %v3447 = vsub.s32 %v3444, %v3446
          %v3448 = vrot.slane %v3432, %v3447
          %v3450 = vunpack.c.l.s4 1966171168
          %v3451 = vunpack.c.0.s8 %v3450
          %v3452 = vlaneseq
          %v3453 = vshrl.u32 %v3452, 7
          %v3454 = vsub.s32 %v3451, %v3453
          %v3455 = vrot.slane %v3433, %v3454
          %v3457 = vunpack.c.l.s4 1966171168
          %v3458 = vunpack.c.0.s8 %v3457
          %v3459 = vlaneseq
          %v3460 = vshrl.u32 %v3459, 7
          %v3461 = vsub.s32 %v3458, %v3460
          %v3462 = vrot.slane %v3434, %v3461
          %v3463 = vcombine.low %v3441, %v3448
          %v3464 = vcombine.low %v3455, %v3462
          %v3466 = vunpack.c.l.s4 1966171168
          %v3467 = vunpack.c.0.s8 %v3466
          %v3468 = vlaneseq
          %v3469 = vshrl.u32 %v3468, 7
          %v3470 = vsub.s32 %v3467, %v3469
          %v3471 = vrot.slane %v3463, %v3470
          %v3473 = vunpack.c.l.s4 1966171168
          %v3474 = vunpack.c.0.s8 %v3473
          %v3475 = vlaneseq
          %v3476 = vshrl.u32 %v3475, 7
          %v3477 = vsub.s32 %v3474, %v3476
          %v3478 = vrot.slane %v3464, %v3477
          %v3479 = vcombine.low %v3471, %v3478
          %v3480 = vcombine.low %v2017, %v2021
          %v3481 = vcombine.low %v2025, %v2029
          %v3482 = vcombine.low %v2033, %v2037
          %v3483 = vcombine.low %v2041, %v2045
          %v3485 = vunpack.c.l.s4 1966171168
          %v3486 = vunpack.c.0.s8 %v3485
          %v3487 = vlaneseq
          %v3488 = vshrl.u32 %v3487, 7
          %v3489 = vsub.s32 %v3486, %v3488
          %v3490 = vrot.slane %v3480, %v3489
          %v3492 = vunpack.c.l.s4 1966171168
          %v3493 = vunpack.c.0.s8 %v3492
          %v3494 = vlaneseq
          %v3495 = vshrl.u32 %v3494, 7
          %v3496 = vsub.s32 %v3493, %v3495
          %v3497 = vrot.slane %v3481, %v3496
          %v3499 = vunpack.c.l.s4 1966171168
          %v3500 = vunpack.c.0.s8 %v3499
          %v3501 = vlaneseq
          %v3502 = vshrl.u32 %v3501, 7
          %v3503 = vsub.s32 %v3500, %v3502
          %v3504 = vrot.slane %v3482, %v3503
          %v3506 = vunpack.c.l.s4 1966171168
          %v3507 = vunpack.c.0.s8 %v3506
          %v3508 = vlaneseq
          %v3509 = vshrl.u32 %v3508, 7
          %v3510 = vsub.s32 %v3507, %v3509
          %v3511 = vrot.slane %v3483, %v3510
          %v3512 = vcombine.low %v3490, %v3497
          %v3513 = vcombine.low %v3504, %v3511
          %v3515 = vunpack.c.l.s4 1966171168
          %v3516 = vunpack.c.0.s8 %v3515
          %v3517 = vlaneseq
          %v3518 = vshrl.u32 %v3517, 7
          %v3519 = vsub.s32 %v3516, %v3518
          %v3520 = vrot.slane %v3512, %v3519
          %v3522 = vunpack.c.l.s4 1966171168
          %v3523 = vunpack.c.0.s8 %v3522
          %v3524 = vlaneseq
          %v3525 = vshrl.u32 %v3524, 7
          %v3526 = vsub.s32 %v3523, %v3525
          %v3527 = vrot.slane %v3513, %v3526
          %v3528 = vcombine.low %v3520, %v3527
          %v3529 = vcombine.low %v2049, %v2053
          %v3530 = vcombine.low %v2057, %v2061
          %v3531 = vcombine.low %v2065, %v2069
          %v3532 = vcombine.low %v2073, %v2077
          %v3534 = vunpack.c.l.s4 1966171168
          %v3535 = vunpack.c.0.s8 %v3534
          %v3536 = vlaneseq
          %v3537 = vshrl.u32 %v3536, 7
          %v3538 = vsub.s32 %v3535, %v3537
          %v3539 = vrot.slane %v3529, %v3538
          %v3541 = vunpack.c.l.s4 1966171168
          %v3542 = vunpack.c.0.s8 %v3541
          %v3543 = vlaneseq
          %v3544 = vshrl.u32 %v3543, 7
          %v3545 = vsub.s32 %v3542, %v3544
          %v3546 = vrot.slane %v3530, %v3545
          %v3548 = vunpack.c.l.s4 1966171168
          %v3549 = vunpack.c.0.s8 %v3548
          %v3550 = vlaneseq
          %v3551 = vshrl.u32 %v3550, 7
          %v3552 = vsub.s32 %v3549, %v3551
          %v3553 = vrot.slane %v3531, %v3552
          %v3555 = vunpack.c.l.s4 1966171168
          %v3556 = vunpack.c.0.s8 %v3555
          %v3557 = vlaneseq
          %v3558 = vshrl.u32 %v3557, 7
          %v3559 = vsub.s32 %v3556, %v3558
          %v3560 = vrot.slane %v3532, %v3559
          %v3561 = vcombine.low %v3539, %v3546
          %v3562 = vcombine.low %v3553, %v3560
          %v3564 = vunpack.c.l.s4 1966171168
          %v3565 = vunpack.c.0.s8 %v3564
          %v3566 = vlaneseq
          %v3567 = vshrl.u32 %v3566, 7
          %v3568 = vsub.s32 %v3565, %v3567
          %v3569 = vrot.slane %v3561, %v3568
          %v3571 = vunpack.c.l.s4 1966171168
          %v3572 = vunpack.c.0.s8 %v3571
          %v3573 = vlaneseq
          %v3574 = vshrl.u32 %v3573, 7
          %v3575 = vsub.s32 %v3572, %v3574
          %v3576 = vrot.slane %v3562, %v3575
          %v3577 = vcombine.low %v3569, %v3576
          %v3578 = vcombine.low %v2081, %v2085
          %v3579 = vcombine.low %v2089, %v2093
          %v3580 = vcombine.low %v2097, %v2101
          %v3581 = vcombine.low %v2105, %v2109
          %v3583 = vunpack.c.l.s4 1966171168
          %v3584 = vunpack.c.0.s8 %v3583
          %v3585 = vlaneseq
          %v3586 = vshrl.u32 %v3585, 7
          %v3587 = vsub.s32 %v3584, %v3586
          %v3588 = vrot.slane %v3578, %v3587
          %v3590 = vunpack.c.l.s4 1966171168
          %v3591 = vunpack.c.0.s8 %v3590
          %v3592 = vlaneseq
          %v3593 = vshrl.u32 %v3592, 7
          %v3594 = vsub.s32 %v3591, %v3593
          %v3595 = vrot.slane %v3579, %v3594
          %v3597 = vunpack.c.l.s4 1966171168
          %v3598 = vunpack.c.0.s8 %v3597
          %v3599 = vlaneseq
          %v3600 = vshrl.u32 %v3599, 7
          %v3601 = vsub.s32 %v3598, %v3600
          %v3602 = vrot.slane %v3580, %v3601
          %v3604 = vunpack.c.l.s4 1966171168
          %v3605 = vunpack.c.0.s8 %v3604
          %v3606 = vlaneseq
          %v3607 = vshrl.u32 %v3606, 7
          %v3608 = vsub.s32 %v3605, %v3607
          %v3609 = vrot.slane %v3581, %v3608
          %v3610 = vcombine.low %v3588, %v3595
          %v3611 = vcombine.low %v3602, %v3609
          %v3613 = vunpack.c.l.s4 1966171168
          %v3614 = vunpack.c.0.s8 %v3613
          %v3615 = vlaneseq
          %v3616 = vshrl.u32 %v3615, 7
          %v3617 = vsub.s32 %v3614, %v3616
          %v3618 = vrot.slane %v3610, %v3617
          %v3620 = vunpack.c.l.s4 1966171168
          %v3621 = vunpack.c.0.s8 %v3620
          %v3622 = vlaneseq
          %v3623 = vshrl.u32 %v3622, 7
          %v3624 = vsub.s32 %v3621, %v3623
          %v3625 = vrot.slane %v3611, %v3624
          %v3626 = vcombine.low %v3618, %v3625
          %v3627 = vcombine.low %v2113, %v2117
          %v3628 = vcombine.low %v2121, %v2125
          %v3629 = vcombine.low %v2129, %v2133
          %v3630 = vcombine.low %v2137, %v2141
          %v3632 = vunpack.c.l.s4 1966171168
          %v3633 = vunpack.c.0.s8 %v3632
          %v3634 = vlaneseq
          %v3635 = vshrl.u32 %v3634, 7
          %v3636 = vsub.s32 %v3633, %v3635
          %v3637 = vrot.slane %v3627, %v3636
          %v3639 = vunpack.c.l.s4 1966171168
          %v3640 = vunpack.c.0.s8 %v3639
          %v3641 = vlaneseq
          %v3642 = vshrl.u32 %v3641, 7
          %v3643 = vsub.s32 %v3640, %v3642
          %v3644 = vrot.slane %v3628, %v3643
          %v3646 = vunpack.c.l.s4 1966171168
          %v3647 = vunpack.c.0.s8 %v3646
          %v3648 = vlaneseq
          %v3649 = vshrl.u32 %v3648, 7
          %v3650 = vsub.s32 %v3647, %v3649
          %v3651 = vrot.slane %v3629, %v3650
          %v3653 = vunpack.c.l.s4 1966171168
          %v3654 = vunpack.c.0.s8 %v3653
          %v3655 = vlaneseq
          %v3656 = vshrl.u32 %v3655, 7
          %v3657 = vsub.s32 %v3654, %v3656
          %v3658 = vrot.slane %v3630, %v3657
          %v3659 = vcombine.low %v3637, %v3644
          %v3660 = vcombine.low %v3651, %v3658
          %v3662 = vunpack.c.l.s4 1966171168
          %v3663 = vunpack.c.0.s8 %v3662
          %v3664 = vlaneseq
          %v3665 = vshrl.u32 %v3664, 7
          %v3666 = vsub.s32 %v3663, %v3665
          %v3667 = vrot.slane %v3659, %v3666
          %v3669 = vunpack.c.l.s4 1966171168
          %v3670 = vunpack.c.0.s8 %v3669
          %v3671 = vlaneseq
          %v3672 = vshrl.u32 %v3671, 7
          %v3673 = vsub.s32 %v3670, %v3672
          %v3674 = vrot.slane %v3660, %v3673
          %v3675 = vcombine.low %v3667, %v3674
          %v3676 = vcombine.low %v2145, %v2149
          %v3677 = vcombine.low %v2153, %v2157
          %v3678 = vcombine.low %v2161, %v2165
          %v3679 = vcombine.low %v2169, %v2173
          %v3681 = vunpack.c.l.s4 1966171168
          %v3682 = vunpack.c.0.s8 %v3681
          %v3683 = vlaneseq
          %v3684 = vshrl.u32 %v3683, 7
          %v3685 = vsub.s32 %v3682, %v3684
          %v3686 = vrot.slane %v3676, %v3685
          %v3688 = vunpack.c.l.s4 1966171168
          %v3689 = vunpack.c.0.s8 %v3688
          %v3690 = vlaneseq
          %v3691 = vshrl.u32 %v3690, 7
          %v3692 = vsub.s32 %v3689, %v3691
          %v3693 = vrot.slane %v3677, %v3692
          %v3695 = vunpack.c.l.s4 1966171168
          %v3696 = vunpack.c.0.s8 %v3695
          %v3697 = vlaneseq
          %v3698 = vshrl.u32 %v3697, 7
          %v3699 = vsub.s32 %v3696, %v3698
          %v3700 = vrot.slane %v3678, %v3699
          %v3702 = vunpack.c.l.s4 1966171168
          %v3703 = vunpack.c.0.s8 %v3702
          %v3704 = vlaneseq
          %v3705 = vshrl.u32 %v3704, 7
          %v3706 = vsub.s32 %v3703, %v3705
          %v3707 = vrot.slane %v3679, %v3706
          %v3708 = vcombine.low %v3686, %v3693
          %v3709 = vcombine.low %v3700, %v3707
          %v3711 = vunpack.c.l.s4 1966171168
          %v3712 = vunpack.c.0.s8 %v3711
          %v3713 = vlaneseq
          %v3714 = vshrl.u32 %v3713, 7
          %v3715 = vsub.s32 %v3712, %v3714
          %v3716 = vrot.slane %v3708, %v3715
          %v3718 = vunpack.c.l.s4 1966171168
          %v3719 = vunpack.c.0.s8 %v3718
          %v3720 = vlaneseq
          %v3721 = vshrl.u32 %v3720, 7
          %v3722 = vsub.s32 %v3719, %v3721
          %v3723 = vrot.slane %v3709, %v3722
          %v3724 = vcombine.low %v3716, %v3723
          %v3725 = vcombine.low %v2177, %v2181
          %v3726 = vcombine.low %v2185, %v2189
          %v3727 = vcombine.low %v2193, %v2197
          %v3728 = vcombine.low %v2201, %v2205
          %v3730 = vunpack.c.l.s4 1966171168
          %v3731 = vunpack.c.0.s8 %v3730
          %v3732 = vlaneseq
          %v3733 = vshrl.u32 %v3732, 7
          %v3734 = vsub.s32 %v3731, %v3733
          %v3735 = vrot.slane %v3725, %v3734
          %v3737 = vunpack.c.l.s4 1966171168
          %v3738 = vunpack.c.0.s8 %v3737
          %v3739 = vlaneseq
          %v3740 = vshrl.u32 %v3739, 7
          %v3741 = vsub.s32 %v3738, %v3740
          %v3742 = vrot.slane %v3726, %v3741
          %v3744 = vunpack.c.l.s4 1966171168
          %v3745 = vunpack.c.0.s8 %v3744
          %v3746 = vlaneseq
          %v3747 = vshrl.u32 %v3746, 7
          %v3748 = vsub.s32 %v3745, %v3747
          %v3749 = vrot.slane %v3727, %v3748
          %v3751 = vunpack.c.l.s4 1966171168
          %v3752 = vunpack.c.0.s8 %v3751
          %v3753 = vlaneseq
          %v3754 = vshrl.u32 %v3753, 7
          %v3755 = vsub.s32 %v3752, %v3754
          %v3756 = vrot.slane %v3728, %v3755
          %v3757 = vcombine.low %v3735, %v3742
          %v3758 = vcombine.low %v3749, %v3756
          %v3760 = vunpack.c.l.s4 1966171168
          %v3761 = vunpack.c.0.s8 %v3760
          %v3762 = vlaneseq
          %v3763 = vshrl.u32 %v3762, 7
          %v3764 = vsub.s32 %v3761, %v3763
          %v3765 = vrot.slane %v3757, %v3764
          %v3767 = vunpack.c.l.s4 1966171168
          %v3768 = vunpack.c.0.s8 %v3767
          %v3769 = vlaneseq
          %v3770 = vshrl.u32 %v3769, 7
          %v3771 = vsub.s32 %v3768, %v3770
          %v3772 = vrot.slane %v3758, %v3771
          %v3773 = vcombine.low %v3765, %v3772
          %3774 = vset.pattern.permute.xlu0 0
          %3775 = vperm.xlu0 %3774, %v2254
          %v3776 = vpop.permute.xlu0 %3775
          %3777 = vset.pattern.permute.xlu0 0
          %3778 = vperm.xlu0 %3777, %v2303
          %v3779 = vpop.permute.xlu0 %3778
          %3780 = vset.pattern.permute.xlu0 0
          %3781 = vperm.xlu0 %3780, %v2352
          %v3782 = vpop.permute.xlu0 %3781
          %3783 = vset.pattern.permute.xlu0 0
          %3784 = vperm.xlu0 %3783, %v2401
          %v3785 = vpop.permute.xlu0 %3784
          %3786 = vset.pattern.permute.xlu0 0
          %3787 = vperm.xlu0 %3786, %v2450
          %v3788 = vpop.permute.xlu0 %3787
          %3789 = vset.pattern.permute.xlu0 0
          %3790 = vperm.xlu0 %3789, %v2499
          %v3791 = vpop.permute.xlu0 %3790
          %3792 = vset.pattern.permute.xlu0 0
          %3793 = vperm.xlu0 %3792, %v2548
          %v3794 = vpop.permute.xlu0 %3793
          %3795 = vset.pattern.permute.xlu0 0
          %3796 = vperm.xlu0 %3795, %v2597
          %v3797 = vpop.permute.xlu0 %3796
          %3798 = vset.pattern.permute.xlu0 0
          %3799 = vperm.xlu0 %3798, %v2646
          %v3800 = vpop.permute.xlu0 %3799
          %3801 = vset.pattern.permute.xlu0 0
          %3802 = vperm.xlu0 %3801, %v2695
          %v3803 = vpop.permute.xlu0 %3802
          %3804 = vset.pattern.permute.xlu0 0
          %3805 = vperm.xlu0 %3804, %v2744
          %v3806 = vpop.permute.xlu0 %3805
          %3807 = vset.pattern.permute.xlu0 0
          %3808 = vperm.xlu0 %3807, %v2793
          %v3809 = vpop.permute.xlu0 %3808
          %3810 = vset.pattern.permute.xlu0 0
          %3811 = vperm.xlu0 %3810, %v2842
          %v3812 = vpop.permute.xlu0 %3811
          %3813 = vset.pattern.permute.xlu0 0
          %3814 = vperm.xlu0 %3813, %v2891
          %v3815 = vpop.permute.xlu0 %3814
          %3816 = vset.pattern.permute.xlu0 0
          %3817 = vperm.xlu0 %3816, %v2940
          %v3818 = vpop.permute.xlu0 %3817
          %3819 = vset.pattern.permute.xlu0 0
          %3820 = vperm.xlu0 %3819, %v2989
          %v3821 = vpop.permute.xlu0 %3820
          %3822 = vset.pattern.permute.xlu0 0
          %3823 = vperm.xlu0 %3822, %v3038
          %v3824 = vpop.permute.xlu0 %3823
          %3825 = vset.pattern.permute.xlu0 0
          %3826 = vperm.xlu0 %3825, %v3087
          %v3827 = vpop.permute.xlu0 %3826
          %3828 = vset.pattern.permute.xlu0 0
          %3829 = vperm.xlu0 %3828, %v3136
          %v3830 = vpop.permute.xlu0 %3829
          %3831 = vset.pattern.permute.xlu0 0
          %3832 = vperm.xlu0 %3831, %v3185
          %v3833 = vpop.permute.xlu0 %3832
          %3834 = vset.pattern.permute.xlu0 0
          %3835 = vperm.xlu0 %3834, %v3234
          %v3836 = vpop.permute.xlu0 %3835
          %3837 = vset.pattern.permute.xlu0 0
          %3838 = vperm.xlu0 %3837, %v3283
          %v3839 = vpop.permute.xlu0 %3838
          %3840 = vset.pattern.permute.xlu0 0
          %3841 = vperm.xlu0 %3840, %v3332
          %v3842 = vpop.permute.xlu0 %3841
          %3843 = vset.pattern.permute.xlu0 0
          %3844 = vperm.xlu0 %3843, %v3381
          %v3845 = vpop.permute.xlu0 %3844
          %3846 = vset.pattern.permute.xlu0 0
          %3847 = vperm.xlu0 %3846, %v3430
          %v3848 = vpop.permute.xlu0 %3847
          %3849 = vset.pattern.permute.xlu0 0
          %3850 = vperm.xlu0 %3849, %v3479
          %v3851 = vpop.permute.xlu0 %3850
          %3852 = vset.pattern.permute.xlu0 0
          %3853 = vperm.xlu0 %3852, %v3528
          %v3854 = vpop.permute.xlu0 %3853
          %3855 = vset.pattern.permute.xlu0 0
          %3856 = vperm.xlu0 %3855, %v3577
          %v3857 = vpop.permute.xlu0 %3856
          %3858 = vset.pattern.permute.xlu0 0
          %3859 = vperm.xlu0 %3858, %v3626
          %v3860 = vpop.permute.xlu0 %3859
          %3861 = vset.pattern.permute.xlu0 0
          %3862 = vperm.xlu0 %3861, %v3675
          %v3863 = vpop.permute.xlu0 %3862
          %3864 = vset.pattern.permute.xlu0 0
          %3865 = vperm.xlu0 %3864, %v3724
          %v3866 = vpop.permute.xlu0 %3865
          %3867 = vset.pattern.permute.xlu0 0
          %3868 = vperm.xlu0 %3867, %v3773
          %v3869 = vpop.permute.xlu0 %3868
          %v3870 = vadd.s32 %v1104, 4294967264
          %v3871 = vlaneseq
          %v3872 = vshrl.u32 %v3871, 7
          %v3873 = vsub.s32 %v3870, %v3872
          %v3874 = vrot.slane %v3776, %v3873
          %v3875 = vadd.s32 %v1104, 4294967256
          %v3876 = vlaneseq
          %v3877 = vshrl.u32 %v3876, 7
          %v3878 = vsub.s32 %v3875, %v3877
          %v3879 = vrot.slane %v3779, %v3878
          %vm3880 = vcmask 392512
          %v3881 = vsel %vm3880, %v3879, %v3874
          %v3882 = vadd.s32 %v1104, 4294967248
          %v3883 = vlaneseq
          %v3884 = vshrl.u32 %v3883, 7
          %v3885 = vsub.s32 %v3882, %v3884
          %v3886 = vrot.slane %v3782, %v3885
          %vm3887 = vcmask 458112
          %v3888 = vsel %vm3887, %v3886, %v3881
          %v3889 = vadd.s32 %v1104, 4294967240
          %v3890 = vlaneseq
          %v3891 = vshrl.u32 %v3890, 7
          %v3892 = vsub.s32 %v3889, %v3891
          %v3893 = vrot.slane %v3785, %v3892
          %vm3894 = vcmask 523712
          %v3895 = vsel %vm3894, %v3893, %v3888
          %v3896 = vadd.s32 %v1104, 4294967232
          %v3897 = vlaneseq
          %v3898 = vshrl.u32 %v3897, 7
          %v3899 = vsub.s32 %v3896, %v3898
          %v3900 = vrot.slane %v3788, %v3899
          %vm3901 = vcmask 589312
          %v3902 = vsel %vm3901, %v3900, %v3895
          %v3903 = vadd.s32 %v1104, 4294967224
          %v3904 = vlaneseq
          %v3905 = vshrl.u32 %v3904, 7
          %v3906 = vsub.s32 %v3903, %v3905
          %v3907 = vrot.slane %v3791, %v3906
          %vm3908 = vcmask 654912
          %v3909 = vsel %vm3908, %v3907, %v3902
          %v3910 = vadd.s32 %v1104, 4294967216
          %v3911 = vlaneseq
          %v3912 = vshrl.u32 %v3911, 7
          %v3913 = vsub.s32 %v3910, %v3912
          %v3914 = vrot.slane %v3794, %v3913
          %vm3915 = vcmask 720512
          %v3916 = vsel %vm3915, %v3914, %v3909
          %v3917 = vadd.s32 %v1104, 4294967208
          %v3918 = vlaneseq
          %v3919 = vshrl.u32 %v3918, 7
          %v3920 = vsub.s32 %v3917, %v3919
          %v3921 = vrot.slane %v3797, %v3920
          %vm3922 = vcmask 786112
          %v3923 = vsel %vm3922, %v3921, %v3916
          %v3924 = vadd.s32 %v1104, 4294967200
          %v3925 = vlaneseq
          %v3926 = vshrl.u32 %v3925, 7
          %v3927 = vsub.s32 %v3924, %v3926
          %v3928 = vrot.slane %v3800, %v3927
          %vm3929 = vcmask 851712
          %v3930 = vsel %vm3929, %v3928, %v3923
          %v3931 = vadd.s32 %v1104, 4294967192
          %v3932 = vlaneseq
          %v3933 = vshrl.u32 %v3932, 7
          %v3934 = vsub.s32 %v3931, %v3933
          %v3935 = vrot.slane %v3803, %v3934
          %vm3936 = vcmask 917312
          %v3937 = vsel %vm3936, %v3935, %v3930
          %v3938 = vadd.s32 %v1104, 4294967184
          %v3939 = vlaneseq
          %v3940 = vshrl.u32 %v3939, 7
          %v3941 = vsub.s32 %v3938, %v3940
          %v3942 = vrot.slane %v3806, %v3941
          %vm3943 = vcmask 982912
          %v3944 = vsel %vm3943, %v3942, %v3937
          %v3945 = vadd.s32 %v1104, 4294967176
          %v3946 = vlaneseq
          %v3947 = vshrl.u32 %v3946, 7
          %v3948 = vsub.s32 %v3945, %v3947
          %v3949 = vrot.slane %v3809, %v3948
          %vm3950 = vcmask 1048512
          %v3951 = vsel %vm3950, %v3949, %v3944
          %v3952 = vlaneseq
          %v3953 = vshrl.u32 %v3952, 7
          %v3954 = vsub.s32 %v1104, %v3953
          %v3955 = vrot.slane %v3812, %v3954
          %v3956 = vlaneseq
          %v3957 = vshrl.u32 %v3956, 7
          %v3958 = vsub.s32 %v1109, %v3957
          %v3959 = vrot.slane %v3815, %v3958
          %v3960 = vsel %vm1114, %v3959, %v3955
          %v3961 = vlaneseq
          %v3962 = vshrl.u32 %v3961, 7
          %v3963 = vsub.s32 %v1116, %v3962
          %v3964 = vrot.slane %v3818, %v3963
          %v3965 = vsel %vm1121, %v3964, %v3960
          %v3966 = vlaneseq
          %v3967 = vshrl.u32 %v3966, 7
          %v3968 = vsub.s32 %v1123, %v3967
          %v3969 = vrot.slane %v3821, %v3968
          %v3970 = vsel %vm1128, %v3969, %v3965
          %v3971 = vlaneseq
          %v3972 = vshrl.u32 %v3971, 7
          %v3973 = vsub.s32 %v3870, %v3972
          %v3974 = vrot.slane %v3824, %v3973
          %vm3975 = vcmask 326912
          %v3976 = vsel %vm3975, %v3974, %v3970
          %v3977 = vlaneseq
          %v3978 = vshrl.u32 %v3977, 7
          %v3979 = vsub.s32 %v3875, %v3978
          %v3980 = vrot.slane %v3827, %v3979
          %v3981 = vsel %vm3880, %v3980, %v3976
          %v3982 = vlaneseq
          %v3983 = vshrl.u32 %v3982, 7
          %v3984 = vsub.s32 %v3882, %v3983
          %v3985 = vrot.slane %v3830, %v3984
          %v3986 = vsel %vm3887, %v3985, %v3981
          %v3987 = vlaneseq
          %v3988 = vshrl.u32 %v3987, 7
          %v3989 = vsub.s32 %v3889, %v3988
          %v3990 = vrot.slane %v3833, %v3989
          %v3991 = vsel %vm3894, %v3990, %v3986
          %v3992 = vlaneseq
          %v3993 = vshrl.u32 %v3992, 7
          %v3994 = vsub.s32 %v3896, %v3993
          %v3995 = vrot.slane %v3836, %v3994
          %v3996 = vsel %vm3901, %v3995, %v3991
          %v3997 = vlaneseq
          %v3998 = vshrl.u32 %v3997, 7
          %v3999 = vsub.s32 %v3903, %v3998
          %v4000 = vrot.slane %v3839, %v3999
          %v4001 = vsel %vm3908, %v4000, %v3996
          %v4002 = vlaneseq
          %v4003 = vshrl.u32 %v4002, 7
          %v4004 = vsub.s32 %v3910, %v4003
          %v4005 = vrot.slane %v3842, %v4004
          %v4006 = vsel %vm3915, %v4005, %v4001
          %v4007 = vlaneseq
          %v4008 = vshrl.u32 %v4007, 7
          %v4009 = vsub.s32 %v3917, %v4008
          %v4010 = vrot.slane %v3845, %v4009
          %v4011 = vsel %vm3922, %v4010, %v4006
          %v4012 = vlaneseq
          %v4013 = vshrl.u32 %v4012, 7
          %v4014 = vsub.s32 %v3924, %v4013
          %v4015 = vrot.slane %v3848, %v4014
          %v4016 = vsel %vm3929, %v4015, %v4011
          %v4017 = vlaneseq
          %v4018 = vshrl.u32 %v4017, 7
          %v4019 = vsub.s32 %v3931, %v4018
          %v4020 = vrot.slane %v3851, %v4019
          %v4021 = vsel %vm3936, %v4020, %v4016
          %v4022 = vlaneseq
          %v4023 = vshrl.u32 %v4022, 7
          %v4024 = vsub.s32 %v3938, %v4023
          %v4025 = vrot.slane %v3854, %v4024
          %v4026 = vsel %vm3943, %v4025, %v4021
          %v4027 = vlaneseq
          %v4028 = vshrl.u32 %v4027, 7
          %v4029 = vsub.s32 %v3945, %v4028
          %v4030 = vrot.slane %v3857, %v4029
          %v4031 = vsel %vm3950, %v4030, %v4026
          %v4032 = vlaneseq
          %v4033 = vshrl.u32 %v4032, 7
          %v4034 = vsub.s32 %v1104, %v4033
          %v4035 = vrot.slane %v3860, %v4034
          %v4036 = vlaneseq
          %v4037 = vshrl.u32 %v4036, 7
          %v4038 = vsub.s32 %v1109, %v4037
          %v4039 = vrot.slane %v3863, %v4038
          %v4040 = vsel %vm1114, %v4039, %v4035
          %v4041 = vlaneseq
          %v4042 = vshrl.u32 %v4041, 7
          %v4043 = vsub.s32 %v1116, %v4042
          %v4044 = vrot.slane %v3866, %v4043
          %v4045 = vsel %vm1121, %v4044, %v4040
          %v4046 = vlaneseq
          %v4047 = vshrl.u32 %v4046, 7
          %v4048 = vsub.s32 %v1123, %v4047
          %v4049 = vrot.slane %v3869, %v4048
          %v4050 = vsel %vm1128, %v4049, %v4045
          %v4051 = vcombine.low %v3951, %v4031
          %v4053 = vunpack.c.l.s4 1966171168
          %v4054 = vunpack.c.0.s8 %v4053
          %v4055 = vlaneseq
          %v4056 = vshrl.u32 %v4055, 7
          %v4057 = vsub.s32 %v4054, %v4056
          %v4058 = vrot.slane %v4051, %v4057
          %v4060 = vunpack.c.l.s4 1966171168
          %v4061 = vunpack.c.0.s8 %v4060
          %v4062 = vlaneseq
          %v4063 = vshrl.u32 %v4062, 7
          %v4064 = vsub.s32 %v4061, %v4063
          %v4065 = vrot.slane %v4050, %v4064
          %v4066 = vcombine.low %v4058, %v4065
          %v4068 = vunpack.c.l.s4 1966171168
          %v4069 = vunpack.c.0.s8 %v4068
          %v4070 = vlaneseq
          %v4071 = vshrl.u32 %v4070, 7
          %v4072 = vsub.s32 %v4069, %v4071
          %v4073 = vrot.slane %v4066, %v4072
          %vm4075 = vcmp.ge.s32.totalorder %v1145, 32
          %vm4076 = vcmp.lt.s32.totalorder %v1145, 288
          %vm4077 = vmand %vm4075, %vm4076
          %4078 = vst.msk [vmem:[%s185] sm:$0x7] %vm4077, %v4073
        $region36: #{tpu_custom_call.1} parent=27 // pred_fallthru
          _
        %s4079 = sand.u32 %s92, 1
        %s4080 = scalar_lea.sflag [#allocation5], %s4079
        %s4081 = sand.u32 %s92, 1
        %s4082 = smul.addr %s4081, 3
        %s4083 = scalar_lea.vmem [#allocation4], %s4082
        // Predicated region
        $region37: #{tpu_custom_call.1} parent=27 // pred_check
          %p4084 = pneg %p102
        $region38: #{tpu_custom_call.1} parent=27 // pred_check_branch
          %4086 = sbr.rel (%p4084) target = $region40
        $region39: #{tpu_custom_call.1} parent=27 // pred_region
          %s4088 = ssub.s32 48, 48
          %4089 = vsyncadd %s4080, %s4088
          %s4090 = smul.addr %s20, 3
          %s4091 = smul.addr %s4090, 16
          %s4092 = scalar_lea.hbm %s2, %s4091
          %s4094 = sshll.u32 %s4083, 4
          %s4095 = int_to_ptr.vmem [resolvable:$true] %s4094
          %4097 = dma.vmem_to_hbm [thread:$0]  %s4095, 48, %s4092, %s4080
        $region40: #{tpu_custom_call.1} parent=27 // pred_fallthru
          _
      $region28: #{tpu_custom_call.1} parent=5 // pred_fallthru
        _
      %p4098 = scmp.le.s32.totalorder 2, %s11
      // Predicated region
      $region41: #{tpu_custom_call.1} parent=5 // pred_check
        %p4099 = pneg %p4098
      $region42: #{tpu_custom_call.1} parent=5 // pred_check_branch
        %4101 = sbr.rel (%p4099) target = $region44
      $region43: #{tpu_custom_call.1} parent=5 // pred_region
        %s4102 = ssub.s32 %s11, 2
        // Predicated region
        $region45: #{tpu_custom_call.1} parent=43 // pred_check
          %p4103 = pneg %p108
        $region46: #{tpu_custom_call.1} parent=43 // pred_check_branch
          %4105 = sbr.rel (%p4103) target = $region48
        $region47: #{tpu_custom_call.1} parent=43 // pred_region
          %s4106 = sand.u32 %s93, 1
          %s4107 = scalar_lea.sflag [#allocation5], %s4106
          %s4108 = sand.u32 %s93, 1
          %s4109 = smul.addr %s4108, 3
          %s4110 = scalar_lea.vmem [#allocation4], %s4109
          %4111 = dma.done %s4107, 48
        $region48: #{tpu_custom_call.1} parent=43 // pred_fallthru
          _
      $region44: #{tpu_custom_call.1} parent=5 // pred_fallthru
        _
    $region6: #{tpu_custom_call.1} parent=1 // loop_footer
      %s15 = sadd.s32 1, %s11
    $region7: #{tpu_custom_call.1} parent=1 // loop_footer_branch
      %10 = sbr.rel target = $region3
    $region8: #{tpu_custom_call.1} parent=1 // loop_exit
      _
    %4112 = vsyncpa [#allocation5], 1
    %s4113 = scalar_lea.sflag [#allocation5], 1
    %4114 = vsyncpa %s4113, 1

</llo_original>
